<compile_context>
chip_gen: v7x
topology: tpu7x:2x2x1
jax: 0.10.0
libtpu: 0.0.40
codegen_flags: <defaults>
</compile_context>

<pallas_src>
import functools

import jax
import jax.numpy as jnp
from jax import lax
from jax.experimental import pallas as pl
from jax.experimental.pallas import tpu as pltpu
import numpy as np

# ----------------------------- hparams (synthetic) ---------------------------
ENCODER_NUM_LAYERS = 2
ENCODER_HIDDEN_DIM = 32          # H
N_MEL_CHANNELS = 8               # LSTM input size (layer 0)
MAX_LEN = 8                      # sequence length T
BIDIRECT = True
EMBEDDING_DIM = 16               # E
BATCH = 2                        # B


# ------------------------------ Pallas kernel --------------------------------
def _make_encoder_kernel(T, B, H, E, num_layers):
    """Build the fused encoder kernel for static (T, B, H, E, num_layers)."""
    C = 2 * H + E          # output channels: [h_fwd | h_rev | embedding]
    G = 4 * H              # gates per direction (i|f|g|o)

    def kernel(*refs):
        # refs: x, emb, (W_cat, b_cat, U_f, U_r) * num_layers, out, act, pre
        x_ref, emb_ref = refs[0], refs[1]
        w_refs = refs[2:2 + 4 * num_layers]
        out_ref = refs[2 + 4 * num_layers]        # (T*B, C)
        act_ref = refs[3 + 4 * num_layers]        # (T*B, 2H)  inter-layer act
        pre_ref = refs[4 + 4 * num_layers]        # (T*B, 8H)  hoisted x@W_ih+b

        emb_v = emb_ref[...]                      # (B, E), hoisted load

        src = x_ref                               # layer input, (T*B, In_l)
        for layer in range(num_layers):
            w_cat = w_refs[4 * layer][...]        # (In_l, 8H)  [fwd | rev]
            b_cat = w_refs[4 * layer + 1][...]    # (1, 8H)
            u_f = w_refs[4 * layer + 2][...]      # (H, 4H)
            u_r = w_refs[4 * layer + 3][...]      # (H, 4H)

            # Hoisted input projection for BOTH directions: one big MXU matmul
            # (N = 8H = 256), completely off the serial recurrence path.
            pre_ref[...] = (
                jnp.dot(src[...], w_cat, preferred_element_type=jnp.float32)
                + b_cat)

            last = layer == num_layers - 1
            dst = out_ref if last else act_ref

            h_f = jnp.zeros((B, H), jnp.float32)
            c_f = jnp.zeros((B, H), jnp.float32)
            h_r = jnp.zeros((B, H), jnp.float32)
            c_r = jnp.zeros((B, H), jnp.float32)

            # Fully unrolled recurrence (T is static and small); forward and
            # reverse directions interleaved so their independent h@W_hh
            # pushes overlap in the MXU. Reverse direction indexes time
            # backwards in-kernel (no wrapper flips).
            for t in range(T):
                rt = T - 1 - t
                pre_f = pre_ref[t * B:(t + 1) * B, 0:G]          # (B, 4H)
                pre_r = pre_ref[rt * B:(rt + 1) * B, G:2 * G]    # (B, 4H)

                g_f = pre_f + jnp.dot(h_f, u_f,
                                      preferred_element_type=jnp.float32)
                g_r = pre_r + jnp.dot(h_r, u_r,
                                      preferred_element_type=jnp.float32)

                # Full (B, 128)-tile transcendentals on the EUP, then cheap
                # H-lane slices for the gate combination.
                sf = jax.nn.sigmoid(g_f)
                tf_ = jnp.tanh(g_f)
                sr = jax.nn.sigmoid(g_r)
                tr_ = jnp.tanh(g_r)

                # PyTorch gate order: i | f | g | o, each H lanes wide.
                c_f = sf[:, H:2 * H] * c_f + sf[:, 0:H] * tf_[:, 2 * H:3 * H]
                h_f = sf[:, 3 * H:4 * H] * jnp.tanh(c_f)
                c_r = sr[:, H:2 * H] * c_r + sr[:, 0:H] * tr_[:, 2 * H:3 * H]
                h_r = sr[:, 3 * H:4 * H] * jnp.tanh(c_r)

                # Time-major-flat layout: rows [t*B, (t+1)*B) are timestep t.
                dst[t * B:(t + 1) * B, 0:H] = h_f
                dst[rt * B:(rt + 1) * B, H:2 * H] = h_r
                if last:
                    # embedding.repeat(1, max_len, 1) fused into the output.
                    dst[t * B:(t + 1) * B, 2 * H:C] = emb_v

            src = act_ref   # next layer consumes the VMEM activation scratch

    return kernel


# ------------------------------ parameter prep --------------------------------
def make_lstm_params(key, num_layers, input_size, hidden_dim, bidirect):
    """PyTorch-style LSTM init: U(-1/sqrt(H), 1/sqrt(H)) for all params."""
    H = hidden_dim
    k = 1.0 / np.sqrt(H)
    num_dirs = 2 if bidirect else 1
    params = {}
    for layer in range(num_layers):
        in_sz = input_size if layer == 0 else H * num_dirs
        for d in range(num_dirs):
            key, k1, k2, k3, k4 = jax.random.split(key, 5)
            w_ih = jax.random.uniform(k1, (4 * H, in_sz), jnp.float32, -k, k)
            w_hh = jax.random.uniform(k2, (4 * H, H), jnp.float32, -k, k)
            b_ih = jax.random.uniform(k3, (4 * H,), jnp.float32, -k, k)
            b_hh = jax.random.uniform(k4, (4 * H,), jnp.float32, -k, k)
            params[(layer, d)] = (
                w_ih.T,                                   # (in_sz, 4H)
                w_hh.T,                                   # (H, 4H)
                (b_ih + b_hh).reshape(1, 4 * H),          # (1, 4H)
            )
    return params


def fuse_encoder_params(params, num_layers):
    """Pre-concatenate fwd/rev W_ih and biases (done once, outside jit)."""
    fused = []
    for layer in range(num_layers):
        wih_f, whh_f, b_f = params[(layer, 0)]
        wih_r, whh_r, b_r = params[(layer, 1)]
        fused.append(jnp.concatenate([wih_f, wih_r], axis=1))   # (In_l, 8H)
        fused.append(jnp.concatenate([b_f, b_r], axis=1))       # (1, 8H)
        fused.append(whh_f)                                     # (H, 4H)
        fused.append(whh_r)                                     # (H, 4H)
    return tuple(fused)


# ------------------------------ Encoder forward -------------------------------
@functools.partial(jax.jit, static_argnames=("hidden_dim", "num_layers",
                                             "bidirect", "max_len"))
def encoder_forward(mel_input, embedding, fused_params, *, hidden_dim,
                    num_layers, bidirect, max_len):
    """mel_input: (B, T, n_mel)   embedding: (B, 1, E)  -> (B, T, 2H + E)."""
    assert bidirect, "fused kernel implements the bidirectional configuration"
    B, T, _ = mel_input.shape
    assert T == max_len
    H = hidden_dim
    E = embedding.shape[-1]
    C = 2 * H + E

    # Only remaining XLA glue: one transpose in, one transpose out.
    x_flat = jnp.transpose(mel_input, (1, 0, 2)).reshape(T * B, -1)
    emb2d = embedding.reshape(B, E)

    kernel = _make_encoder_kernel(T, B, H, E, num_layers)
    out_flat = pl.pallas_call(
        kernel,
        out_shape=jax.ShapeDtypeStruct((T * B, C), jnp.float32),
        scratch_shapes=[
            pltpu.VMEM((T * B, 2 * H), jnp.float32),   # inter-layer activations
            pltpu.VMEM((T * B, 8 * H), jnp.float32),   # hoisted input proj.
        ],
    )(x_flat, emb2d, *fused_params)

    return jnp.transpose(out_flat.reshape(T, B, C), (1, 0, 2))


# ------------------------------ pure-JAX reference ----------------------------
def _ref_lstm_dir(x_tm, wih_t, whh_t, bias, H):
    B = x_tm.shape[1]

    def step(carry, x_t):
        h, c = carry
        gates = (jnp.dot(x_t, wih_t, precision=lax.Precision.HIGHEST)
                 + jnp.dot(h, whh_t, precision=lax.Precision.HIGHEST)
                 + bias)
        i = jax.nn.sigmoid(gates[:, 0 * H:1 * H])
        f = jax.nn.sigmoid(gates[:, 1 * H:2 * H])
        g = jnp.tanh(gates[:, 2 * H:3 * H])
        o = jax.nn.sigmoid(gates[:, 3 * H:4 * H])
        c = f * c + i * g
        h = o * jnp.tanh(c)
        return (h, c), h

    init = (jnp.zeros((B, H), jnp.float32), jnp.zeros((B, H), jnp.float32))
    _, ys = lax.scan(step, init, x_tm)
    return ys


def encoder_forward_ref(mel_input, embedding, params, *, hidden_dim, num_layers,
                        bidirect, max_len):
    B, T, _ = mel_input.shape
    x_tm = jnp.transpose(mel_input, (1, 0, 2))
    num_dirs = 2 if bidirect else 1
    for layer in range(num_layers):
        outs = []
        for d in range(num_dirs):
            wih_t, whh_t, bias = params[(layer, d)]
            inp = x_tm[::-1] if d == 1 else x_tm
            out = _ref_lstm_dir(inp, wih_t, whh_t, bias, hidden_dim)
            if d == 1:
                out = out[::-1]
            outs.append(out)
        x_tm = jnp.concatenate(outs, axis=-1) if num_dirs > 1 else outs[0]
    mel_encoding = jnp.transpose(x_tm, (1, 0, 2))
    emb_rep = jnp.broadcast_to(embedding, (B, max_len, embedding.shape[-1]))
    return jnp.concatenate([mel_encoding, emb_rep], axis=2)


# ------------------------------------ main ------------------------------------
if __name__ == "__main__":
    key = jax.random.PRNGKey(0)
    k_params, k_mel, k_emb = jax.random.split(key, 3)

    params = make_lstm_params(k_params, ENCODER_NUM_LAYERS, N_MEL_CHANNELS,
                              ENCODER_HIDDEN_DIM, BIDIRECT)
    fused = fuse_encoder_params(params, ENCODER_NUM_LAYERS)

    mel_input = jax.random.normal(k_mel, (BATCH, MAX_LEN, N_MEL_CHANNELS),
                                  jnp.float32)
    embedding = jax.random.normal(k_emb, (BATCH, 1, EMBEDDING_DIM), jnp.float32)

    out = encoder_forward(mel_input, embedding, fused,
                          hidden_dim=ENCODER_HIDDEN_DIM,
                          num_layers=ENCODER_NUM_LAYERS,
                          bidirect=BIDIRECT, max_len=MAX_LEN)
    out = jax.block_until_ready(out)

    num_dirs = 2 if BIDIRECT else 1
    expected_shape = (BATCH, MAX_LEN,
                      num_dirs * ENCODER_HIDDEN_DIM + EMBEDDING_DIM)
    assert out.shape == expected_shape, (out.shape, expected_shape)

    ref = encoder_forward_ref(mel_input, embedding, params,
                              hidden_dim=ENCODER_HIDDEN_DIM,
                              num_layers=ENCODER_NUM_LAYERS,
                              bidirect=BIDIRECT, max_len=MAX_LEN)
    ref = jax.block_until_ready(ref)
    # Tightened from 1e-2 per review (reference runs its matmuls at HIGHEST
    # precision so both sides are f32-accurate).
    assert np.allclose(np.asarray(out), np.asarray(ref), atol=1e-3, rtol=1e-3)

    print("KERNEL_OK")
</pallas_src>

<mosaic_0001>
module attributes {stable_mosaic.version = 11 : i64} {
  func.func @kernel(%arg0: memref<16x8xf32, #tpu.memory_space<vmem>>, %arg1: memref<2x16xf32, #tpu.memory_space<vmem>>, %arg2: memref<8x256xf32, #tpu.memory_space<vmem>>, %arg3: memref<1x256xf32, #tpu.memory_space<vmem>>, %arg4: memref<32x128xf32, #tpu.memory_space<vmem>>, %arg5: memref<32x128xf32, #tpu.memory_space<vmem>>, %arg6: memref<64x256xf32, #tpu.memory_space<vmem>>, %arg7: memref<1x256xf32, #tpu.memory_space<vmem>>, %arg8: memref<32x128xf32, #tpu.memory_space<vmem>>, %arg9: memref<32x128xf32, #tpu.memory_space<vmem>>, %arg10: memref<16x80xf32, #tpu.memory_space<vmem>>, %arg11: memref<16x64xf32, #tpu.memory_space<vmem>>, %arg12: memref<16x256xf32, #tpu.memory_space<vmem>>) attributes {dimension_semantics = [], scalar_prefetch = 0 : i64, scratch_operands = 2 : i64, tpu.core_type = #tpu.core_type<tc>} {
    %c0 = arith.constant 0 : index
    %c0_0 = arith.constant 0 : index
    %0 = vector.load %arg1[%c0, %c0_0] : memref<2x16xf32, #tpu.memory_space<vmem>>, vector<2x16xf32>
    %c0_1 = arith.constant 0 : index
    %c0_2 = arith.constant 0 : index
    %1 = vector.load %arg2[%c0_1, %c0_2] : memref<8x256xf32, #tpu.memory_space<vmem>>, vector<8x256xf32>
    %c0_3 = arith.constant 0 : index
    %c0_4 = arith.constant 0 : index
    %2 = vector.load %arg3[%c0_3, %c0_4] : memref<1x256xf32, #tpu.memory_space<vmem>>, vector<1x256xf32>
    %c0_5 = arith.constant 0 : index
    %c0_6 = arith.constant 0 : index
    %3 = vector.load %arg4[%c0_5, %c0_6] : memref<32x128xf32, #tpu.memory_space<vmem>>, vector<32x128xf32>
    %c0_7 = arith.constant 0 : index
    %c0_8 = arith.constant 0 : index
    %4 = vector.load %arg5[%c0_7, %c0_8] : memref<32x128xf32, #tpu.memory_space<vmem>>, vector<32x128xf32>
    %c0_9 = arith.constant 0 : index
    %c0_10 = arith.constant 0 : index
    %5 = vector.load %arg0[%c0_9, %c0_10] : memref<16x8xf32, #tpu.memory_space<vmem>>, vector<16x8xf32>
    %cst = arith.constant dense<0.000000e+00> : vector<16x256xf32>
    %6 = tpu.matmul %5, %1, %cst {dimension_numbers = #tpu.dot_dimension_numbers<[1], [0], [0], [1], [0, 0, 1, 1], [], []>} : vector<16x8xf32>, vector<8x256xf32>, vector<16x256xf32> -> vector<16x256xf32>
    %7 = vector.broadcast %2 : vector<1x256xf32> to vector<16x256xf32>
    %8 = arith.addf %6, %7 : vector<16x256xf32>
    %c0_11 = arith.constant 0 : index
    %c0_12 = arith.constant 0 : index
    %9 = vector.load %arg12[%c0_11, %c0_12] : memref<16x256xf32, #tpu.memory_space<vmem>>, vector<16x256xf32>
    tpu.vector_store %arg12[%c0_11, %c0_12], %8 {strides = array<i32>} : memref<16x256xf32, #tpu.memory_space<vmem>>, vector<16x256xf32>,
    %cst_13 = arith.constant 0.000000e+00 : f32
    %10 = vector.broadcast %cst_13 : f32 to vector<2x32xf32>
    %cst_14 = arith.constant 0.000000e+00 : f32
    %11 = vector.broadcast %cst_14 : f32 to vector<2x32xf32>
    %cst_15 = arith.constant 0.000000e+00 : f32
    %12 = vector.broadcast %cst_15 : f32 to vector<2x32xf32>
    %cst_16 = arith.constant 0.000000e+00 : f32
    %13 = vector.broadcast %cst_16 : f32 to vector<2x32xf32>
    %c0_17 = arith.constant 0 : index
    %c0_18 = arith.constant 0 : index
    %14 = vector.load %arg12[%c0_17, %c0_18] : memref<16x256xf32, #tpu.memory_space<vmem>>, vector<2x128xf32>
    %c14 = arith.constant 14 : index
    %c128 = arith.constant 128 : index
    %15 = vector.load %arg12[%c14, %c128] : memref<16x256xf32, #tpu.memory_space<vmem>>, vector<2x128xf32>
    %cst_19 = arith.constant dense<0.000000e+00> : vector<2x128xf32>
    %16 = tpu.matmul %10, %3, %cst_19 {dimension_numbers = #tpu.dot_dimension_numbers<[1], [0], [0], [1], [0, 0, 1, 1], [], []>} : vector<2x32xf32>, vector<32x128xf32>, vector<2x128xf32> -> vector<2x128xf32>
    %17 = arith.addf %14, %16 : vector<2x128xf32>
    %cst_20 = arith.constant dense<0.000000e+00> : vector<2x128xf32>
    %18 = tpu.matmul %12, %4, %cst_20 {dimension_numbers = #tpu.dot_dimension_numbers<[1], [0], [0], [1], [0, 0, 1, 1], [], []>} : vector<2x32xf32>, vector<32x128xf32>, vector<2x128xf32> -> vector<2x128xf32>
    %19 = arith.addf %15, %18 : vector<2x128xf32>
    %20 = arith.negf %17 : vector<2x128xf32>
    %21 = math.exp %20 : vector<2x128xf32>
    %cst_21 = arith.constant 1.000000e+00 : f32
    %22 = vector.broadcast %cst_21 : f32 to vector<2x128xf32>
    %23 = arith.addf %22, %21 : vector<2x128xf32>
    %24 = arith.divf %22, %23 : vector<2x128xf32>
    %25 = math.tanh %17 : vector<2x128xf32>
    %26 = arith.negf %19 : vector<2x128xf32>
    %27 = math.exp %26 : vector<2x128xf32>
    %cst_22 = arith.constant 1.000000e+00 : f32
    %28 = vector.broadcast %cst_22 : f32 to vector<2x128xf32>
    %29 = arith.addf %28, %27 : vector<2x128xf32>
    %30 = arith.divf %28, %29 : vector<2x128xf32>
    %31 = math.tanh %19 : vector<2x128xf32>
    %32 = vector.extract_strided_slice %24 {offsets = [0, 32], sizes = [2, 32], strides = [1, 1]} : vector<2x128xf32> to vector<2x32xf32>
    %33 = arith.mulf %32, %11 : vector<2x32xf32>
    %34 = vector.extract_strided_slice %24 {offsets = [0, 0], sizes = [2, 32], strides = [1, 1]} : vector<2x128xf32> to vector<2x32xf32>
    %35 = vector.extract_strided_slice %25 {offsets = [0, 64], sizes = [2, 32], strides = [1, 1]} : vector<2x128xf32> to vector<2x32xf32>
    %36 = arith.mulf %34, %35 : vector<2x32xf32>
    %37 = arith.addf %33, %36 : vector<2x32xf32>
    %38 = vector.extract_strided_slice %24 {offsets = [0, 96], sizes = [2, 32], strides = [1, 1]} : vector<2x128xf32> to vector<2x32xf32>
    %39 = math.tanh %37 : vector<2x32xf32>
    %40 = arith.mulf %38, %39 : vector<2x32xf32>
    %41 = vector.extract_strided_slice %30 {offsets = [0, 32], sizes = [2, 32], strides = [1, 1]} : vector<2x128xf32> to vector<2x32xf32>
    %42 = arith.mulf %41, %13 : vector<2x32xf32>
    %43 = vector.extract_strided_slice %30 {offsets = [0, 0], sizes = [2, 32], strides = [1, 1]} : vector<2x128xf32> to vector<2x32xf32>
    %44 = vector.extract_strided_slice %31 {offsets = [0, 64], sizes = [2, 32], strides = [1, 1]} : vector<2x128xf32> to vector<2x32xf32>
    %45 = arith.mulf %43, %44 : vector<2x32xf32>
    %46 = arith.addf %42, %45 : vector<2x32xf32>
    %47 = vector.extract_strided_slice %30 {offsets = [0, 96], sizes = [2, 32], strides = [1, 1]} : vector<2x128xf32> to vector<2x32xf32>
    %48 = math.tanh %46 : vector<2x32xf32>
    %49 = arith.mulf %47, %48 : vector<2x32xf32>
    %c0_23 = arith.constant 0 : index
    %c0_24 = arith.constant 0 : index
    %50 = vector.load %arg11[%c0_23, %c0_24] : memref<16x64xf32, #tpu.memory_space<vmem>>, vector<2x32xf32>
    tpu.vector_store %arg11[%c0_23, %c0_24], %40 {strides = array<i32>} : memref<16x64xf32, #tpu.memory_space<vmem>>, vector<2x32xf32>,
    %c14_25 = arith.constant 14 : index
    %c32 = arith.constant 32 : index
    %51 = vector.load %arg11[%c14_25, %c32] : memref<16x64xf32, #tpu.memory_space<vmem>>, vector<2x32xf32>
    tpu.vector_store %arg11[%c14_25, %c32], %49 {strides = array<i32>} : memref<16x64xf32, #tpu.memory_space<vmem>>, vector<2x32xf32>,
    %c2 = arith.constant 2 : index
    %c0_26 = arith.constant 0 : index
    %52 = vector.load %arg12[%c2, %c0_26] : memref<16x256xf32, #tpu.memory_space<vmem>>, vector<2x128xf32>
    %c12 = arith.constant 12 : index
    %c128_27 = arith.constant 128 : index
    %53 = vector.load %arg12[%c12, %c128_27] : memref<16x256xf32, #tpu.memory_space<vmem>>, vector<2x128xf32>
    %cst_28 = arith.constant dense<0.000000e+00> : vector<2x128xf32>
    %54 = tpu.matmul %40, %3, %cst_28 {dimension_numbers = #tpu.dot_dimension_numbers<[1], [0], [0], [1], [0, 0, 1, 1], [], []>} : vector<2x32xf32>, vector<32x128xf32>, vector<2x128xf32> -> vector<2x128xf32>
    %55 = arith.addf %52, %54 : vector<2x128xf32>
    %cst_29 = arith.constant dense<0.000000e+00> : vector<2x128xf32>
    %56 = tpu.matmul %49, %4, %cst_29 {dimension_numbers = #tpu.dot_dimension_numbers<[1], [0], [0], [1], [0, 0, 1, 1], [], []>} : vector<2x32xf32>, vector<32x128xf32>, vector<2x128xf32> -> vector<2x128xf32>
    %57 = arith.addf %53, %56 : vector<2x128xf32>
    %58 = arith.negf %55 : vector<2x128xf32>
    %59 = math.exp %58 : vector<2x128xf32>
    %cst_30 = arith.constant 1.000000e+00 : f32
    %60 = vector.broadcast %cst_30 : f32 to vector<2x128xf32>
    %61 = arith.addf %60, %59 : vector<2x128xf32>
    %62 = arith.divf %60, %61 : vector<2x128xf32>
    %63 = math.tanh %55 : vector<2x128xf32>
    %64 = arith.negf %57 : vector<2x128xf32>
    %65 = math.exp %64 : vector<2x128xf32>
    %cst_31 = arith.constant 1.000000e+00 : f32
    %66 = vector.broadcast %cst_31 : f32 to vector<2x128xf32>
    %67 = arith.addf %66, %65 : vector<2x128xf32>
    %68 = arith.divf %66, %67 : vector<2x128xf32>
    %69 = math.tanh %57 : vector<2x128xf32>
    %70 = vector.extract_strided_slice %62 {offsets = [0, 32], sizes = [2, 32], strides = [1, 1]} : vector<2x128xf32> to vector<2x32xf32>
    %71 = arith.mulf %70, %37 : vector<2x32xf32>
    %72 = vector.extract_strided_slice %62 {offsets = [0, 0], sizes = [2, 32], strides = [1, 1]} : vector<2x128xf32> to vector<2x32xf32>
    %73 = vector.extract_strided_slice %63 {offsets = [0, 64], sizes = [2, 32], strides = [1, 1]} : vector<2x128xf32> to vector<2x32xf32>
    %74 = arith.mulf %72, %73 : vector<2x32xf32>
    %75 = arith.addf %71, %74 : vector<2x32xf32>
    %76 = vector.extract_strided_slice %62 {offsets = [0, 96], sizes = [2, 32], strides = [1, 1]} : vector<2x128xf32> to vector<2x32xf32>
    %77 = math.tanh %75 : vector<2x32xf32>
    %78 = arith.mulf %76, %77 : vector<2x32xf32>
    %79 = vector.extract_strided_slice %68 {offsets = [0, 32], sizes = [2, 32], strides = [1, 1]} : vector<2x128xf32> to vector<2x32xf32>
    %80 = arith.mulf %79, %46 : vector<2x32xf32>
    %81 = vector.extract_strided_slice %68 {offsets = [0, 0], sizes = [2, 32], strides = [1, 1]} : vector<2x128xf32> to vector<2x32xf32>
    %82 = vector.extract_strided_slice %69 {offsets = [0, 64], sizes = [2, 32], strides = [1, 1]} : vector<2x128xf32> to vector<2x32xf32>
    %83 = arith.mulf %81, %82 : vector<2x32xf32>
    %84 = arith.addf %80, %83 : vector<2x32xf32>
    %85 = vector.extract_strided_slice %68 {offsets = [0, 96], sizes = [2, 32], strides = [1, 1]} : vector<2x128xf32> to vector<2x32xf32>
    %86 = math.tanh %84 : vector<2x32xf32>
    %87 = arith.mulf %85, %86 : vector<2x32xf32>
    %c2_32 = arith.constant 2 : index
    %c0_33 = arith.constant 0 : index
    %88 = vector.load %arg11[%c2_32, %c0_33] : memref<16x64xf32, #tpu.memory_space<vmem>>, vector<2x32xf32>
    tpu.vector_store %arg11[%c2_32, %c0_33], %78 {strides = array<i32>} : memref<16x64xf32, #tpu.memory_space<vmem>>, vector<2x32xf32>,
    %c12_34 = arith.constant 12 : index
    %c32_35 = arith.constant 32 : index
    %89 = vector.load %arg11[%c12_34, %c32_35] : memref<16x64xf32, #tpu.memory_space<vmem>>, vector<2x32xf32>
    tpu.vector_store %arg11[%c12_34, %c32_35], %87 {strides = array<i32>} : memref<16x64xf32, #tpu.memory_space<vmem>>, vector<2x32xf32>,
    %c4 = arith.constant 4 : index
    %c0_36 = arith.constant 0 : index
    %90 = vector.load %arg12[%c4, %c0_36] : memref<16x256xf32, #tpu.memory_space<vmem>>, vector<2x128xf32>
    %c10 = arith.constant 10 : index
    %c128_37 = arith.constant 128 : index
    %91 = vector.load %arg12[%c10, %c128_37] : memref<16x256xf32, #tpu.memory_space<vmem>>, vector<2x128xf32>
    %cst_38 = arith.constant dense<0.000000e+00> : vector<2x128xf32>
    %92 = tpu.matmul %78, %3, %cst_38 {dimension_numbers = #tpu.dot_dimension_numbers<[1], [0], [0], [1], [0, 0, 1, 1], [], []>} : vector<2x32xf32>, vector<32x128xf32>, vector<2x128xf32> -> vector<2x128xf32>
    %93 = arith.addf %90, %92 : vector<2x128xf32>
    %cst_39 = arith.constant dense<0.000000e+00> : vector<2x128xf32>
    %94 = tpu.matmul %87, %4, %cst_39 {dimension_numbers = #tpu.dot_dimension_numbers<[1], [0], [0], [1], [0, 0, 1, 1], [], []>} : vector<2x32xf32>, vector<32x128xf32>, vector<2x128xf32> -> vector<2x128xf32>
    %95 = arith.addf %91, %94 : vector<2x128xf32>
    %96 = arith.negf %93 : vector<2x128xf32>
    %97 = math.exp %96 : vector<2x128xf32>
    %cst_40 = arith.constant 1.000000e+00 : f32
    %98 = vector.broadcast %cst_40 : f32 to vector<2x128xf32>
    %99 = arith.addf %98, %97 : vector<2x128xf32>
    %100 = arith.divf %98, %99 : vector<2x128xf32>
    %101 = math.tanh %93 : vector<2x128xf32>
    %102 = arith.negf %95 : vector<2x128xf32>
    %103 = math.exp %102 : vector<2x128xf32>
    %cst_41 = arith.constant 1.000000e+00 : f32
    %104 = vector.broadcast %cst_41 : f32 to vector<2x128xf32>
    %105 = arith.addf %104, %103 : vector<2x128xf32>
    %106 = arith.divf %104, %105 : vector<2x128xf32>
    %107 = math.tanh %95 : vector<2x128xf32>
    %108 = vector.extract_strided_slice %100 {offsets = [0, 32], sizes = [2, 32], strides = [1, 1]} : vector<2x128xf32> to vector<2x32xf32>
    %109 = arith.mulf %108, %75 : vector<2x32xf32>
    %110 = vector.extract_strided_slice %100 {offsets = [0, 0], sizes = [2, 32], strides = [1, 1]} : vector<2x128xf32> to vector<2x32xf32>
    %111 = vector.extract_strided_slice %101 {offsets = [0, 64], sizes = [2, 32], strides = [1, 1]} : vector<2x128xf32> to vector<2x32xf32>
    %112 = arith.mulf %110, %111 : vector<2x32xf32>
    %113 = arith.addf %109, %112 : vector<2x32xf32>
    %114 = vector.extract_strided_slice %100 {offsets = [0, 96], sizes = [2, 32], strides = [1, 1]} : vector<2x128xf32> to vector<2x32xf32>
    %115 = math.tanh %113 : vector<2x32xf32>
    %116 = arith.mulf %114, %115 : vector<2x32xf32>
    %117 = vector.extract_strided_slice %106 {offsets = [0, 32], sizes = [2, 32], strides = [1, 1]} : vector<2x128xf32> to vector<2x32xf32>
    %118 = arith.mulf %117, %84 : vector<2x32xf32>
    %119 = vector.extract_strided_slice %106 {offsets = [0, 0], sizes = [2, 32], strides = [1, 1]} : vector<2x128xf32> to vector<2x32xf32>
    %120 = vector.extract_strided_slice %107 {offsets = [0, 64], sizes = [2, 32], strides = [1, 1]} : vector<2x128xf32> to vector<2x32xf32>
    %121 = arith.mulf %119, %120 : vector<2x32xf32>
    %122 = arith.addf %118, %121 : vector<2x32xf32>
    %123 = vector.extract_strided_slice %106 {offsets = [0, 96], sizes = [2, 32], strides = [1, 1]} : vector<2x128xf32> to vector<2x32xf32>
    %124 = math.tanh %122 : vector<2x32xf32>
    %125 = arith.mulf %123, %124 : vector<2x32xf32>
    %c4_42 = arith.constant 4 : index
    %c0_43 = arith.constant 0 : index
    %126 = vector.load %arg11[%c4_42, %c0_43] : memref<16x64xf32, #tpu.memory_space<vmem>>, vector<2x32xf32>
    tpu.vector_store %arg11[%c4_42, %c0_43], %116 {strides = array<i32>} : memref<16x64xf32, #tpu.memory_space<vmem>>, vector<2x32xf32>,
    %c10_44 = arith.constant 10 : index
    %c32_45 = arith.constant 32 : index
    %127 = vector.load %arg11[%c10_44, %c32_45] : memref<16x64xf32, #tpu.memory_space<vmem>>, vector<2x32xf32>
    tpu.vector_store %arg11[%c10_44, %c32_45], %125 {strides = array<i32>} : memref<16x64xf32, #tpu.memory_space<vmem>>, vector<2x32xf32>,
    %c6 = arith.constant 6 : index
    %c0_46 = arith.constant 0 : index
    %128 = vector.load %arg12[%c6, %c0_46] : memref<16x256xf32, #tpu.memory_space<vmem>>, vector<2x128xf32>
    %c8 = arith.constant 8 : index
    %c128_47 = arith.constant 128 : index
    %129 = vector.load %arg12[%c8, %c128_47] : memref<16x256xf32, #tpu.memory_space<vmem>>, vector<2x128xf32>
    %cst_48 = arith.constant dense<0.000000e+00> : vector<2x128xf32>
    %130 = tpu.matmul %116, %3, %cst_48 {dimension_numbers = #tpu.dot_dimension_numbers<[1], [0], [0], [1], [0, 0, 1, 1], [], []>} : vector<2x32xf32>, vector<32x128xf32>, vector<2x128xf32> -> vector<2x128xf32>
    %131 = arith.addf %128, %130 : vector<2x128xf32>
    %cst_49 = arith.constant dense<0.000000e+00> : vector<2x128xf32>
    %132 = tpu.matmul %125, %4, %cst_49 {dimension_numbers = #tpu.dot_dimension_numbers<[1], [0], [0], [1], [0, 0, 1, 1], [], []>} : vector<2x32xf32>, vector<32x128xf32>, vector<2x128xf32> -> vector<2x128xf32>
    %133 = arith.addf %129, %132 : vector<2x128xf32>
    %134 = arith.negf %131 : vector<2x128xf32>
    %135 = math.exp %134 : vector<2x128xf32>
    %cst_50 = arith.constant 1.000000e+00 : f32
    %136 = vector.broadcast %cst_50 : f32 to vector<2x128xf32>
    %137 = arith.addf %136, %135 : vector<2x128xf32>
    %138 = arith.divf %136, %137 : vector<2x128xf32>
    %139 = math.tanh %131 : vector<2x128xf32>
    %140 = arith.negf %133 : vector<2x128xf32>
    %141 = math.exp %140 : vector<2x128xf32>
    %cst_51 = arith.constant 1.000000e+00 : f32
    %142 = vector.broadcast %cst_51 : f32 to vector<2x128xf32>
    %143 = arith.addf %142, %141 : vector<2x128xf32>
    %144 = arith.divf %142, %143 : vector<2x128xf32>
    %145 = math.tanh %133 : vector<2x128xf32>
    %146 = vector.extract_strided_slice %138 {offsets = [0, 32], sizes = [2, 32], strides = [1, 1]} : vector<2x128xf32> to vector<2x32xf32>
    %147 = arith.mulf %146, %113 : vector<2x32xf32>
    %148 = vector.extract_strided_slice %138 {offsets = [0, 0], sizes = [2, 32], strides = [1, 1]} : vector<2x128xf32> to vector<2x32xf32>
    %149 = vector.extract_strided_slice %139 {offsets = [0, 64], sizes = [2, 32], strides = [1, 1]} : vector<2x128xf32> to vector<2x32xf32>
    %150 = arith.mulf %148, %149 : vector<2x32xf32>
    %151 = arith.addf %147, %150 : vector<2x32xf32>
    %152 = vector.extract_strided_slice %138 {offsets = [0, 96], sizes = [2, 32], strides = [1, 1]} : vector<2x128xf32> to vector<2x32xf32>
    %153 = math.tanh %151 : vector<2x32xf32>
    %154 = arith.mulf %152, %153 : vector<2x32xf32>
    %155 = vector.extract_strided_slice %144 {offsets = [0, 32], sizes = [2, 32], strides = [1, 1]} : vector<2x128xf32> to vector<2x32xf32>
    %156 = arith.mulf %155, %122 : vector<2x32xf32>
    %157 = vector.extract_strided_slice %144 {offsets = [0, 0], sizes = [2, 32], strides = [1, 1]} : vector<2x128xf32> to vector<2x32xf32>
    %158 = vector.extract_strided_slice %145 {offsets = [0, 64], sizes = [2, 32], strides = [1, 1]} : vector<2x128xf32> to vector<2x32xf32>
    %159 = arith.mulf %157, %158 : vector<2x32xf32>
    %160 = arith.addf %156, %159 : vector<2x32xf32>
    %161 = vector.extract_strided_slice %144 {offsets = [0, 96], sizes = [2, 32], strides = [1, 1]} : vector<2x128xf32> to vector<2x32xf32>
    %162 = math.tanh %160 : vector<2x32xf32>
    %163 = arith.mulf %161, %162 : vector<2x32xf32>
    %c6_52 = arith.constant 6 : index
    %c0_53 = arith.constant 0 : index
    %164 = vector.load %arg11[%c6_52, %c0_53] : memref<16x64xf32, #tpu.memory_space<vmem>>, vector<2x32xf32>
    tpu.vector_store %arg11[%c6_52, %c0_53], %154 {strides = array<i32>} : memref<16x64xf32, #tpu.memory_space<vmem>>, vector<2x32xf32>,
    %c8_54 = arith.constant 8 : index
    %c32_55 = arith.constant 32 : index
    %165 = vector.load %arg11[%c8_54, %c32_55] : memref<16x64xf32, #tpu.memory_space<vmem>>, vector<2x32xf32>
    tpu.vector_store %arg11[%c8_54, %c32_55], %163 {strides = array<i32>} : memref<16x64xf32, #tpu.memory_space<vmem>>, vector<2x32xf32>,
    %c8_56 = arith.constant 8 : index
    %c0_57 = arith.constant 0 : index
    %166 = vector.load %arg12[%c8_56, %c0_57] : memref<16x256xf32, #tpu.memory_space<vmem>>, vector<2x128xf32>
    %c6_58 = arith.constant 6 : index
    %c128_59 = arith.constant 128 : index
    %167 = vector.load %arg12[%c6_58, %c128_59] : memref<16x256xf32, #tpu.memory_space<vmem>>, vector<2x128xf32>
    %cst_60 = arith.constant dense<0.000000e+00> : vector<2x128xf32>
    %168 = tpu.matmul %154, %3, %cst_60 {dimension_numbers = #tpu.dot_dimension_numbers<[1], [0], [0], [1], [0, 0, 1, 1], [], []>} : vector<2x32xf32>, vector<32x128xf32>, vector<2x128xf32> -> vector<2x128xf32>
    %169 = arith.addf %166, %168 : vector<2x128xf32>
    %cst_61 = arith.constant dense<0.000000e+00> : vector<2x128xf32>
    %170 = tpu.matmul %163, %4, %cst_61 {dimension_numbers = #tpu.dot_dimension_numbers<[1], [0], [0], [1], [0, 0, 1, 1], [], []>} : vector<2x32xf32>, vector<32x128xf32>, vector<2x128xf32> -> vector<2x128xf32>
    %171 = arith.addf %167, %170 : vector<2x128xf32>
    %172 = arith.negf %169 : vector<2x128xf32>
    %173 = math.exp %172 : vector<2x128xf32>
    %cst_62 = arith.constant 1.000000e+00 : f32
    %174 = vector.broadcast %cst_62 : f32 to vector<2x128xf32>
    %175 = arith.addf %174, %173 : vector<2x128xf32>
    %176 = arith.divf %174, %175 : vector<2x128xf32>
    %177 = math.tanh %169 : vector<2x128xf32>
    %178 = arith.negf %171 : vector<2x128xf32>
    %179 = math.exp %178 : vector<2x128xf32>
    %cst_63 = arith.constant 1.000000e+00 : f32
    %180 = vector.broadcast %cst_63 : f32 to vector<2x128xf32>
    %181 = arith.addf %180, %179 : vector<2x128xf32>
    %182 = arith.divf %180, %181 : vector<2x128xf32>
    %183 = math.tanh %171 : vector<2x128xf32>
    %184 = vector.extract_strided_slice %176 {offsets = [0, 32], sizes = [2, 32], strides = [1, 1]} : vector<2x128xf32> to vector<2x32xf32>
    %185 = arith.mulf %184, %151 : vector<2x32xf32>
    %186 = vector.extract_strided_slice %176 {offsets = [0, 0], sizes = [2, 32], strides = [1, 1]} : vector<2x128xf32> to vector<2x32xf32>
    %187 = vector.extract_strided_slice %177 {offsets = [0, 64], sizes = [2, 32], strides = [1, 1]} : vector<2x128xf32> to vector<2x32xf32>
    %188 = arith.mulf %186, %187 : vector<2x32xf32>
    %189 = arith.addf %185, %188 : vector<2x32xf32>
    %190 = vector.extract_strided_slice %176 {offsets = [0, 96], sizes = [2, 32], strides = [1, 1]} : vector<2x128xf32> to vector<2x32xf32>
    %191 = math.tanh %189 : vector<2x32xf32>
    %192 = arith.mulf %190, %191 : vector<2x32xf32>
    %193 = vector.extract_strided_slice %182 {offsets = [0, 32], sizes = [2, 32], strides = [1, 1]} : vector<2x128xf32> to vector<2x32xf32>
    %194 = arith.mulf %193, %160 : vector<2x32xf32>
    %195 = vector.extract_strided_slice %182 {offsets = [0, 0], sizes = [2, 32], strides = [1, 1]} : vector<2x128xf32> to vector<2x32xf32>
    %196 = vector.extract_strided_slice %183 {offsets = [0, 64], sizes = [2, 32], strides = [1, 1]} : vector<2x128xf32> to vector<2x32xf32>
    %197 = arith.mulf %195, %196 : vector<2x32xf32>
    %198 = arith.addf %194, %197 : vector<2x32xf32>
    %199 = vector.extract_strided_slice %182 {offsets = [0, 96], sizes = [2, 32], strides = [1, 1]} : vector<2x128xf32> to vector<2x32xf32>
    %200 = math.tanh %198 : vector<2x32xf32>
    %201 = arith.mulf %199, %200 : vector<2x32xf32>
    %c8_64 = arith.constant 8 : index
    %c0_65 = arith.constant 0 : index
    %202 = vector.load %arg11[%c8_64, %c0_65] : memref<16x64xf32, #tpu.memory_space<vmem>>, vector<2x32xf32>
    tpu.vector_store %arg11[%c8_64, %c0_65], %192 {strides = array<i32>} : memref<16x64xf32, #tpu.memory_space<vmem>>, vector<2x32xf32>,
    %c6_66 = arith.constant 6 : index
    %c32_67 = arith.constant 32 : index
    %203 = vector.load %arg11[%c6_66, %c32_67] : memref<16x64xf32, #tpu.memory_space<vmem>>, vector<2x32xf32>
    tpu.vector_store %arg11[%c6_66, %c32_67], %201 {strides = array<i32>} : memref<16x64xf32, #tpu.memory_space<vmem>>, vector<2x32xf32>,
    %c10_68 = arith.constant 10 : index
    %c0_69 = arith.constant 0 : index
    %204 = vector.load %arg12[%c10_68, %c0_69] : memref<16x256xf32, #tpu.memory_space<vmem>>, vector<2x128xf32>
    %c4_70 = arith.constant 4 : index
    %c128_71 = arith.constant 128 : index
    %205 = vector.load %arg12[%c4_70, %c128_71] : memref<16x256xf32, #tpu.memory_space<vmem>>, vector<2x128xf32>
    %cst_72 = arith.constant dense<0.000000e+00> : vector<2x128xf32>
    %206 = tpu.matmul %192, %3, %cst_72 {dimension_numbers = #tpu.dot_dimension_numbers<[1], [0], [0], [1], [0, 0, 1, 1], [], []>} : vector<2x32xf32>, vector<32x128xf32>, vector<2x128xf32> -> vector<2x128xf32>
    %207 = arith.addf %204, %206 : vector<2x128xf32>
    %cst_73 = arith.constant dense<0.000000e+00> : vector<2x128xf32>
    %208 = tpu.matmul %201, %4, %cst_73 {dimension_numbers = #tpu.dot_dimension_numbers<[1], [0], [0], [1], [0, 0, 1, 1], [], []>} : vector<2x32xf32>, vector<32x128xf32>, vector<2x128xf32> -> vector<2x128xf32>
    %209 = arith.addf %205, %208 : vector<2x128xf32>
    %210 = arith.negf %207 : vector<2x128xf32>
    %211 = math.exp %210 : vector<2x128xf32>
    %cst_74 = arith.constant 1.000000e+00 : f32
    %212 = vector.broadcast %cst_74 : f32 to vector<2x128xf32>
    %213 = arith.addf %212, %211 : vector<2x128xf32>
    %214 = arith.divf %212, %213 : vector<2x128xf32>
    %215 = math.tanh %207 : vector<2x128xf32>
    %216 = arith.negf %209 : vector<2x128xf32>
    %217 = math.exp %216 : vector<2x128xf32>
    %cst_75 = arith.constant 1.000000e+00 : f32
    %218 = vector.broadcast %cst_75 : f32 to vector<2x128xf32>
    %219 = arith.addf %218, %217 : vector<2x128xf32>
    %220 = arith.divf %218, %219 : vector<2x128xf32>
    %221 = math.tanh %209 : vector<2x128xf32>
    %222 = vector.extract_strided_slice %214 {offsets = [0, 32], sizes = [2, 32], strides = [1, 1]} : vector<2x128xf32> to vector<2x32xf32>
    %223 = arith.mulf %222, %189 : vector<2x32xf32>
    %224 = vector.extract_strided_slice %214 {offsets = [0, 0], sizes = [2, 32], strides = [1, 1]} : vector<2x128xf32> to vector<2x32xf32>
    %225 = vector.extract_strided_slice %215 {offsets = [0, 64], sizes = [2, 32], strides = [1, 1]} : vector<2x128xf32> to vector<2x32xf32>
    %226 = arith.mulf %224, %225 : vector<2x32xf32>
    %227 = arith.addf %223, %226 : vector<2x32xf32>
    %228 = vector.extract_strided_slice %214 {offsets = [0, 96], sizes = [2, 32], strides = [1, 1]} : vector<2x128xf32> to vector<2x32xf32>
    %229 = math.tanh %227 : vector<2x32xf32>
    %230 = arith.mulf %228, %229 : vector<2x32xf32>
    %231 = vector.extract_strided_slice %220 {offsets = [0, 32], sizes = [2, 32], strides = [1, 1]} : vector<2x128xf32> to vector<2x32xf32>
    %232 = arith.mulf %231, %198 : vector<2x32xf32>
    %233 = vector.extract_strided_slice %220 {offsets = [0, 0], sizes = [2, 32], strides = [1, 1]} : vector<2x128xf32> to vector<2x32xf32>
    %234 = vector.extract_strided_slice %221 {offsets = [0, 64], sizes = [2, 32], strides = [1, 1]} : vector<2x128xf32> to vector<2x32xf32>
    %235 = arith.mulf %233, %234 : vector<2x32xf32>
    %236 = arith.addf %232, %235 : vector<2x32xf32>
    %237 = vector.extract_strided_slice %220 {offsets = [0, 96], sizes = [2, 32], strides = [1, 1]} : vector<2x128xf32> to vector<2x32xf32>
    %238 = math.tanh %236 : vector<2x32xf32>
    %239 = arith.mulf %237, %238 : vector<2x32xf32>
    %c10_76 = arith.constant 10 : index
    %c0_77 = arith.constant 0 : index
    %240 = vector.load %arg11[%c10_76, %c0_77] : memref<16x64xf32, #tpu.memory_space<vmem>>, vector<2x32xf32>
    tpu.vector_store %arg11[%c10_76, %c0_77], %230 {strides = array<i32>} : memref<16x64xf32, #tpu.memory_space<vmem>>, vector<2x32xf32>,
    %c4_78 = arith.constant 4 : index
    %c32_79 = arith.constant 32 : index
    %241 = vector.load %arg11[%c4_78, %c32_79] : memref<16x64xf32, #tpu.memory_space<vmem>>, vector<2x32xf32>
    tpu.vector_store %arg11[%c4_78, %c32_79], %239 {strides = array<i32>} : memref<16x64xf32, #tpu.memory_space<vmem>>, vector<2x32xf32>,
    %c12_80 = arith.constant 12 : index
    %c0_81 = arith.constant 0 : index
    %242 = vector.load %arg12[%c12_80, %c0_81] : memref<16x256xf32, #tpu.memory_space<vmem>>, vector<2x128xf32>
    %c2_82 = arith.constant 2 : index
    %c128_83 = arith.constant 128 : index
    %243 = vector.load %arg12[%c2_82, %c128_83] : memref<16x256xf32, #tpu.memory_space<vmem>>, vector<2x128xf32>
    %cst_84 = arith.constant dense<0.000000e+00> : vector<2x128xf32>
    %244 = tpu.matmul %230, %3, %cst_84 {dimension_numbers = #tpu.dot_dimension_numbers<[1], [0], [0], [1], [0, 0, 1, 1], [], []>} : vector<2x32xf32>, vector<32x128xf32>, vector<2x128xf32> -> vector<2x128xf32>
    %245 = arith.addf %242, %244 : vector<2x128xf32>
    %cst_85 = arith.constant dense<0.000000e+00> : vector<2x128xf32>
    %246 = tpu.matmul %239, %4, %cst_85 {dimension_numbers = #tpu.dot_dimension_numbers<[1], [0], [0], [1], [0, 0, 1, 1], [], []>} : vector<2x32xf32>, vector<32x128xf32>, vector<2x128xf32> -> vector<2x128xf32>
    %247 = arith.addf %243, %246 : vector<2x128xf32>
    %248 = arith.negf %245 : vector<2x128xf32>
    %249 = math.exp %248 : vector<2x128xf32>
    %cst_86 = arith.constant 1.000000e+00 : f32
    %250 = vector.broadcast %cst_86 : f32 to vector<2x128xf32>
    %251 = arith.addf %250, %249 : vector<2x128xf32>
    %252 = arith.divf %250, %251 : vector<2x128xf32>
    %253 = math.tanh %245 : vector<2x128xf32>
    %254 = arith.negf %247 : vector<2x128xf32>
    %255 = math.exp %254 : vector<2x128xf32>
    %cst_87 = arith.constant 1.000000e+00 : f32
    %256 = vector.broadcast %cst_87 : f32 to vector<2x128xf32>
    %257 = arith.addf %256, %255 : vector<2x128xf32>
    %258 = arith.divf %256, %257 : vector<2x128xf32>
    %259 = math.tanh %247 : vector<2x128xf32>
    %260 = vector.extract_strided_slice %252 {offsets = [0, 32], sizes = [2, 32], strides = [1, 1]} : vector<2x128xf32> to vector<2x32xf32>
    %261 = arith.mulf %260, %227 : vector<2x32xf32>
    %262 = vector.extract_strided_slice %252 {offsets = [0, 0], sizes = [2, 32], strides = [1, 1]} : vector<2x128xf32> to vector<2x32xf32>
    %263 = vector.extract_strided_slice %253 {offsets = [0, 64], sizes = [2, 32], strides = [1, 1]} : vector<2x128xf32> to vector<2x32xf32>
    %264 = arith.mulf %262, %263 : vector<2x32xf32>
    %265 = arith.addf %261, %264 : vector<2x32xf32>
    %266 = vector.extract_strided_slice %252 {offsets = [0, 96], sizes = [2, 32], strides = [1, 1]} : vector<2x128xf32> to vector<2x32xf32>
    %267 = math.tanh %265 : vector<2x32xf32>
    %268 = arith.mulf %266, %267 : vector<2x32xf32>
    %269 = vector.extract_strided_slice %258 {offsets = [0, 32], sizes = [2, 32], strides = [1, 1]} : vector<2x128xf32> to vector<2x32xf32>
    %270 = arith.mulf %269, %236 : vector<2x32xf32>
    %271 = vector.extract_strided_slice %258 {offsets = [0, 0], sizes = [2, 32], strides = [1, 1]} : vector<2x128xf32> to vector<2x32xf32>
    %272 = vector.extract_strided_slice %259 {offsets = [0, 64], sizes = [2, 32], strides = [1, 1]} : vector<2x128xf32> to vector<2x32xf32>
    %273 = arith.mulf %271, %272 : vector<2x32xf32>
    %274 = arith.addf %270, %273 : vector<2x32xf32>
    %275 = vector.extract_strided_slice %258 {offsets = [0, 96], sizes = [2, 32], strides = [1, 1]} : vector<2x128xf32> to vector<2x32xf32>
    %276 = math.tanh %274 : vector<2x32xf32>
    %277 = arith.mulf %275, %276 : vector<2x32xf32>
    %c12_88 = arith.constant 12 : index
    %c0_89 = arith.constant 0 : index
    %278 = vector.load %arg11[%c12_88, %c0_89] : memref<16x64xf32, #tpu.memory_space<vmem>>, vector<2x32xf32>
    tpu.vector_store %arg11[%c12_88, %c0_89], %268 {strides = array<i32>} : memref<16x64xf32, #tpu.memory_space<vmem>>, vector<2x32xf32>,
    %c2_90 = arith.constant 2 : index
    %c32_91 = arith.constant 32 : index
    %279 = vector.load %arg11[%c2_90, %c32_91] : memref<16x64xf32, #tpu.memory_space<vmem>>, vector<2x32xf32>
    tpu.vector_store %arg11[%c2_90, %c32_91], %277 {strides = array<i32>} : memref<16x64xf32, #tpu.memory_space<vmem>>, vector<2x32xf32>,
    %c14_92 = arith.constant 14 : index
    %c0_93 = arith.constant 0 : index
    %280 = vector.load %arg12[%c14_92, %c0_93] : memref<16x256xf32, #tpu.memory_space<vmem>>, vector<2x128xf32>
    %c0_94 = arith.constant 0 : index
    %c128_95 = arith.constant 128 : index
    %281 = vector.load %arg12[%c0_94, %c128_95] : memref<16x256xf32, #tpu.memory_space<vmem>>, vector<2x128xf32>
    %cst_96 = arith.constant dense<0.000000e+00> : vector<2x128xf32>
    %282 = tpu.matmul %268, %3, %cst_96 {dimension_numbers = #tpu.dot_dimension_numbers<[1], [0], [0], [1], [0, 0, 1, 1], [], []>} : vector<2x32xf32>, vector<32x128xf32>, vector<2x128xf32> -> vector<2x128xf32>
    %283 = arith.addf %280, %282 : vector<2x128xf32>
    %cst_97 = arith.constant dense<0.000000e+00> : vector<2x128xf32>
    %284 = tpu.matmul %277, %4, %cst_97 {dimension_numbers = #tpu.dot_dimension_numbers<[1], [0], [0], [1], [0, 0, 1, 1], [], []>} : vector<2x32xf32>, vector<32x128xf32>, vector<2x128xf32> -> vector<2x128xf32>
    %285 = arith.addf %281, %284 : vector<2x128xf32>
    %286 = arith.negf %283 : vector<2x128xf32>
    %287 = math.exp %286 : vector<2x128xf32>
    %cst_98 = arith.constant 1.000000e+00 : f32
    %288 = vector.broadcast %cst_98 : f32 to vector<2x128xf32>
    %289 = arith.addf %288, %287 : vector<2x128xf32>
    %290 = arith.divf %288, %289 : vector<2x128xf32>
    %291 = math.tanh %283 : vector<2x128xf32>
    %292 = arith.negf %285 : vector<2x128xf32>
    %293 = math.exp %292 : vector<2x128xf32>
    %cst_99 = arith.constant 1.000000e+00 : f32
    %294 = vector.broadcast %cst_99 : f32 to vector<2x128xf32>
    %295 = arith.addf %294, %293 : vector<2x128xf32>
    %296 = arith.divf %294, %295 : vector<2x128xf32>
    %297 = math.tanh %285 : vector<2x128xf32>
    %298 = vector.extract_strided_slice %290 {offsets = [0, 32], sizes = [2, 32], strides = [1, 1]} : vector<2x128xf32> to vector<2x32xf32>
    %299 = arith.mulf %298, %265 : vector<2x32xf32>
    %300 = vector.extract_strided_slice %290 {offsets = [0, 0], sizes = [2, 32], strides = [1, 1]} : vector<2x128xf32> to vector<2x32xf32>
    %301 = vector.extract_strided_slice %291 {offsets = [0, 64], sizes = [2, 32], strides = [1, 1]} : vector<2x128xf32> to vector<2x32xf32>
    %302 = arith.mulf %300, %301 : vector<2x32xf32>
    %303 = arith.addf %299, %302 : vector<2x32xf32>
    %304 = vector.extract_strided_slice %290 {offsets = [0, 96], sizes = [2, 32], strides = [1, 1]} : vector<2x128xf32> to vector<2x32xf32>
    %305 = math.tanh %303 : vector<2x32xf32>
    %306 = arith.mulf %304, %305 : vector<2x32xf32>
    %307 = vector.extract_strided_slice %296 {offsets = [0, 32], sizes = [2, 32], strides = [1, 1]} : vector<2x128xf32> to vector<2x32xf32>
    %308 = arith.mulf %307, %274 : vector<2x32xf32>
    %309 = vector.extract_strided_slice %296 {offsets = [0, 0], sizes = [2, 32], strides = [1, 1]} : vector<2x128xf32> to vector<2x32xf32>
    %310 = vector.extract_strided_slice %297 {offsets = [0, 64], sizes = [2, 32], strides = [1, 1]} : vector<2x128xf32> to vector<2x32xf32>
    %311 = arith.mulf %309, %310 : vector<2x32xf32>
    %312 = arith.addf %308, %311 : vector<2x32xf32>
    %313 = vector.extract_strided_slice %296 {offsets = [0, 96], sizes = [2, 32], strides = [1, 1]} : vector<2x128xf32> to vector<2x32xf32>
    %314 = math.tanh %312 : vector<2x32xf32>
    %315 = arith.mulf %313, %314 : vector<2x32xf32>
    %c14_100 = arith.constant 14 : index
    %c0_101 = arith.constant 0 : index
    %316 = vector.load %arg11[%c14_100, %c0_101] : memref<16x64xf32, #tpu.memory_space<vmem>>, vector<2x32xf32>
    tpu.vector_store %arg11[%c14_100, %c0_101], %306 {strides = array<i32>} : memref<16x64xf32, #tpu.memory_space<vmem>>, vector<2x32xf32>,
    %c0_102 = arith.constant 0 : index
    %c32_103 = arith.constant 32 : index
    %317 = vector.load %arg11[%c0_102, %c32_103] : memref<16x64xf32, #tpu.memory_space<vmem>>, vector<2x32xf32>
    tpu.vector_store %arg11[%c0_102, %c32_103], %315 {strides = array<i32>} : memref<16x64xf32, #tpu.memory_space<vmem>>, vector<2x32xf32>,
    %c0_104 = arith.constant 0 : index
    %c0_105 = arith.constant 0 : index
    %318 = vector.load %arg6[%c0_104, %c0_105] : memref<64x256xf32, #tpu.memory_space<vmem>>, vector<64x256xf32>
    %c0_106 = arith.constant 0 : index
    %c0_107 = arith.constant 0 : index
    %319 = vector.load %arg7[%c0_106, %c0_107] : memref<1x256xf32, #tpu.memory_space<vmem>>, vector<1x256xf32>
    %c0_108 = arith.constant 0 : index
    %c0_109 = arith.constant 0 : index
    %320 = vector.load %arg8[%c0_108, %c0_109] : memref<32x128xf32, #tpu.memory_space<vmem>>, vector<32x128xf32>
    %c0_110 = arith.constant 0 : index
    %c0_111 = arith.constant 0 : index
    %321 = vector.load %arg9[%c0_110, %c0_111] : memref<32x128xf32, #tpu.memory_space<vmem>>, vector<32x128xf32>
    %c0_112 = arith.constant 0 : index
    %c0_113 = arith.constant 0 : index
    %322 = vector.load %arg11[%c0_112, %c0_113] : memref<16x64xf32, #tpu.memory_space<vmem>>, vector<16x64xf32>
    %cst_114 = arith.constant dense<0.000000e+00> : vector<16x256xf32>
    %323 = tpu.matmul %322, %318, %cst_114 {dimension_numbers = #tpu.dot_dimension_numbers<[1], [0], [0], [1], [0, 0, 1, 1], [], []>} : vector<16x64xf32>, vector<64x256xf32>, vector<16x256xf32> -> vector<16x256xf32>
    %324 = vector.broadcast %319 : vector<1x256xf32> to vector<16x256xf32>
    %325 = arith.addf %323, %324 : vector<16x256xf32>
    %c0_115 = arith.constant 0 : index
    %c0_116 = arith.constant 0 : index
    %326 = vector.load %arg12[%c0_115, %c0_116] : memref<16x256xf32, #tpu.memory_space<vmem>>, vector<16x256xf32>
    tpu.vector_store %arg12[%c0_115, %c0_116], %325 {strides = array<i32>} : memref<16x256xf32, #tpu.memory_space<vmem>>, vector<16x256xf32>,
    %cst_117 = arith.constant 0.000000e+00 : f32
    %327 = vector.broadcast %cst_117 : f32 to vector<2x32xf32>
    %cst_118 = arith.constant 0.000000e+00 : f32
    %328 = vector.broadcast %cst_118 : f32 to vector<2x32xf32>
    %cst_119 = arith.constant 0.000000e+00 : f32
    %329 = vector.broadcast %cst_119 : f32 to vector<2x32xf32>
    %cst_120 = arith.constant 0.000000e+00 : f32
    %330 = vector.broadcast %cst_120 : f32 to vector<2x32xf32>
    %c0_121 = arith.constant 0 : index
    %c0_122 = arith.constant 0 : index
    %331 = vector.load %arg12[%c0_121, %c0_122] : memref<16x256xf32, #tpu.memory_space<vmem>>, vector<2x128xf32>
    %c14_123 = arith.constant 14 : index
    %c128_124 = arith.constant 128 : index
    %332 = vector.load %arg12[%c14_123, %c128_124] : memref<16x256xf32, #tpu.memory_space<vmem>>, vector<2x128xf32>
    %cst_125 = arith.constant dense<0.000000e+00> : vector<2x128xf32>
    %333 = tpu.matmul %327, %320, %cst_125 {dimension_numbers = #tpu.dot_dimension_numbers<[1], [0], [0], [1], [0, 0, 1, 1], [], []>} : vector<2x32xf32>, vector<32x128xf32>, vector<2x128xf32> -> vector<2x128xf32>
    %334 = arith.addf %331, %333 : vector<2x128xf32>
    %cst_126 = arith.constant dense<0.000000e+00> : vector<2x128xf32>
    %335 = tpu.matmul %329, %321, %cst_126 {dimension_numbers = #tpu.dot_dimension_numbers<[1], [0], [0], [1], [0, 0, 1, 1], [], []>} : vector<2x32xf32>, vector<32x128xf32>, vector<2x128xf32> -> vector<2x128xf32>
    %336 = arith.addf %332, %335 : vector<2x128xf32>
    %337 = arith.negf %334 : vector<2x128xf32>
    %338 = math.exp %337 : vector<2x128xf32>
    %cst_127 = arith.constant 1.000000e+00 : f32
    %339 = vector.broadcast %cst_127 : f32 to vector<2x128xf32>
    %340 = arith.addf %339, %338 : vector<2x128xf32>
    %341 = arith.divf %339, %340 : vector<2x128xf32>
    %342 = math.tanh %334 : vector<2x128xf32>
    %343 = arith.negf %336 : vector<2x128xf32>
    %344 = math.exp %343 : vector<2x128xf32>
    %cst_128 = arith.constant 1.000000e+00 : f32
    %345 = vector.broadcast %cst_128 : f32 to vector<2x128xf32>
    %346 = arith.addf %345, %344 : vector<2x128xf32>
    %347 = arith.divf %345, %346 : vector<2x128xf32>
    %348 = math.tanh %336 : vector<2x128xf32>
    %349 = vector.extract_strided_slice %341 {offsets = [0, 32], sizes = [2, 32], strides = [1, 1]} : vector<2x128xf32> to vector<2x32xf32>
    %350 = arith.mulf %349, %328 : vector<2x32xf32>
    %351 = vector.extract_strided_slice %341 {offsets = [0, 0], sizes = [2, 32], strides = [1, 1]} : vector<2x128xf32> to vector<2x32xf32>
    %352 = vector.extract_strided_slice %342 {offsets = [0, 64], sizes = [2, 32], strides = [1, 1]} : vector<2x128xf32> to vector<2x32xf32>
    %353 = arith.mulf %351, %352 : vector<2x32xf32>
    %354 = arith.addf %350, %353 : vector<2x32xf32>
    %355 = vector.extract_strided_slice %341 {offsets = [0, 96], sizes = [2, 32], strides = [1, 1]} : vector<2x128xf32> to vector<2x32xf32>
    %356 = math.tanh %354 : vector<2x32xf32>
    %357 = arith.mulf %355, %356 : vector<2x32xf32>
    %358 = vector.extract_strided_slice %347 {offsets = [0, 32], sizes = [2, 32], strides = [1, 1]} : vector<2x128xf32> to vector<2x32xf32>
    %359 = arith.mulf %358, %330 : vector<2x32xf32>
    %360 = vector.extract_strided_slice %347 {offsets = [0, 0], sizes = [2, 32], strides = [1, 1]} : vector<2x128xf32> to vector<2x32xf32>
    %361 = vector.extract_strided_slice %348 {offsets = [0, 64], sizes = [2, 32], strides = [1, 1]} : vector<2x128xf32> to vector<2x32xf32>
    %362 = arith.mulf %360, %361 : vector<2x32xf32>
    %363 = arith.addf %359, %362 : vector<2x32xf32>
    %364 = vector.extract_strided_slice %347 {offsets = [0, 96], sizes = [2, 32], strides = [1, 1]} : vector<2x128xf32> to vector<2x32xf32>
    %365 = math.tanh %363 : vector<2x32xf32>
    %366 = arith.mulf %364, %365 : vector<2x32xf32>
    %c0_129 = arith.constant 0 : index
    %c0_130 = arith.constant 0 : index
    %367 = vector.load %arg10[%c0_129, %c0_130] : memref<16x80xf32, #tpu.memory_space<vmem>>, vector<2x32xf32>
    tpu.vector_store %arg10[%c0_129, %c0_130], %357 {strides = array<i32>} : memref<16x80xf32, #tpu.memory_space<vmem>>, vector<2x32xf32>,
    %c14_131 = arith.constant 14 : index
    %c32_132 = arith.constant 32 : index
    %368 = vector.load %arg10[%c14_131, %c32_132] : memref<16x80xf32, #tpu.memory_space<vmem>>, vector<2x32xf32>
    tpu.vector_store %arg10[%c14_131, %c32_132], %366 {strides = array<i32>} : memref<16x80xf32, #tpu.memory_space<vmem>>, vector<2x32xf32>,
    %c0_133 = arith.constant 0 : index
    %c64 = arith.constant 64 : index
    %369 = vector.load %arg10[%c0_133, %c64] : memref<16x80xf32, #tpu.memory_space<vmem>>, vector<2x16xf32>
    tpu.vector_store %arg10[%c0_133, %c64], %0 {strides = array<i32>} : memref<16x80xf32, #tpu.memory_space<vmem>>, vector<2x16xf32>,
    %c2_134 = arith.constant 2 : index
    %c0_135 = arith.constant 0 : index
    %370 = vector.load %arg12[%c2_134, %c0_135] : memref<16x256xf32, #tpu.memory_space<vmem>>, vector<2x128xf32>
    %c12_136 = arith.constant 12 : index
    %c128_137 = arith.constant 128 : index
    %371 = vector.load %arg12[%c12_136, %c128_137] : memref<16x256xf32, #tpu.memory_space<vmem>>, vector<2x128xf32>
    %cst_138 = arith.constant dense<0.000000e+00> : vector<2x128xf32>
    %372 = tpu.matmul %357, %320, %cst_138 {dimension_numbers = #tpu.dot_dimension_numbers<[1], [0], [0], [1], [0, 0, 1, 1], [], []>} : vector<2x32xf32>, vector<32x128xf32>, vector<2x128xf32> -> vector<2x128xf32>
    %373 = arith.addf %370, %372 : vector<2x128xf32>
    %cst_139 = arith.constant dense<0.000000e+00> : vector<2x128xf32>
    %374 = tpu.matmul %366, %321, %cst_139 {dimension_numbers = #tpu.dot_dimension_numbers<[1], [0], [0], [1], [0, 0, 1, 1], [], []>} : vector<2x32xf32>, vector<32x128xf32>, vector<2x128xf32> -> vector<2x128xf32>
    %375 = arith.addf %371, %374 : vector<2x128xf32>
    %376 = arith.negf %373 : vector<2x128xf32>
    %377 = math.exp %376 : vector<2x128xf32>
    %cst_140 = arith.constant 1.000000e+00 : f32
    %378 = vector.broadcast %cst_140 : f32 to vector<2x128xf32>
    %379 = arith.addf %378, %377 : vector<2x128xf32>
    %380 = arith.divf %378, %379 : vector<2x128xf32>
    %381 = math.tanh %373 : vector<2x128xf32>
    %382 = arith.negf %375 : vector<2x128xf32>
    %383 = math.exp %382 : vector<2x128xf32>
    %cst_141 = arith.constant 1.000000e+00 : f32
    %384 = vector.broadcast %cst_141 : f32 to vector<2x128xf32>
    %385 = arith.addf %384, %383 : vector<2x128xf32>
    %386 = arith.divf %384, %385 : vector<2x128xf32>
    %387 = math.tanh %375 : vector<2x128xf32>
    %388 = vector.extract_strided_slice %380 {offsets = [0, 32], sizes = [2, 32], strides = [1, 1]} : vector<2x128xf32> to vector<2x32xf32>
    %389 = arith.mulf %388, %354 : vector<2x32xf32>
    %390 = vector.extract_strided_slice %380 {offsets = [0, 0], sizes = [2, 32], strides = [1, 1]} : vector<2x128xf32> to vector<2x32xf32>
    %391 = vector.extract_strided_slice %381 {offsets = [0, 64], sizes = [2, 32], strides = [1, 1]} : vector<2x128xf32> to vector<2x32xf32>
    %392 = arith.mulf %390, %391 : vector<2x32xf32>
    %393 = arith.addf %389, %392 : vector<2x32xf32>
    %394 = vector.extract_strided_slice %380 {offsets = [0, 96], sizes = [2, 32], strides = [1, 1]} : vector<2x128xf32> to vector<2x32xf32>
    %395 = math.tanh %393 : vector<2x32xf32>
    %396 = arith.mulf %394, %395 : vector<2x32xf32>
    %397 = vector.extract_strided_slice %386 {offsets = [0, 32], sizes = [2, 32], strides = [1, 1]} : vector<2x128xf32> to vector<2x32xf32>
    %398 = arith.mulf %397, %363 : vector<2x32xf32>
    %399 = vector.extract_strided_slice %386 {offsets = [0, 0], sizes = [2, 32], strides = [1, 1]} : vector<2x128xf32> to vector<2x32xf32>
    %400 = vector.extract_strided_slice %387 {offsets = [0, 64], sizes = [2, 32], strides = [1, 1]} : vector<2x128xf32> to vector<2x32xf32>
    %401 = arith.mulf %399, %400 : vector<2x32xf32>
    %402 = arith.addf %398, %401 : vector<2x32xf32>
    %403 = vector.extract_strided_slice %386 {offsets = [0, 96], sizes = [2, 32], strides = [1, 1]} : vector<2x128xf32> to vector<2x32xf32>
    %404 = math.tanh %402 : vector<2x32xf32>
    %405 = arith.mulf %403, %404 : vector<2x32xf32>
    %c2_142 = arith.constant 2 : index
    %c0_143 = arith.constant 0 : index
    %406 = vector.load %arg10[%c2_142, %c0_143] : memref<16x80xf32, #tpu.memory_space<vmem>>, vector<2x32xf32>
    tpu.vector_store %arg10[%c2_142, %c0_143], %396 {strides = array<i32>} : memref<16x80xf32, #tpu.memory_space<vmem>>, vector<2x32xf32>,
    %c12_144 = arith.constant 12 : index
    %c32_145 = arith.constant 32 : index
    %407 = vector.load %arg10[%c12_144, %c32_145] : memref<16x80xf32, #tpu.memory_space<vmem>>, vector<2x32xf32>
    tpu.vector_store %arg10[%c12_144, %c32_145], %405 {strides = array<i32>} : memref<16x80xf32, #tpu.memory_space<vmem>>, vector<2x32xf32>,
    %c2_146 = arith.constant 2 : index
    %c64_147 = arith.constant 64 : index
    %408 = vector.load %arg10[%c2_146, %c64_147] : memref<16x80xf32, #tpu.memory_space<vmem>>, vector<2x16xf32>
    tpu.vector_store %arg10[%c2_146, %c64_147], %0 {strides = array<i32>} : memref<16x80xf32, #tpu.memory_space<vmem>>, vector<2x16xf32>,
    %c4_148 = arith.constant 4 : index
    %c0_149 = arith.constant 0 : index
    %409 = vector.load %arg12[%c4_148, %c0_149] : memref<16x256xf32, #tpu.memory_space<vmem>>, vector<2x128xf32>
    %c10_150 = arith.constant 10 : index
    %c128_151 = arith.constant 128 : index
    %410 = vector.load %arg12[%c10_150, %c128_151] : memref<16x256xf32, #tpu.memory_space<vmem>>, vector<2x128xf32>
    %cst_152 = arith.constant dense<0.000000e+00> : vector<2x128xf32>
    %411 = tpu.matmul %396, %320, %cst_152 {dimension_numbers = #tpu.dot_dimension_numbers<[1], [0], [0], [1], [0, 0, 1, 1], [], []>} : vector<2x32xf32>, vector<32x128xf32>, vector<2x128xf32> -> vector<2x128xf32>
    %412 = arith.addf %409, %411 : vector<2x128xf32>
    %cst_153 = arith.constant dense<0.000000e+00> : vector<2x128xf32>
    %413 = tpu.matmul %405, %321, %cst_153 {dimension_numbers = #tpu.dot_dimension_numbers<[1], [0], [0], [1], [0, 0, 1, 1], [], []>} : vector<2x32xf32>, vector<32x128xf32>, vector<2x128xf32> -> vector<2x128xf32>
    %414 = arith.addf %410, %413 : vector<2x128xf32>
    %415 = arith.negf %412 : vector<2x128xf32>
    %416 = math.exp %415 : vector<2x128xf32>
    %cst_154 = arith.constant 1.000000e+00 : f32
    %417 = vector.broadcast %cst_154 : f32 to vector<2x128xf32>
    %418 = arith.addf %417, %416 : vector<2x128xf32>
    %419 = arith.divf %417, %418 : vector<2x128xf32>
    %420 = math.tanh %412 : vector<2x128xf32>
    %421 = arith.negf %414 : vector<2x128xf32>
    %422 = math.exp %421 : vector<2x128xf32>
    %cst_155 = arith.constant 1.000000e+00 : f32
    %423 = vector.broadcast %cst_155 : f32 to vector<2x128xf32>
    %424 = arith.addf %423, %422 : vector<2x128xf32>
    %425 = arith.divf %423, %424 : vector<2x128xf32>
    %426 = math.tanh %414 : vector<2x128xf32>
    %427 = vector.extract_strided_slice %419 {offsets = [0, 32], sizes = [2, 32], strides = [1, 1]} : vector<2x128xf32> to vector<2x32xf32>
    %428 = arith.mulf %427, %393 : vector<2x32xf32>
    %429 = vector.extract_strided_slice %419 {offsets = [0, 0], sizes = [2, 32], strides = [1, 1]} : vector<2x128xf32> to vector<2x32xf32>
    %430 = vector.extract_strided_slice %420 {offsets = [0, 64], sizes = [2, 32], strides = [1, 1]} : vector<2x128xf32> to vector<2x32xf32>
    %431 = arith.mulf %429, %430 : vector<2x32xf32>
    %432 = arith.addf %428, %431 : vector<2x32xf32>
    %433 = vector.extract_strided_slice %419 {offsets = [0, 96], sizes = [2, 32], strides = [1, 1]} : vector<2x128xf32> to vector<2x32xf32>
    %434 = math.tanh %432 : vector<2x32xf32>
    %435 = arith.mulf %433, %434 : vector<2x32xf32>
    %436 = vector.extract_strided_slice %425 {offsets = [0, 32], sizes = [2, 32], strides = [1, 1]} : vector<2x128xf32> to vector<2x32xf32>
    %437 = arith.mulf %436, %402 : vector<2x32xf32>
    %438 = vector.extract_strided_slice %425 {offsets = [0, 0], sizes = [2, 32], strides = [1, 1]} : vector<2x128xf32> to vector<2x32xf32>
    %439 = vector.extract_strided_slice %426 {offsets = [0, 64], sizes = [2, 32], strides = [1, 1]} : vector<2x128xf32> to vector<2x32xf32>
    %440 = arith.mulf %438, %439 : vector<2x32xf32>
    %441 = arith.addf %437, %440 : vector<2x32xf32>
    %442 = vector.extract_strided_slice %425 {offsets = [0, 96], sizes = [2, 32], strides = [1, 1]} : vector<2x128xf32> to vector<2x32xf32>
    %443 = math.tanh %441 : vector<2x32xf32>
    %444 = arith.mulf %442, %443 : vector<2x32xf32>
    %c4_156 = arith.constant 4 : index
    %c0_157 = arith.constant 0 : index
    %445 = vector.load %arg10[%c4_156, %c0_157] : memref<16x80xf32, #tpu.memory_space<vmem>>, vector<2x32xf32>
    tpu.vector_store %arg10[%c4_156, %c0_157], %435 {strides = array<i32>} : memref<16x80xf32, #tpu.memory_space<vmem>>, vector<2x32xf32>,
    %c10_158 = arith.constant 10 : index
    %c32_159 = arith.constant 32 : index
    %446 = vector.load %arg10[%c10_158, %c32_159] : memref<16x80xf32, #tpu.memory_space<vmem>>, vector<2x32xf32>
    tpu.vector_store %arg10[%c10_158, %c32_159], %444 {strides = array<i32>} : memref<16x80xf32, #tpu.memory_space<vmem>>, vector<2x32xf32>,
    %c4_160 = arith.constant 4 : index
    %c64_161 = arith.constant 64 : index
    %447 = vector.load %arg10[%c4_160, %c64_161] : memref<16x80xf32, #tpu.memory_space<vmem>>, vector<2x16xf32>
    tpu.vector_store %arg10[%c4_160, %c64_161], %0 {strides = array<i32>} : memref<16x80xf32, #tpu.memory_space<vmem>>, vector<2x16xf32>,
    %c6_162 = arith.constant 6 : index
    %c0_163 = arith.constant 0 : index
    %448 = vector.load %arg12[%c6_162, %c0_163] : memref<16x256xf32, #tpu.memory_space<vmem>>, vector<2x128xf32>
    %c8_164 = arith.constant 8 : index
    %c128_165 = arith.constant 128 : index
    %449 = vector.load %arg12[%c8_164, %c128_165] : memref<16x256xf32, #tpu.memory_space<vmem>>, vector<2x128xf32>
    %cst_166 = arith.constant dense<0.000000e+00> : vector<2x128xf32>
    %450 = tpu.matmul %435, %320, %cst_166 {dimension_numbers = #tpu.dot_dimension_numbers<[1], [0], [0], [1], [0, 0, 1, 1], [], []>} : vector<2x32xf32>, vector<32x128xf32>, vector<2x128xf32> -> vector<2x128xf32>
    %451 = arith.addf %448, %450 : vector<2x128xf32>
    %cst_167 = arith.constant dense<0.000000e+00> : vector<2x128xf32>
    %452 = tpu.matmul %444, %321, %cst_167 {dimension_numbers = #tpu.dot_dimension_numbers<[1], [0], [0], [1], [0, 0, 1, 1], [], []>} : vector<2x32xf32>, vector<32x128xf32>, vector<2x128xf32> -> vector<2x128xf32>
    %453 = arith.addf %449, %452 : vector<2x128xf32>
    %454 = arith.negf %451 : vector<2x128xf32>
    %455 = math.exp %454 : vector<2x128xf32>
    %cst_168 = arith.constant 1.000000e+00 : f32
    %456 = vector.broadcast %cst_168 : f32 to vector<2x128xf32>
    %457 = arith.addf %456, %455 : vector<2x128xf32>
    %458 = arith.divf %456, %457 : vector<2x128xf32>
    %459 = math.tanh %451 : vector<2x128xf32>
    %460 = arith.negf %453 : vector<2x128xf32>
    %461 = math.exp %460 : vector<2x128xf32>
    %cst_169 = arith.constant 1.000000e+00 : f32
    %462 = vector.broadcast %cst_169 : f32 to vector<2x128xf32>
    %463 = arith.addf %462, %461 : vector<2x128xf32>
    %464 = arith.divf %462, %463 : vector<2x128xf32>
    %465 = math.tanh %453 : vector<2x128xf32>
    %466 = vector.extract_strided_slice %458 {offsets = [0, 32], sizes = [2, 32], strides = [1, 1]} : vector<2x128xf32> to vector<2x32xf32>
    %467 = arith.mulf %466, %432 : vector<2x32xf32>
    %468 = vector.extract_strided_slice %458 {offsets = [0, 0], sizes = [2, 32], strides = [1, 1]} : vector<2x128xf32> to vector<2x32xf32>
    %469 = vector.extract_strided_slice %459 {offsets = [0, 64], sizes = [2, 32], strides = [1, 1]} : vector<2x128xf32> to vector<2x32xf32>
    %470 = arith.mulf %468, %469 : vector<2x32xf32>
    %471 = arith.addf %467, %470 : vector<2x32xf32>
    %472 = vector.extract_strided_slice %458 {offsets = [0, 96], sizes = [2, 32], strides = [1, 1]} : vector<2x128xf32> to vector<2x32xf32>
    %473 = math.tanh %471 : vector<2x32xf32>
    %474 = arith.mulf %472, %473 : vector<2x32xf32>
    %475 = vector.extract_strided_slice %464 {offsets = [0, 32], sizes = [2, 32], strides = [1, 1]} : vector<2x128xf32> to vector<2x32xf32>
    %476 = arith.mulf %475, %441 : vector<2x32xf32>
    %477 = vector.extract_strided_slice %464 {offsets = [0, 0], sizes = [2, 32], strides = [1, 1]} : vector<2x128xf32> to vector<2x32xf32>
    %478 = vector.extract_strided_slice %465 {offsets = [0, 64], sizes = [2, 32], strides = [1, 1]} : vector<2x128xf32> to vector<2x32xf32>
    %479 = arith.mulf %477, %478 : vector<2x32xf32>
    %480 = arith.addf %476, %479 : vector<2x32xf32>
    %481 = vector.extract_strided_slice %464 {offsets = [0, 96], sizes = [2, 32], strides = [1, 1]} : vector<2x128xf32> to vector<2x32xf32>
    %482 = math.tanh %480 : vector<2x32xf32>
    %483 = arith.mulf %481, %482 : vector<2x32xf32>
    %c6_170 = arith.constant 6 : index
    %c0_171 = arith.constant 0 : index
    %484 = vector.load %arg10[%c6_170, %c0_171] : memref<16x80xf32, #tpu.memory_space<vmem>>, vector<2x32xf32>
    tpu.vector_store %arg10[%c6_170, %c0_171], %474 {strides = array<i32>} : memref<16x80xf32, #tpu.memory_space<vmem>>, vector<2x32xf32>,
    %c8_172 = arith.constant 8 : index
    %c32_173 = arith.constant 32 : index
    %485 = vector.load %arg10[%c8_172, %c32_173] : memref<16x80xf32, #tpu.memory_space<vmem>>, vector<2x32xf32>
    tpu.vector_store %arg10[%c8_172, %c32_173], %483 {strides = array<i32>} : memref<16x80xf32, #tpu.memory_space<vmem>>, vector<2x32xf32>,
    %c6_174 = arith.constant 6 : index
    %c64_175 = arith.constant 64 : index
    %486 = vector.load %arg10[%c6_174, %c64_175] : memref<16x80xf32, #tpu.memory_space<vmem>>, vector<2x16xf32>
    tpu.vector_store %arg10[%c6_174, %c64_175], %0 {strides = array<i32>} : memref<16x80xf32, #tpu.memory_space<vmem>>, vector<2x16xf32>,
    %c8_176 = arith.constant 8 : index
    %c0_177 = arith.constant 0 : index
    %487 = vector.load %arg12[%c8_176, %c0_177] : memref<16x256xf32, #tpu.memory_space<vmem>>, vector<2x128xf32>
    %c6_178 = arith.constant 6 : index
    %c128_179 = arith.constant 128 : index
    %488 = vector.load %arg12[%c6_178, %c128_179] : memref<16x256xf32, #tpu.memory_space<vmem>>, vector<2x128xf32>
    %cst_180 = arith.constant dense<0.000000e+00> : vector<2x128xf32>
    %489 = tpu.matmul %474, %320, %cst_180 {dimension_numbers = #tpu.dot_dimension_numbers<[1], [0], [0], [1], [0, 0, 1, 1], [], []>} : vector<2x32xf32>, vector<32x128xf32>, vector<2x128xf32> -> vector<2x128xf32>
    %490 = arith.addf %487, %489 : vector<2x128xf32>
    %cst_181 = arith.constant dense<0.000000e+00> : vector<2x128xf32>
    %491 = tpu.matmul %483, %321, %cst_181 {dimension_numbers = #tpu.dot_dimension_numbers<[1], [0], [0], [1], [0, 0, 1, 1], [], []>} : vector<2x32xf32>, vector<32x128xf32>, vector<2x128xf32> -> vector<2x128xf32>
    %492 = arith.addf %488, %491 : vector<2x128xf32>
    %493 = arith.negf %490 : vector<2x128xf32>
    %494 = math.exp %493 : vector<2x128xf32>
    %cst_182 = arith.constant 1.000000e+00 : f32
    %495 = vector.broadcast %cst_182 : f32 to vector<2x128xf32>
    %496 = arith.addf %495, %494 : vector<2x128xf32>
    %497 = arith.divf %495, %496 : vector<2x128xf32>
    %498 = math.tanh %490 : vector<2x128xf32>
    %499 = arith.negf %492 : vector<2x128xf32>
    %500 = math.exp %499 : vector<2x128xf32>
    %cst_183 = arith.constant 1.000000e+00 : f32
    %501 = vector.broadcast %cst_183 : f32 to vector<2x128xf32>
    %502 = arith.addf %501, %500 : vector<2x128xf32>
    %503 = arith.divf %501, %502 : vector<2x128xf32>
    %504 = math.tanh %492 : vector<2x128xf32>
    %505 = vector.extract_strided_slice %497 {offsets = [0, 32], sizes = [2, 32], strides = [1, 1]} : vector<2x128xf32> to vector<2x32xf32>
    %506 = arith.mulf %505, %471 : vector<2x32xf32>
    %507 = vector.extract_strided_slice %497 {offsets = [0, 0], sizes = [2, 32], strides = [1, 1]} : vector<2x128xf32> to vector<2x32xf32>
    %508 = vector.extract_strided_slice %498 {offsets = [0, 64], sizes = [2, 32], strides = [1, 1]} : vector<2x128xf32> to vector<2x32xf32>
    %509 = arith.mulf %507, %508 : vector<2x32xf32>
    %510 = arith.addf %506, %509 : vector<2x32xf32>
    %511 = vector.extract_strided_slice %497 {offsets = [0, 96], sizes = [2, 32], strides = [1, 1]} : vector<2x128xf32> to vector<2x32xf32>
    %512 = math.tanh %510 : vector<2x32xf32>
    %513 = arith.mulf %511, %512 : vector<2x32xf32>
    %514 = vector.extract_strided_slice %503 {offsets = [0, 32], sizes = [2, 32], strides = [1, 1]} : vector<2x128xf32> to vector<2x32xf32>
    %515 = arith.mulf %514, %480 : vector<2x32xf32>
    %516 = vector.extract_strided_slice %503 {offsets = [0, 0], sizes = [2, 32], strides = [1, 1]} : vector<2x128xf32> to vector<2x32xf32>
    %517 = vector.extract_strided_slice %504 {offsets = [0, 64], sizes = [2, 32], strides = [1, 1]} : vector<2x128xf32> to vector<2x32xf32>
    %518 = arith.mulf %516, %517 : vector<2x32xf32>
    %519 = arith.addf %515, %518 : vector<2x32xf32>
    %520 = vector.extract_strided_slice %503 {offsets = [0, 96], sizes = [2, 32], strides = [1, 1]} : vector<2x128xf32> to vector<2x32xf32>
    %521 = math.tanh %519 : vector<2x32xf32>
    %522 = arith.mulf %520, %521 : vector<2x32xf32>
    %c8_184 = arith.constant 8 : index
    %c0_185 = arith.constant 0 : index
    %523 = vector.load %arg10[%c8_184, %c0_185] : memref<16x80xf32, #tpu.memory_space<vmem>>, vector<2x32xf32>
    tpu.vector_store %arg10[%c8_184, %c0_185], %513 {strides = array<i32>} : memref<16x80xf32, #tpu.memory_space<vmem>>, vector<2x32xf32>,
    %c6_186 = arith.constant 6 : index
    %c32_187 = arith.constant 32 : index
    %524 = vector.load %arg10[%c6_186, %c32_187] : memref<16x80xf32, #tpu.memory_space<vmem>>, vector<2x32xf32>
    tpu.vector_store %arg10[%c6_186, %c32_187], %522 {strides = array<i32>} : memref<16x80xf32, #tpu.memory_space<vmem>>, vector<2x32xf32>,
    %c8_188 = arith.constant 8 : index
    %c64_189 = arith.constant 64 : index
    %525 = vector.load %arg10[%c8_188, %c64_189] : memref<16x80xf32, #tpu.memory_space<vmem>>, vector<2x16xf32>
    tpu.vector_store %arg10[%c8_188, %c64_189], %0 {strides = array<i32>} : memref<16x80xf32, #tpu.memory_space<vmem>>, vector<2x16xf32>,
    %c10_190 = arith.constant 10 : index
    %c0_191 = arith.constant 0 : index
    %526 = vector.load %arg12[%c10_190, %c0_191] : memref<16x256xf32, #tpu.memory_space<vmem>>, vector<2x128xf32>
    %c4_192 = arith.constant 4 : index
    %c128_193 = arith.constant 128 : index
    %527 = vector.load %arg12[%c4_192, %c128_193] : memref<16x256xf32, #tpu.memory_space<vmem>>, vector<2x128xf32>
    %cst_194 = arith.constant dense<0.000000e+00> : vector<2x128xf32>
    %528 = tpu.matmul %513, %320, %cst_194 {dimension_numbers = #tpu.dot_dimension_numbers<[1], [0], [0], [1], [0, 0, 1, 1], [], []>} : vector<2x32xf32>, vector<32x128xf32>, vector<2x128xf32> -> vector<2x128xf32>
    %529 = arith.addf %526, %528 : vector<2x128xf32>
    %cst_195 = arith.constant dense<0.000000e+00> : vector<2x128xf32>
    %530 = tpu.matmul %522, %321, %cst_195 {dimension_numbers = #tpu.dot_dimension_numbers<[1], [0], [0], [1], [0, 0, 1, 1], [], []>} : vector<2x32xf32>, vector<32x128xf32>, vector<2x128xf32> -> vector<2x128xf32>
    %531 = arith.addf %527, %530 : vector<2x128xf32>
    %532 = arith.negf %529 : vector<2x128xf32>
    %533 = math.exp %532 : vector<2x128xf32>
    %cst_196 = arith.constant 1.000000e+00 : f32
    %534 = vector.broadcast %cst_196 : f32 to vector<2x128xf32>
    %535 = arith.addf %534, %533 : vector<2x128xf32>
    %536 = arith.divf %534, %535 : vector<2x128xf32>
    %537 = math.tanh %529 : vector<2x128xf32>
    %538 = arith.negf %531 : vector<2x128xf32>
    %539 = math.exp %538 : vector<2x128xf32>
    %cst_197 = arith.constant 1.000000e+00 : f32
    %540 = vector.broadcast %cst_197 : f32 to vector<2x128xf32>
    %541 = arith.addf %540, %539 : vector<2x128xf32>
    %542 = arith.divf %540, %541 : vector<2x128xf32>
    %543 = math.tanh %531 : vector<2x128xf32>
    %544 = vector.extract_strided_slice %536 {offsets = [0, 32], sizes = [2, 32], strides = [1, 1]} : vector<2x128xf32> to vector<2x32xf32>
    %545 = arith.mulf %544, %510 : vector<2x32xf32>
    %546 = vector.extract_strided_slice %536 {offsets = [0, 0], sizes = [2, 32], strides = [1, 1]} : vector<2x128xf32> to vector<2x32xf32>
    %547 = vector.extract_strided_slice %537 {offsets = [0, 64], sizes = [2, 32], strides = [1, 1]} : vector<2x128xf32> to vector<2x32xf32>
    %548 = arith.mulf %546, %547 : vector<2x32xf32>
    %549 = arith.addf %545, %548 : vector<2x32xf32>
    %550 = vector.extract_strided_slice %536 {offsets = [0, 96], sizes = [2, 32], strides = [1, 1]} : vector<2x128xf32> to vector<2x32xf32>
    %551 = math.tanh %549 : vector<2x32xf32>
    %552 = arith.mulf %550, %551 : vector<2x32xf32>
    %553 = vector.extract_strided_slice %542 {offsets = [0, 32], sizes = [2, 32], strides = [1, 1]} : vector<2x128xf32> to vector<2x32xf32>
    %554 = arith.mulf %553, %519 : vector<2x32xf32>
    %555 = vector.extract_strided_slice %542 {offsets = [0, 0], sizes = [2, 32], strides = [1, 1]} : vector<2x128xf32> to vector<2x32xf32>
    %556 = vector.extract_strided_slice %543 {offsets = [0, 64], sizes = [2, 32], strides = [1, 1]} : vector<2x128xf32> to vector<2x32xf32>
    %557 = arith.mulf %555, %556 : vector<2x32xf32>
    %558 = arith.addf %554, %557 : vector<2x32xf32>
    %559 = vector.extract_strided_slice %542 {offsets = [0, 96], sizes = [2, 32], strides = [1, 1]} : vector<2x128xf32> to vector<2x32xf32>
    %560 = math.tanh %558 : vector<2x32xf32>
    %561 = arith.mulf %559, %560 : vector<2x32xf32>
    %c10_198 = arith.constant 10 : index
    %c0_199 = arith.constant 0 : index
    %562 = vector.load %arg10[%c10_198, %c0_199] : memref<16x80xf32, #tpu.memory_space<vmem>>, vector<2x32xf32>
    tpu.vector_store %arg10[%c10_198, %c0_199], %552 {strides = array<i32>} : memref<16x80xf32, #tpu.memory_space<vmem>>, vector<2x32xf32>,
    %c4_200 = arith.constant 4 : index
    %c32_201 = arith.constant 32 : index
    %563 = vector.load %arg10[%c4_200, %c32_201] : memref<16x80xf32, #tpu.memory_space<vmem>>, vector<2x32xf32>
    tpu.vector_store %arg10[%c4_200, %c32_201], %561 {strides = array<i32>} : memref<16x80xf32, #tpu.memory_space<vmem>>, vector<2x32xf32>,
    %c10_202 = arith.constant 10 : index
    %c64_203 = arith.constant 64 : index
    %564 = vector.load %arg10[%c10_202, %c64_203] : memref<16x80xf32, #tpu.memory_space<vmem>>, vector<2x16xf32>
    tpu.vector_store %arg10[%c10_202, %c64_203], %0 {strides = array<i32>} : memref<16x80xf32, #tpu.memory_space<vmem>>, vector<2x16xf32>,
    %c12_204 = arith.constant 12 : index
    %c0_205 = arith.constant 0 : index
    %565 = vector.load %arg12[%c12_204, %c0_205] : memref<16x256xf32, #tpu.memory_space<vmem>>, vector<2x128xf32>
    %c2_206 = arith.constant 2 : index
    %c128_207 = arith.constant 128 : index
    %566 = vector.load %arg12[%c2_206, %c128_207] : memref<16x256xf32, #tpu.memory_space<vmem>>, vector<2x128xf32>
    %cst_208 = arith.constant dense<0.000000e+00> : vector<2x128xf32>
    %567 = tpu.matmul %552, %320, %cst_208 {dimension_numbers = #tpu.dot_dimension_numbers<[1], [0], [0], [1], [0, 0, 1, 1], [], []>} : vector<2x32xf32>, vector<32x128xf32>, vector<2x128xf32> -> vector<2x128xf32>
    %568 = arith.addf %565, %567 : vector<2x128xf32>
    %cst_209 = arith.constant dense<0.000000e+00> : vector<2x128xf32>
    %569 = tpu.matmul %561, %321, %cst_209 {dimension_numbers = #tpu.dot_dimension_numbers<[1], [0], [0], [1], [0, 0, 1, 1], [], []>} : vector<2x32xf32>, vector<32x128xf32>, vector<2x128xf32> -> vector<2x128xf32>
    %570 = arith.addf %566, %569 : vector<2x128xf32>
    %571 = arith.negf %568 : vector<2x128xf32>
    %572 = math.exp %571 : vector<2x128xf32>
    %cst_210 = arith.constant 1.000000e+00 : f32
    %573 = vector.broadcast %cst_210 : f32 to vector<2x128xf32>
    %574 = arith.addf %573, %572 : vector<2x128xf32>
    %575 = arith.divf %573, %574 : vector<2x128xf32>
    %576 = math.tanh %568 : vector<2x128xf32>
    %577 = arith.negf %570 : vector<2x128xf32>
    %578 = math.exp %577 : vector<2x128xf32>
    %cst_211 = arith.constant 1.000000e+00 : f32
    %579 = vector.broadcast %cst_211 : f32 to vector<2x128xf32>
    %580 = arith.addf %579, %578 : vector<2x128xf32>
    %581 = arith.divf %579, %580 : vector<2x128xf32>
    %582 = math.tanh %570 : vector<2x128xf32>
    %583 = vector.extract_strided_slice %575 {offsets = [0, 32], sizes = [2, 32], strides = [1, 1]} : vector<2x128xf32> to vector<2x32xf32>
    %584 = arith.mulf %583, %549 : vector<2x32xf32>
    %585 = vector.extract_strided_slice %575 {offsets = [0, 0], sizes = [2, 32], strides = [1, 1]} : vector<2x128xf32> to vector<2x32xf32>
    %586 = vector.extract_strided_slice %576 {offsets = [0, 64], sizes = [2, 32], strides = [1, 1]} : vector<2x128xf32> to vector<2x32xf32>
    %587 = arith.mulf %585, %586 : vector<2x32xf32>
    %588 = arith.addf %584, %587 : vector<2x32xf32>
    %589 = vector.extract_strided_slice %575 {offsets = [0, 96], sizes = [2, 32], strides = [1, 1]} : vector<2x128xf32> to vector<2x32xf32>
    %590 = math.tanh %588 : vector<2x32xf32>
    %591 = arith.mulf %589, %590 : vector<2x32xf32>
    %592 = vector.extract_strided_slice %581 {offsets = [0, 32], sizes = [2, 32], strides = [1, 1]} : vector<2x128xf32> to vector<2x32xf32>
    %593 = arith.mulf %592, %558 : vector<2x32xf32>
    %594 = vector.extract_strided_slice %581 {offsets = [0, 0], sizes = [2, 32], strides = [1, 1]} : vector<2x128xf32> to vector<2x32xf32>
    %595 = vector.extract_strided_slice %582 {offsets = [0, 64], sizes = [2, 32], strides = [1, 1]} : vector<2x128xf32> to vector<2x32xf32>
    %596 = arith.mulf %594, %595 : vector<2x32xf32>
    %597 = arith.addf %593, %596 : vector<2x32xf32>
    %598 = vector.extract_strided_slice %581 {offsets = [0, 96], sizes = [2, 32], strides = [1, 1]} : vector<2x128xf32> to vector<2x32xf32>
    %599 = math.tanh %597 : vector<2x32xf32>
    %600 = arith.mulf %598, %599 : vector<2x32xf32>
    %c12_212 = arith.constant 12 : index
    %c0_213 = arith.constant 0 : index
    %601 = vector.load %arg10[%c12_212, %c0_213] : memref<16x80xf32, #tpu.memory_space<vmem>>, vector<2x32xf32>
    tpu.vector_store %arg10[%c12_212, %c0_213], %591 {strides = array<i32>} : memref<16x80xf32, #tpu.memory_space<vmem>>, vector<2x32xf32>,
    %c2_214 = arith.constant 2 : index
    %c32_215 = arith.constant 32 : index
    %602 = vector.load %arg10[%c2_214, %c32_215] : memref<16x80xf32, #tpu.memory_space<vmem>>, vector<2x32xf32>
    tpu.vector_store %arg10[%c2_214, %c32_215], %600 {strides = array<i32>} : memref<16x80xf32, #tpu.memory_space<vmem>>, vector<2x32xf32>,
    %c12_216 = arith.constant 12 : index
    %c64_217 = arith.constant 64 : index
    %603 = vector.load %arg10[%c12_216, %c64_217] : memref<16x80xf32, #tpu.memory_space<vmem>>, vector<2x16xf32>
    tpu.vector_store %arg10[%c12_216, %c64_217], %0 {strides = array<i32>} : memref<16x80xf32, #tpu.memory_space<vmem>>, vector<2x16xf32>,
    %c14_218 = arith.constant 14 : index
    %c0_219 = arith.constant 0 : index
    %604 = vector.load %arg12[%c14_218, %c0_219] : memref<16x256xf32, #tpu.memory_space<vmem>>, vector<2x128xf32>
    %c0_220 = arith.constant 0 : index
    %c128_221 = arith.constant 128 : index
    %605 = vector.load %arg12[%c0_220, %c128_221] : memref<16x256xf32, #tpu.memory_space<vmem>>, vector<2x128xf32>
    %cst_222 = arith.constant dense<0.000000e+00> : vector<2x128xf32>
    %606 = tpu.matmul %591, %320, %cst_222 {dimension_numbers = #tpu.dot_dimension_numbers<[1], [0], [0], [1], [0, 0, 1, 1], [], []>} : vector<2x32xf32>, vector<32x128xf32>, vector<2x128xf32> -> vector<2x128xf32>
    %607 = arith.addf %604, %606 : vector<2x128xf32>
    %cst_223 = arith.constant dense<0.000000e+00> : vector<2x128xf32>
    %608 = tpu.matmul %600, %321, %cst_223 {dimension_numbers = #tpu.dot_dimension_numbers<[1], [0], [0], [1], [0, 0, 1, 1], [], []>} : vector<2x32xf32>, vector<32x128xf32>, vector<2x128xf32> -> vector<2x128xf32>
    %609 = arith.addf %605, %608 : vector<2x128xf32>
    %610 = arith.negf %607 : vector<2x128xf32>
    %611 = math.exp %610 : vector<2x128xf32>
    %cst_224 = arith.constant 1.000000e+00 : f32
    %612 = vector.broadcast %cst_224 : f32 to vector<2x128xf32>
    %613 = arith.addf %612, %611 : vector<2x128xf32>
    %614 = arith.divf %612, %613 : vector<2x128xf32>
    %615 = math.tanh %607 : vector<2x128xf32>
    %616 = arith.negf %609 : vector<2x128xf32>
    %617 = math.exp %616 : vector<2x128xf32>
    %cst_225 = arith.constant 1.000000e+00 : f32
    %618 = vector.broadcast %cst_225 : f32 to vector<2x128xf32>
    %619 = arith.addf %618, %617 : vector<2x128xf32>
    %620 = arith.divf %618, %619 : vector<2x128xf32>
    %621 = math.tanh %609 : vector<2x128xf32>
    %622 = vector.extract_strided_slice %614 {offsets = [0, 32], sizes = [2, 32], strides = [1, 1]} : vector<2x128xf32> to vector<2x32xf32>
    %623 = arith.mulf %622, %588 : vector<2x32xf32>
    %624 = vector.extract_strided_slice %614 {offsets = [0, 0], sizes = [2, 32], strides = [1, 1]} : vector<2x128xf32> to vector<2x32xf32>
    %625 = vector.extract_strided_slice %615 {offsets = [0, 64], sizes = [2, 32], strides = [1, 1]} : vector<2x128xf32> to vector<2x32xf32>
    %626 = arith.mulf %624, %625 : vector<2x32xf32>
    %627 = arith.addf %623, %626 : vector<2x32xf32>
    %628 = vector.extract_strided_slice %614 {offsets = [0, 96], sizes = [2, 32], strides = [1, 1]} : vector<2x128xf32> to vector<2x32xf32>
    %629 = math.tanh %627 : vector<2x32xf32>
    %630 = arith.mulf %628, %629 : vector<2x32xf32>
    %631 = vector.extract_strided_slice %620 {offsets = [0, 32], sizes = [2, 32], strides = [1, 1]} : vector<2x128xf32> to vector<2x32xf32>
    %632 = arith.mulf %631, %597 : vector<2x32xf32>
    %633 = vector.extract_strided_slice %620 {offsets = [0, 0], sizes = [2, 32], strides = [1, 1]} : vector<2x128xf32> to vector<2x32xf32>
    %634 = vector.extract_strided_slice %621 {offsets = [0, 64], sizes = [2, 32], strides = [1, 1]} : vector<2x128xf32> to vector<2x32xf32>
    %635 = arith.mulf %633, %634 : vector<2x32xf32>
    %636 = arith.addf %632, %635 : vector<2x32xf32>
    %637 = vector.extract_strided_slice %620 {offsets = [0, 96], sizes = [2, 32], strides = [1, 1]} : vector<2x128xf32> to vector<2x32xf32>
    %638 = math.tanh %636 : vector<2x32xf32>
    %639 = arith.mulf %637, %638 : vector<2x32xf32>
    %c14_226 = arith.constant 14 : index
    %c0_227 = arith.constant 0 : index
    %640 = vector.load %arg10[%c14_226, %c0_227] : memref<16x80xf32, #tpu.memory_space<vmem>>, vector<2x32xf32>
    tpu.vector_store %arg10[%c14_226, %c0_227], %630 {strides = array<i32>} : memref<16x80xf32, #tpu.memory_space<vmem>>, vector<2x32xf32>,
    %c0_228 = arith.constant 0 : index
    %c32_229 = arith.constant 32 : index
    %641 = vector.load %arg10[%c0_228, %c32_229] : memref<16x80xf32, #tpu.memory_space<vmem>>, vector<2x32xf32>
    tpu.vector_store %arg10[%c0_228, %c32_229], %639 {strides = array<i32>} : memref<16x80xf32, #tpu.memory_space<vmem>>, vector<2x32xf32>,
    %c14_230 = arith.constant 14 : index
    %c64_231 = arith.constant 64 : index
    %642 = vector.load %arg10[%c14_230, %c64_231] : memref<16x80xf32, #tpu.memory_space<vmem>>, vector<2x16xf32>
    tpu.vector_store %arg10[%c14_230, %c64_231], %0 {strides = array<i32>} : memref<16x80xf32, #tpu.memory_space<vmem>>, vector<2x16xf32>,
    return
  }
}

</mosaic_0001>

<llo_original>
// kernel: encoder_forward.1
$region0: #{encoder_forward.1}
  #allocation0 [shape = 'u32[]', space=smem, size = 0x4, offset = 0x4, fixed_abs, tag = 'smem constant byte address 0x4 - core index']
  #allocation1 [shape = 'u32[144,128]{1,0:T(1,128)}', space=vmem, size = 0x12000, scoped, tag = 'internal scratch']
  #allocation2 [shape = 'f32[16,64]{1,0:T(8,128)}', space=vmem, size = 0x2000, scoped, tag = 'scratch operand']
  #allocation3 [shape = 'f32[16,256]{1,0:T(8,128)}', space=vmem, size = 0x4000, scoped, tag = 'scratch operand']
  %s0 = inlined_call_operand.vmem [shape: f32[16,8], index: 0, kind: input, shape index: {}]
  %s1 = inlined_call_operand.vmem [shape: f32[2,16], index: 1, kind: input, shape index: {}]
  %s2 = inlined_call_operand.hbm [shape: f32[8,256], index: 2, kind: input, shape index: {}]
  %s3 = inlined_call_operand.hbm [shape: f32[1,256], index: 3, kind: input, shape index: {}]
  %s4 = inlined_call_operand.vmem [shape: f32[32,128], index: 4, kind: input, shape index: {}]
  %s5 = inlined_call_operand.hbm [shape: f32[32,128], index: 5, kind: input, shape index: {}]
  %s6 = inlined_call_operand.hbm [shape: f32[64,256], index: 6, kind: input, shape index: {}]
  %s7 = inlined_call_operand.vmem [shape: f32[1,256], index: 7, kind: input, shape index: {}]
  %s8 = inlined_call_operand.vmem [shape: f32[32,128], index: 8, kind: input, shape index: {}]
  %s9 = inlined_call_operand.hbm [shape: f32[32,128], index: 9, kind: input, shape index: {}]
  %s10 = inlined_call_operand.vmem [shape: f32[16,80], index: 10, kind: output, shape index: {}]
  %s11 = sld [smem:[#allocation0]]
  $region70: #{encoder_forward.1} parent=0
    _
  %s13 = ssub.s32 1, %s11
  %s14 = scalar_select 0, %s13, %s11
  $region1: #{encoder_forward.1} parent=0
    #allocation4 [shape = 'u8[8192]{0}', space=vmem, size = 0x2000, scoped, tag = 'input window, operand 2, single buffered']
    #allocation5 [shape = 's32[1]{0}', space=sflag, size = 0x4, scoped, tag = 'scoped memory for encoder_forward.1']
    #allocation6 [shape = 'u8[1024]{0}', space=vmem, size = 0x400, scoped, tag = 'input window, operand 3, single buffered']
    #allocation7 [shape = 's32[1]{0}', space=sflag, size = 0x4, scoped, tag = 'scoped memory for encoder_forward.1']
    #allocation8 [shape = 'u8[16384]{0}', space=vmem, size = 0x4000, scoped, tag = 'input window, operand 5, single buffered']
    #allocation9 [shape = 'u8[65536]{0}', space=vmem, size = 0x10000, scoped, tag = 'input window, operand 6, single buffered']
    #allocation10 [shape = 's32[1]{0}', space=sflag, size = 0x4, scoped, tag = 'scoped memory for encoder_forward.1']
    #allocation11 [shape = 'u8[16384]{0}', space=vmem, size = 0x4000, scoped, tag = 'input window, operand 9, single buffered']
    %15 = vsyncpa [#allocation5], 0
    %16 = vsyncpa [#allocation7], 0
    %17 = vsyncpa [#allocation10], 0
    // Predicated region
    $region2: #{encoder_forward.1} parent=1 // pred_check
      _
    $region3: #{encoder_forward.1} parent=1 // pred_check_branch
      %19 = sbr.rel (0) target = $region5
    $region4: #{encoder_forward.1} parent=1 // pred_region
      _
    $region5: #{encoder_forward.1} parent=1 // pred_fallthru
      _
    // Predicated region
    $region6: #{encoder_forward.1} parent=1 // pred_check
      _
    $region7: #{encoder_forward.1} parent=1 // pred_check_branch
      %21 = sbr.rel (0) target = $region9
    $region8: #{encoder_forward.1} parent=1 // pred_region
      _
    $region9: #{encoder_forward.1} parent=1 // pred_fallthru
      _
    // Predicated region
    $region10: #{encoder_forward.1} parent=1 // pred_check
      _
    $region11: #{encoder_forward.1} parent=1 // pred_check_branch
      %23 = sbr.rel (0) target = $region13
    $region12: #{encoder_forward.1} parent=1 // pred_region
      %s25 = ssub.s32 256, 256
      %26 = vsyncadd [#allocation5], %s25
      %s28 = sshll.u32 [#allocation4], 4
      %s29 = int_to_ptr.vmem [resolvable:$true] %s28
      %31 = dma.hbm_to_vmem [thread:$0]  %s2, 256, %s29, [#allocation5]
    $region13: #{encoder_forward.1} parent=1 // pred_fallthru
      _
    // Predicated region
    $region14: #{encoder_forward.1} parent=1 // pred_check
      _
    $region15: #{encoder_forward.1} parent=1 // pred_check_branch
      %33 = sbr.rel (0) target = $region17
    $region16: #{encoder_forward.1} parent=1 // pred_region
      %s35 = ssub.s32 32, 32
      %36 = vsyncadd [#allocation7], %s35
      %s38 = sshll.u32 [#allocation6], 4
      %s39 = int_to_ptr.vmem [resolvable:$true] %s38
      %41 = dma.hbm_to_vmem [thread:$0]  %s3, 32, %s39, [#allocation7]
    $region17: #{encoder_forward.1} parent=1 // pred_fallthru
      _
    // Predicated region
    $region18: #{encoder_forward.1} parent=1 // pred_check
      _
    $region19: #{encoder_forward.1} parent=1 // pred_check_branch
      %43 = sbr.rel (0) target = $region21
    $region20: #{encoder_forward.1} parent=1 // pred_region
      _
    $region21: #{encoder_forward.1} parent=1 // pred_fallthru
      _
    // Predicated region
    $region22: #{encoder_forward.1} parent=1 // pred_check
      _
    $region23: #{encoder_forward.1} parent=1 // pred_check_branch
      %45 = sbr.rel (0) target = $region25
    $region24: #{encoder_forward.1} parent=1 // pred_region
      %s47 = ssub.s32 512, 512
      %48 = vsyncadd [#allocation7], %s47
      %s49 = sshll.u32 [#allocation8], 4
      %s50 = int_to_ptr.vmem [resolvable:$true] %s49
      %55 = dma.hbm_to_vmem [thread:$0]  %s5, 512, %s50, [#allocation7], 128, 128, 8
    $region25: #{encoder_forward.1} parent=1 // pred_fallthru
      _
    // Predicated region
    $region26: #{encoder_forward.1} parent=1 // pred_check
      _
    $region27: #{encoder_forward.1} parent=1 // pred_check_branch
      %57 = sbr.rel (0) target = $region29
    $region28: #{encoder_forward.1} parent=1 // pred_region
      %s59 = ssub.s32 2048, 2048
      %60 = vsyncadd [#allocation10], %s59
      %s61 = sshll.u32 [#allocation9], 4
      %s62 = int_to_ptr.vmem [resolvable:$true] %s61
      %67 = dma.hbm_to_vmem [thread:$0]  %s6, 2048, %s62, [#allocation10], 256, 256, 16
    $region29: #{encoder_forward.1} parent=1 // pred_fallthru
      _
    // Predicated region
    $region30: #{encoder_forward.1} parent=1 // pred_check
      _
    $region31: #{encoder_forward.1} parent=1 // pred_check_branch
      %69 = sbr.rel (0) target = $region33
    $region32: #{encoder_forward.1} parent=1 // pred_region
      _
    $region33: #{encoder_forward.1} parent=1 // pred_fallthru
      _
    // Predicated region
    $region34: #{encoder_forward.1} parent=1 // pred_check
      _
    $region35: #{encoder_forward.1} parent=1 // pred_check_branch
      %71 = sbr.rel (0) target = $region37
    $region36: #{encoder_forward.1} parent=1 // pred_region
      _
    $region37: #{encoder_forward.1} parent=1 // pred_fallthru
      _
    // Predicated region
    $region38: #{encoder_forward.1} parent=1 // pred_check
      _
    $region39: #{encoder_forward.1} parent=1 // pred_check_branch
      %73 = sbr.rel (0) target = $region41
    $region40: #{encoder_forward.1} parent=1 // pred_region
      %s75 = ssub.s32 512, 512
      %76 = vsyncadd [#allocation10], %s75
      %s77 = sshll.u32 [#allocation11], 4
      %s78 = int_to_ptr.vmem [resolvable:$true] %s77
      %83 = dma.hbm_to_vmem [thread:$0]  %s9, 512, %s78, [#allocation10], 128, 128, 8
    $region41: #{encoder_forward.1} parent=1 // pred_fallthru
      _
    // Predicated region
    $region42: #{encoder_forward.1} parent=1 // pred_check
      _
    $region43: #{encoder_forward.1} parent=1 // pred_check_branch
      %85 = sbr.rel (0) target = $region45
    $region44: #{encoder_forward.1} parent=1 // pred_region
      %86 = dma.done [#allocation5], 256
    $region45: #{encoder_forward.1} parent=1 // pred_fallthru
      _
    // Predicated region
    $region46: #{encoder_forward.1} parent=1 // pred_check
      _
    $region47: #{encoder_forward.1} parent=1 // pred_check_branch
      %88 = sbr.rel (0) target = $region49
    $region48: #{encoder_forward.1} parent=1 // pred_region
      %89 = dma.done [#allocation7], 32
    $region49: #{encoder_forward.1} parent=1 // pred_fallthru
      _
    // Predicated region
    $region50: #{encoder_forward.1} parent=1 // pred_check
      _
    $region51: #{encoder_forward.1} parent=1 // pred_check_branch
      %91 = sbr.rel (0) target = $region53
    $region52: #{encoder_forward.1} parent=1 // pred_region
      %92 = dma.done [#allocation7], 512
    $region53: #{encoder_forward.1} parent=1 // pred_fallthru
      _
    // Predicated region
    $region54: #{encoder_forward.1} parent=1 // pred_check
      _
    $region55: #{encoder_forward.1} parent=1 // pred_check_branch
      %94 = sbr.rel (0) target = $region57
    $region56: #{encoder_forward.1} parent=1 // pred_region
      %95 = dma.done [#allocation10], 2048
    $region57: #{encoder_forward.1} parent=1 // pred_fallthru
      _
    // Predicated region
    $region58: #{encoder_forward.1} parent=1 // pred_check
      _
    $region59: #{encoder_forward.1} parent=1 // pred_check_branch
      %97 = sbr.rel (0) target = $region61
    $region60: #{encoder_forward.1} parent=1 // pred_region
      %98 = dma.done [#allocation10], 512
    $region61: #{encoder_forward.1} parent=1 // pred_fallthru
      _
    %v99 = vld [vmem:[%s1] sm:$0x3]
    %v100 = vld [vmem:[#allocation4] sm:$0xff]
    %v101 = vld [vmem:[#allocation4 + $0x8] sm:$0xff]
    %v102 = vld [vmem:[#allocation6] sm:$0x3]
    %v103 = vld [vmem:[%s4] sm:$0xff]
    %v104 = vld [vmem:[%s4 + $0x8] sm:$0xff]
    %v105 = vld [vmem:[%s4 + $0x10] sm:$0xff]
    %v106 = vld [vmem:[%s4 + $0x18] sm:$0xff]
    %v107 = vld [vmem:[#allocation8] sm:$0xff]
    %v108 = vld [vmem:[#allocation8 + $0x8] sm:$0xff]
    %v109 = vld [vmem:[#allocation8 + $0x10] sm:$0xff]
    %v110 = vld [vmem:[#allocation8 + $0x18] sm:$0xff]
    %v111 = vld [vmem:[%s0] sm:$0xff]
    %v112 = vld [vmem:[%s0 + $0x8] sm:$0xff]
    %v114 = vlaneseq
    %v115 = vshrl.u32 %v114, 7
    %v116 = vsub.s32 0, %v115
    %v117 = vrot.slane %v102, %v116
    %v118 = vlaneseq
    %v119 = vshrl.u32 %v118, 7
    %v120 = vsub.s32 1, %v119
    %v121 = vrot.slane %v102, %v120
    %vm124 = vcmask 64512
    %v126 = vsel %vm124, %v111, 0
    %v129 = vsel %vm124, %v112, 0
    %131 = vmatprep.subr.mxu0 %v101
    %132 = vmatpush1.msra.mxu0 %v100
    %133 = vmatprep.subr.mxu0 0.0
    %134 = vmatpush1.msra.mxu0 0.0
    %135 = vmatprep.subr.mxu0 0.0
    %136 = vmatpush1.msra.mxu0 0.0
    %137 = vmatprep.subr.mxu0 0.0
    %138 = vmatpush1.msra.mxu0 0.0
    %139 = vmatprep.subr.mxu0 0.0
    %140 = vmatpush1.msra.mxu0 0.0
    %141 = vmatprep.subr.mxu0 0.0
    %142 = vmatpush1.msra.mxu0 0.0
    %143 = vmatprep.subr.mxu0 0.0
    %144 = vmatpush1.msra.mxu0 0.0
    %145 = vmatprep.subr.mxu0 0.0
    %146 = vmatpush1.msra.mxu0 0.0
    %147 = vmatprep.subr.mxu0 0.0
    %148 = vmatpush1.msra.mxu0 0.0
    %149 = vmatprep.subr.mxu0 0.0
    %150 = vmatpush1.msra.mxu0 0.0
    %151 = vmatprep.subr.mxu0 0.0
    %152 = vmatpush1.msra.mxu0 0.0
    %153 = vmatprep.subr.mxu0 0.0
    %154 = vmatpush1.msra.mxu0 0.0
    %155 = vmatprep.subr.mxu0 0.0
    %156 = vmatpush1.msra.mxu0 0.0
    %157 = vmatprep.subr.mxu0 0.0
    %158 = vmatpush1.msra.mxu0 0.0
    %159 = vmatprep.subr.mxu0 0.0
    %160 = vmatpush1.msra.mxu0 0.0
    %161 = vmatprep.subr.mxu0 0.0
    %162 = vmatpush1.msra.mxu0 0.0
    %163 = vmatprep.subr.mxu0 0.0
    %164 = vmatpush1.msra.mxu0 0.0
    %165 = vmatprep.subr.mxu0 0.0
    %166 = vmatpush1.msra.mxu0 0.0
    %167 = vmatprep.subr.mxu0 0.0
    %168 = vmatpush1.msra.mxu0 0.0
    %169 = vmatprep.subr.mxu0 0.0
    %170 = vmatpush1.msra.mxu0 0.0
    %171 = vmatprep.subr.mxu0 0.0
    %172 = vmatpush1.msra.mxu0 0.0
    %173 = vmatprep.subr.mxu0 0.0
    %174 = vmatpush1.msra.mxu0 0.0
    %175 = vmatprep.subr.mxu0 0.0
    %176 = vmatpush1.msra.mxu0 0.0
    %177 = vmatprep.subr.mxu0 0.0
    %178 = vmatpush1.msra.mxu0 0.0
    %179 = vmatprep.subr.mxu0 0.0
    %180 = vmatpush1.msra.mxu0 0.0
    %181 = vmatprep.subr.mxu0 0.0
    %182 = vmatpush1.msra.mxu0 0.0
    %183 = vmatprep.subr.mxu0 0.0
    %184 = vmatpush1.msra.mxu0 0.0
    %185 = vmatprep.subr.mxu0 0.0
    %186 = vmatpush1.msra.mxu0 0.0
    %187 = vmatprep.subr.mxu0 0.0
    %188 = vmatpush1.msra.mxu0 0.0
    %189 = vmatprep.subr.mxu0 0.0
    %190 = vmatpush1.msra.mxu0 0.0
    %191 = vmatprep.subr.mxu0 0.0
    %192 = vmatpush1.msra.mxu0 0.0
    %193 = vmatprep.subr.mxu0 0.0
    %194 = vmatpush1.msra.mxu0 0.0
    %195 = vmatprep.mubr.f32.mxu0 0.0
    %196 = vmatmul.mubr.f32.gmra.mrb[0].mxu0 %v126
    %v197 = vpop.f32.mrb[0].mxu0
    %v198 = vadd.f32 %v117, %v197
    %v199 = vpop.f32.mrb[0].mxu0
    %v200 = vadd.f32 %v121, %v199
    %201 = vmatprep.mubr.f32.mxu0 0.0
    %202 = vmatmul.mubr.f32.gmra.mrb[0].mxu0 %v129
    %v203 = vpop.f32.mrb[0].mxu0
    %v204 = vadd.f32 %v117, %v203
    %v205 = vpop.f32.mrb[0].mxu0
    %v206 = vadd.f32 %v121, %v205
    %207 = vdwg.mxu0
    %208 = vst [vmem:[#allocation3] sm:$0xff] %v198
    %209 = vst [vmem:[#allocation3 + $0x8] sm:$0xff] %v200
    %210 = vst [vmem:[#allocation3 + $0x10] sm:$0xff] %v204
    %211 = vst [vmem:[#allocation3 + $0x18] sm:$0xff] %v206
    %v212 = vld [vmem:[#allocation3] sm:$0x3]
    %v213 = vld [vmem:[#allocation3 + $0x18] sm:$0xc0]
    %vm214 = vcmask 261120
    %v216 = vsel %vm214, 0.0, 0
    %218 = vmatprep.subr.mxu0 0.0
    %219 = vmatpush1.msra.mxu0 %v103
    %220 = vmatprep.subr.mxu0 0.0
    %221 = vmatpush1.msra.mxu0 %v104
    %222 = vmatprep.subr.mxu0 0.0
    %223 = vmatpush1.msra.mxu0 %v105
    %224 = vmatprep.subr.mxu0 0.0
    %225 = vmatpush1.msra.mxu0 %v106
    %226 = vmatprep.subr.mxu0 0.0
    %227 = vmatpush1.msra.mxu0 0.0
    %228 = vmatprep.subr.mxu0 0.0
    %229 = vmatpush1.msra.mxu0 0.0
    %230 = vmatprep.subr.mxu0 0.0
    %231 = vmatpush1.msra.mxu0 0.0
    %232 = vmatprep.subr.mxu0 0.0
    %233 = vmatpush1.msra.mxu0 0.0
    %234 = vmatprep.subr.mxu0 0.0
    %235 = vmatpush1.msra.mxu0 0.0
    %236 = vmatprep.subr.mxu0 0.0
    %237 = vmatpush1.msra.mxu0 0.0
    %238 = vmatprep.subr.mxu0 0.0
    %239 = vmatpush1.msra.mxu0 0.0
    %240 = vmatprep.subr.mxu0 0.0
    %241 = vmatpush1.msra.mxu0 0.0
    %242 = vmatprep.subr.mxu0 0.0
    %243 = vmatpush1.msra.mxu0 0.0
    %244 = vmatprep.subr.mxu0 0.0
    %245 = vmatpush1.msra.mxu0 0.0
    %246 = vmatprep.subr.mxu0 0.0
    %247 = vmatpush1.msra.mxu0 0.0
    %248 = vmatprep.subr.mxu0 0.0
    %249 = vmatpush1.msra.mxu0 0.0
    %250 = vmatprep.subr.mxu0 0.0
    %251 = vmatpush1.msra.mxu0 0.0
    %252 = vmatprep.subr.mxu0 0.0
    %253 = vmatpush1.msra.mxu0 0.0
    %254 = vmatprep.subr.mxu0 0.0
    %255 = vmatpush1.msra.mxu0 0.0
    %256 = vmatprep.subr.mxu0 0.0
    %257 = vmatpush1.msra.mxu0 0.0
    %258 = vmatprep.subr.mxu0 0.0
    %259 = vmatpush1.msra.mxu0 0.0
    %260 = vmatprep.subr.mxu0 0.0
    %261 = vmatpush1.msra.mxu0 0.0
    %262 = vmatprep.subr.mxu0 0.0
    %263 = vmatpush1.msra.mxu0 0.0
    %264 = vmatprep.subr.mxu0 0.0
    %265 = vmatpush1.msra.mxu0 0.0
    %266 = vmatprep.subr.mxu0 0.0
    %267 = vmatpush1.msra.mxu0 0.0
    %268 = vmatprep.subr.mxu0 0.0
    %269 = vmatpush1.msra.mxu0 0.0
    %270 = vmatprep.subr.mxu0 0.0
    %271 = vmatpush1.msra.mxu0 0.0
    %272 = vmatprep.subr.mxu0 0.0
    %273 = vmatpush1.msra.mxu0 0.0
    %274 = vmatprep.subr.mxu0 0.0
    %275 = vmatpush1.msra.mxu0 0.0
    %276 = vmatprep.subr.mxu0 0.0
    %277 = vmatpush1.msra.mxu0 0.0
    %278 = vmatprep.subr.mxu0 0.0
    %279 = vmatpush1.msra.mxu0 0.0
    %280 = vmatprep.subr.mxu0 0.0
    %281 = vmatpush1.msra.mxu0 0.0
    %282 = vmatprep.mubr.f32.mxu0 0.0
    %283 = vmatmul.mubr.f32.gmra.mrb[0].mxu0 %v216
    %v284 = vpop.f32.mrb[0].mxu0
    %v285 = vadd.f32 0.0, %v284
    %v286 = vpop.f32.mrb[0].mxu0
    %287 = vdwg.mxu0
    %v288 = vadd.f32 %v212, %v285
    %289 = vmatprep.subr.mxu0 0.0
    %290 = vmatpush1.msra.mxu0 %v107
    %291 = vmatprep.subr.mxu0 0.0
    %292 = vmatpush1.msra.mxu0 %v108
    %293 = vmatprep.subr.mxu0 0.0
    %294 = vmatpush1.msra.mxu0 %v109
    %295 = vmatprep.subr.mxu0 0.0
    %296 = vmatpush1.msra.mxu0 %v110
    %297 = vmatprep.subr.mxu0 0.0
    %298 = vmatpush1.msra.mxu0 0.0
    %299 = vmatprep.subr.mxu0 0.0
    %300 = vmatpush1.msra.mxu0 0.0
    %301 = vmatprep.subr.mxu0 0.0
    %302 = vmatpush1.msra.mxu0 0.0
    %303 = vmatprep.subr.mxu0 0.0
    %304 = vmatpush1.msra.mxu0 0.0
    %305 = vmatprep.subr.mxu0 0.0
    %306 = vmatpush1.msra.mxu0 0.0
    %307 = vmatprep.subr.mxu0 0.0
    %308 = vmatpush1.msra.mxu0 0.0
    %309 = vmatprep.subr.mxu0 0.0
    %310 = vmatpush1.msra.mxu0 0.0
    %311 = vmatprep.subr.mxu0 0.0
    %312 = vmatpush1.msra.mxu0 0.0
    %313 = vmatprep.subr.mxu0 0.0
    %314 = vmatpush1.msra.mxu0 0.0
    %315 = vmatprep.subr.mxu0 0.0
    %316 = vmatpush1.msra.mxu0 0.0
    %317 = vmatprep.subr.mxu0 0.0
    %318 = vmatpush1.msra.mxu0 0.0
    %319 = vmatprep.subr.mxu0 0.0
    %320 = vmatpush1.msra.mxu0 0.0
    %321 = vmatprep.subr.mxu0 0.0
    %322 = vmatpush1.msra.mxu0 0.0
    %323 = vmatprep.subr.mxu0 0.0
    %324 = vmatpush1.msra.mxu0 0.0
    %325 = vmatprep.subr.mxu0 0.0
    %326 = vmatpush1.msra.mxu0 0.0
    %327 = vmatprep.subr.mxu0 0.0
    %328 = vmatpush1.msra.mxu0 0.0
    %329 = vmatprep.subr.mxu0 0.0
    %330 = vmatpush1.msra.mxu0 0.0
    %331 = vmatprep.subr.mxu0 0.0
    %332 = vmatpush1.msra.mxu0 0.0
    %333 = vmatprep.subr.mxu0 0.0
    %334 = vmatpush1.msra.mxu0 0.0
    %335 = vmatprep.subr.mxu0 0.0
    %336 = vmatpush1.msra.mxu0 0.0
    %337 = vmatprep.subr.mxu0 0.0
    %338 = vmatpush1.msra.mxu0 0.0
    %339 = vmatprep.subr.mxu0 0.0
    %340 = vmatpush1.msra.mxu0 0.0
    %341 = vmatprep.subr.mxu0 0.0
    %342 = vmatpush1.msra.mxu0 0.0
    %343 = vmatprep.subr.mxu0 0.0
    %344 = vmatpush1.msra.mxu0 0.0
    %345 = vmatprep.subr.mxu0 0.0
    %346 = vmatpush1.msra.mxu0 0.0
    %347 = vmatprep.subr.mxu0 0.0
    %348 = vmatpush1.msra.mxu0 0.0
    %349 = vmatprep.subr.mxu0 0.0
    %350 = vmatpush1.msra.mxu0 0.0
    %351 = vmatprep.subr.mxu0 0.0
    %352 = vmatpush1.msra.mxu0 0.0
    %353 = vmatprep.mubr.f32.mxu0 0.0
    %354 = vmatmul.mubr.f32.gmra.mrb[0].mxu0 %v216
    %v355 = vpop.f32.mrb[0].mxu0
    %v356 = vadd.f32 0.0, %v355
    %v357 = vpop.f32.mrb[0].mxu0
    %358 = vdwg.mxu0
    %v360 = vrot.slane %v356, 2
    %v362 = vadd.f32 %v213, %v360
    %v363 = vxor.u32 %v288, 2147483648
    %v364 = vmul.f32 %v363, 1.442695
    %v365 = vpow.pop %v364
    %v366 = vadd.f32 %v365, 1.0
    %v367 = vrcp.pop %v366
    %v368 = vmul.f32 1.0, %v367
    %v369 = vtanh.pop %v288
    %v370 = vxor.u32 %v362, 2147483648
    %v371 = vmul.f32 %v370, 1.442695
    %v372 = vpow.pop %v371
    %v373 = vadd.f32 %v372, 1.0
    %v374 = vrcp.pop %v373
    %v375 = vmul.f32 1.0, %v374
    %v376 = vtanh.pop %v362
    %v377 = vmul.f32 %v368, 0.0
    %379 = vrot.lane.b32.xlu0 %v369, 64
    %v380 = vpop.permute.xlu0 %379
    %v382 = vmul.f32 %v368, %v380
    %384 = vrot.lane.b32.xlu0 %v382, 32
    %v385 = vpop.permute.xlu0 %384
    %v387 = vadd.f32 %v377, %v385
    %v388 = vtanh.pop %v387
    %390 = vrot.lane.b32.xlu0 %v388, 64
    %v391 = vpop.permute.xlu0 %390
    %v393 = vmul.f32 %v368, %v391
    %v394 = vmul.f32 %v375, 0.0
    %396 = vrot.lane.b32.xlu0 %v376, 64
    %v397 = vpop.permute.xlu0 %396
    %v399 = vmul.f32 %v375, %v397
    %401 = vrot.lane.b32.xlu0 %v399, 32
    %v402 = vpop.permute.xlu0 %401
    %v404 = vadd.f32 %v394, %v402
    %v405 = vtanh.pop %v404
    %407 = vrot.lane.b32.xlu0 %v405, 64
    %v408 = vpop.permute.xlu0 %407
    %v410 = vmul.f32 %v375, %v408
    %412 = vrot.lane.b32.xlu0 %v393, 32
    %v413 = vpop.permute.xlu0 %412
    %vm415 = vcmask 254976
    %416 = vst.msk [vmem:[#allocation2] sm:$0x3] %vm415, %v413
    %418 = vrot.lane.b32.xlu0 %v410, 64
    %v419 = vpop.permute.xlu0 %418
    %vm421 = vcmask 523526
    %422 = vst.msk [vmem:[#allocation2 + $0x8] sm:$0xc0] %vm421, %v419
    %v423 = vld [vmem:[#allocation3] sm:$0xc]
    %v424 = vld [vmem:[#allocation3 + $0x18] sm:$0x30]
    %v425 = vsel %vm214, %v413, 0
    %427 = vmatprep.subr.mxu0 0.0
    %428 = vmatpush1.msra.mxu0 %v103
    %429 = vmatprep.subr.mxu0 0.0
    %430 = vmatpush1.msra.mxu0 %v104
    %431 = vmatprep.subr.mxu0 0.0
    %432 = vmatpush1.msra.mxu0 %v105
    %433 = vmatprep.subr.mxu0 0.0
    %434 = vmatpush1.msra.mxu0 %v106
    %435 = vmatprep.subr.mxu0 0.0
    %436 = vmatpush1.msra.mxu0 0.0
    %437 = vmatprep.subr.mxu0 0.0
    %438 = vmatpush1.msra.mxu0 0.0
    %439 = vmatprep.subr.mxu0 0.0
    %440 = vmatpush1.msra.mxu0 0.0
    %441 = vmatprep.subr.mxu0 0.0
    %442 = vmatpush1.msra.mxu0 0.0
    %443 = vmatprep.subr.mxu0 0.0
    %444 = vmatpush1.msra.mxu0 0.0
    %445 = vmatprep.subr.mxu0 0.0
    %446 = vmatpush1.msra.mxu0 0.0
    %447 = vmatprep.subr.mxu0 0.0
    %448 = vmatpush1.msra.mxu0 0.0
    %449 = vmatprep.subr.mxu0 0.0
    %450 = vmatpush1.msra.mxu0 0.0
    %451 = vmatprep.subr.mxu0 0.0
    %452 = vmatpush1.msra.mxu0 0.0
    %453 = vmatprep.subr.mxu0 0.0
    %454 = vmatpush1.msra.mxu0 0.0
    %455 = vmatprep.subr.mxu0 0.0
    %456 = vmatpush1.msra.mxu0 0.0
    %457 = vmatprep.subr.mxu0 0.0
    %458 = vmatpush1.msra.mxu0 0.0
    %459 = vmatprep.subr.mxu0 0.0
    %460 = vmatpush1.msra.mxu0 0.0
    %461 = vmatprep.subr.mxu0 0.0
    %462 = vmatpush1.msra.mxu0 0.0
    %463 = vmatprep.subr.mxu0 0.0
    %464 = vmatpush1.msra.mxu0 0.0
    %465 = vmatprep.subr.mxu0 0.0
    %466 = vmatpush1.msra.mxu0 0.0
    %467 = vmatprep.subr.mxu0 0.0
    %468 = vmatpush1.msra.mxu0 0.0
    %469 = vmatprep.subr.mxu0 0.0
    %470 = vmatpush1.msra.mxu0 0.0
    %471 = vmatprep.subr.mxu0 0.0
    %472 = vmatpush1.msra.mxu0 0.0
    %473 = vmatprep.subr.mxu0 0.0
    %474 = vmatpush1.msra.mxu0 0.0
    %475 = vmatprep.subr.mxu0 0.0
    %476 = vmatpush1.msra.mxu0 0.0
    %477 = vmatprep.subr.mxu0 0.0
    %478 = vmatpush1.msra.mxu0 0.0
    %479 = vmatprep.subr.mxu0 0.0
    %480 = vmatpush1.msra.mxu0 0.0
    %481 = vmatprep.subr.mxu0 0.0
    %482 = vmatpush1.msra.mxu0 0.0
    %483 = vmatprep.subr.mxu0 0.0
    %484 = vmatpush1.msra.mxu0 0.0
    %485 = vmatprep.subr.mxu0 0.0
    %486 = vmatpush1.msra.mxu0 0.0
    %487 = vmatprep.subr.mxu0 0.0
    %488 = vmatpush1.msra.mxu0 0.0
    %489 = vmatprep.subr.mxu0 0.0
    %490 = vmatpush1.msra.mxu0 0.0
    %491 = vmatprep.mubr.f32.mxu0 0.0
    %492 = vmatmul.mubr.f32.gmra.mrb[0].mxu0 %v425
    %v493 = vpop.f32.mrb[0].mxu0
    %v494 = vadd.f32 0.0, %v493
    %v495 = vpop.f32.mrb[0].mxu0
    %496 = vdwg.mxu0
    %v498 = vrot.slane %v494, 6
    %v500 = vadd.f32 %v423, %v498
    %v501 = vrot.slane %v410, 6
    %502 = vrot.lane.b32.xlu0 %v501, 32
    %v503 = vpop.permute.xlu0 %502
    %v504 = vsel %vm214, %v503, 0
    %506 = vmatprep.subr.mxu0 0.0
    %507 = vmatpush1.msra.mxu0 %v107
    %508 = vmatprep.subr.mxu0 0.0
    %509 = vmatpush1.msra.mxu0 %v108
    %510 = vmatprep.subr.mxu0 0.0
    %511 = vmatpush1.msra.mxu0 %v109
    %512 = vmatprep.subr.mxu0 0.0
    %513 = vmatpush1.msra.mxu0 %v110
    %514 = vmatprep.subr.mxu0 0.0
    %515 = vmatpush1.msra.mxu0 0.0
    %516 = vmatprep.subr.mxu0 0.0
    %517 = vmatpush1.msra.mxu0 0.0
    %518 = vmatprep.subr.mxu0 0.0
    %519 = vmatpush1.msra.mxu0 0.0
    %520 = vmatprep.subr.mxu0 0.0
    %521 = vmatpush1.msra.mxu0 0.0
    %522 = vmatprep.subr.mxu0 0.0
    %523 = vmatpush1.msra.mxu0 0.0
    %524 = vmatprep.subr.mxu0 0.0
    %525 = vmatpush1.msra.mxu0 0.0
    %526 = vmatprep.subr.mxu0 0.0
    %527 = vmatpush1.msra.mxu0 0.0
    %528 = vmatprep.subr.mxu0 0.0
    %529 = vmatpush1.msra.mxu0 0.0
    %530 = vmatprep.subr.mxu0 0.0
    %531 = vmatpush1.msra.mxu0 0.0
    %532 = vmatprep.subr.mxu0 0.0
    %533 = vmatpush1.msra.mxu0 0.0
    %534 = vmatprep.subr.mxu0 0.0
    %535 = vmatpush1.msra.mxu0 0.0
    %536 = vmatprep.subr.mxu0 0.0
    %537 = vmatpush1.msra.mxu0 0.0
    %538 = vmatprep.subr.mxu0 0.0
    %539 = vmatpush1.msra.mxu0 0.0
    %540 = vmatprep.subr.mxu0 0.0
    %541 = vmatpush1.msra.mxu0 0.0
    %542 = vmatprep.subr.mxu0 0.0
    %543 = vmatpush1.msra.mxu0 0.0
    %544 = vmatprep.subr.mxu0 0.0
    %545 = vmatpush1.msra.mxu0 0.0
    %546 = vmatprep.subr.mxu0 0.0
    %547 = vmatpush1.msra.mxu0 0.0
    %548 = vmatprep.subr.mxu0 0.0
    %549 = vmatpush1.msra.mxu0 0.0
    %550 = vmatprep.subr.mxu0 0.0
    %551 = vmatpush1.msra.mxu0 0.0
    %552 = vmatprep.subr.mxu0 0.0
    %553 = vmatpush1.msra.mxu0 0.0
    %554 = vmatprep.subr.mxu0 0.0
    %555 = vmatpush1.msra.mxu0 0.0
    %556 = vmatprep.subr.mxu0 0.0
    %557 = vmatpush1.msra.mxu0 0.0
    %558 = vmatprep.subr.mxu0 0.0
    %559 = vmatpush1.msra.mxu0 0.0
    %560 = vmatprep.subr.mxu0 0.0
    %561 = vmatpush1.msra.mxu0 0.0
    %562 = vmatprep.subr.mxu0 0.0
    %563 = vmatpush1.msra.mxu0 0.0
    %564 = vmatprep.subr.mxu0 0.0
    %565 = vmatpush1.msra.mxu0 0.0
    %566 = vmatprep.subr.mxu0 0.0
    %567 = vmatpush1.msra.mxu0 0.0
    %568 = vmatprep.subr.mxu0 0.0
    %569 = vmatpush1.msra.mxu0 0.0
    %570 = vmatprep.mubr.f32.mxu0 0.0
    %571 = vmatmul.mubr.f32.gmra.mrb[0].mxu0 %v504
    %v572 = vpop.f32.mrb[0].mxu0
    %v573 = vadd.f32 0.0, %v572
    %v574 = vpop.f32.mrb[0].mxu0
    %575 = vdwg.mxu0
    %v577 = vrot.slane %v573, 4
    %v579 = vadd.f32 %v424, %v577
    %v580 = vxor.u32 %v500, 2147483648
    %v581 = vmul.f32 %v580, 1.442695
    %v582 = vpow.pop %v581
    %v583 = vadd.f32 %v582, 1.0
    %v584 = vrcp.pop %v583
    %v585 = vmul.f32 1.0, %v584
    %v586 = vtanh.pop %v500
    %v587 = vxor.u32 %v579, 2147483648
    %v588 = vmul.f32 %v587, 1.442695
    %v589 = vpow.pop %v588
    %v590 = vadd.f32 %v589, 1.0
    %v591 = vrcp.pop %v590
    %v592 = vmul.f32 1.0, %v591
    %v593 = vtanh.pop %v579
    %v595 = vrot.slane %v387, 6
    %v597 = vmul.f32 %v585, %v595
    %599 = vrot.lane.b32.xlu0 %v586, 64
    %v600 = vpop.permute.xlu0 %599
    %v602 = vmul.f32 %v585, %v600
    %604 = vrot.lane.b32.xlu0 %v602, 32
    %v605 = vpop.permute.xlu0 %604
    %v607 = vadd.f32 %v597, %v605
    %v608 = vtanh.pop %v607
    %610 = vrot.lane.b32.xlu0 %v608, 64
    %v611 = vpop.permute.xlu0 %610
    %v613 = vmul.f32 %v585, %v611
    %v615 = vrot.slane %v404, 2
    %v617 = vmul.f32 %v592, %v615
    %619 = vrot.lane.b32.xlu0 %v593, 64
    %v620 = vpop.permute.xlu0 %619
    %v622 = vmul.f32 %v592, %v620
    %624 = vrot.lane.b32.xlu0 %v622, 32
    %v625 = vpop.permute.xlu0 %624
    %v627 = vadd.f32 %v617, %v625
    %v628 = vtanh.pop %v627
    %630 = vrot.lane.b32.xlu0 %v628, 64
    %v631 = vpop.permute.xlu0 %630
    %v633 = vmul.f32 %v592, %v631
    %635 = vrot.lane.b32.xlu0 %v613, 32
    %v636 = vpop.permute.xlu0 %635
    %vm638 = vcmask 257026
    %639 = vst.msk [vmem:[#allocation2] sm:$0xc] %vm638, %v636
    %641 = vrot.lane.b32.xlu0 %v633, 64
    %v642 = vpop.permute.xlu0 %641
    %vm644 = vcmask 521476
    %645 = vst.msk [vmem:[#allocation2 + $0x8] sm:$0x30] %vm644, %v642
    %v646 = vld [vmem:[#allocation3] sm:$0x30]
    %v647 = vld [vmem:[#allocation3 + $0x18] sm:$0xc]
    %v648 = vrot.slane %v613, 2
    %649 = vrot.lane.b32.xlu0 %v648, 32
    %v650 = vpop.permute.xlu0 %649
    %v651 = vsel %vm214, %v650, 0
    %653 = vmatprep.subr.mxu0 0.0
    %654 = vmatpush1.msra.mxu0 %v103
    %655 = vmatprep.subr.mxu0 0.0
    %656 = vmatpush1.msra.mxu0 %v104
    %657 = vmatprep.subr.mxu0 0.0
    %658 = vmatpush1.msra.mxu0 %v105
    %659 = vmatprep.subr.mxu0 0.0
    %660 = vmatpush1.msra.mxu0 %v106
    %661 = vmatprep.subr.mxu0 0.0
    %662 = vmatpush1.msra.mxu0 0.0
    %663 = vmatprep.subr.mxu0 0.0
    %664 = vmatpush1.msra.mxu0 0.0
    %665 = vmatprep.subr.mxu0 0.0
    %666 = vmatpush1.msra.mxu0 0.0
    %667 = vmatprep.subr.mxu0 0.0
    %668 = vmatpush1.msra.mxu0 0.0
    %669 = vmatprep.subr.mxu0 0.0
    %670 = vmatpush1.msra.mxu0 0.0
    %671 = vmatprep.subr.mxu0 0.0
    %672 = vmatpush1.msra.mxu0 0.0
    %673 = vmatprep.subr.mxu0 0.0
    %674 = vmatpush1.msra.mxu0 0.0
    %675 = vmatprep.subr.mxu0 0.0
    %676 = vmatpush1.msra.mxu0 0.0
    %677 = vmatprep.subr.mxu0 0.0
    %678 = vmatpush1.msra.mxu0 0.0
    %679 = vmatprep.subr.mxu0 0.0
    %680 = vmatpush1.msra.mxu0 0.0
    %681 = vmatprep.subr.mxu0 0.0
    %682 = vmatpush1.msra.mxu0 0.0
    %683 = vmatprep.subr.mxu0 0.0
    %684 = vmatpush1.msra.mxu0 0.0
    %685 = vmatprep.subr.mxu0 0.0
    %686 = vmatpush1.msra.mxu0 0.0
    %687 = vmatprep.subr.mxu0 0.0
    %688 = vmatpush1.msra.mxu0 0.0
    %689 = vmatprep.subr.mxu0 0.0
    %690 = vmatpush1.msra.mxu0 0.0
    %691 = vmatprep.subr.mxu0 0.0
    %692 = vmatpush1.msra.mxu0 0.0
    %693 = vmatprep.subr.mxu0 0.0
    %694 = vmatpush1.msra.mxu0 0.0
    %695 = vmatprep.subr.mxu0 0.0
    %696 = vmatpush1.msra.mxu0 0.0
    %697 = vmatprep.subr.mxu0 0.0
    %698 = vmatpush1.msra.mxu0 0.0
    %699 = vmatprep.subr.mxu0 0.0
    %700 = vmatpush1.msra.mxu0 0.0
    %701 = vmatprep.subr.mxu0 0.0
    %702 = vmatpush1.msra.mxu0 0.0
    %703 = vmatprep.subr.mxu0 0.0
    %704 = vmatpush1.msra.mxu0 0.0
    %705 = vmatprep.subr.mxu0 0.0
    %706 = vmatpush1.msra.mxu0 0.0
    %707 = vmatprep.subr.mxu0 0.0
    %708 = vmatpush1.msra.mxu0 0.0
    %709 = vmatprep.subr.mxu0 0.0
    %710 = vmatpush1.msra.mxu0 0.0
    %711 = vmatprep.subr.mxu0 0.0
    %712 = vmatpush1.msra.mxu0 0.0
    %713 = vmatprep.subr.mxu0 0.0
    %714 = vmatpush1.msra.mxu0 0.0
    %715 = vmatprep.subr.mxu0 0.0
    %716 = vmatpush1.msra.mxu0 0.0
    %717 = vmatprep.mubr.f32.mxu0 0.0
    %718 = vmatmul.mubr.f32.gmra.mrb[0].mxu0 %v651
    %v719 = vpop.f32.mrb[0].mxu0
    %v720 = vadd.f32 0.0, %v719
    %v721 = vpop.f32.mrb[0].mxu0
    %722 = vdwg.mxu0
    %v724 = vrot.slane %v720, 4
    %v726 = vadd.f32 %v646, %v724
    %v727 = vrot.slane %v633, 4
    %728 = vrot.lane.b32.xlu0 %v727, 32
    %v729 = vpop.permute.xlu0 %728
    %v730 = vsel %vm214, %v729, 0
    %732 = vmatprep.subr.mxu0 0.0
    %733 = vmatpush1.msra.mxu0 %v107
    %734 = vmatprep.subr.mxu0 0.0
    %735 = vmatpush1.msra.mxu0 %v108
    %736 = vmatprep.subr.mxu0 0.0
    %737 = vmatpush1.msra.mxu0 %v109
    %738 = vmatprep.subr.mxu0 0.0
    %739 = vmatpush1.msra.mxu0 %v110
    %740 = vmatprep.subr.mxu0 0.0
    %741 = vmatpush1.msra.mxu0 0.0
    %742 = vmatprep.subr.mxu0 0.0
    %743 = vmatpush1.msra.mxu0 0.0
    %744 = vmatprep.subr.mxu0 0.0
    %745 = vmatpush1.msra.mxu0 0.0
    %746 = vmatprep.subr.mxu0 0.0
    %747 = vmatpush1.msra.mxu0 0.0
    %748 = vmatprep.subr.mxu0 0.0
    %749 = vmatpush1.msra.mxu0 0.0
    %750 = vmatprep.subr.mxu0 0.0
    %751 = vmatpush1.msra.mxu0 0.0
    %752 = vmatprep.subr.mxu0 0.0
    %753 = vmatpush1.msra.mxu0 0.0
    %754 = vmatprep.subr.mxu0 0.0
    %755 = vmatpush1.msra.mxu0 0.0
    %756 = vmatprep.subr.mxu0 0.0
    %757 = vmatpush1.msra.mxu0 0.0
    %758 = vmatprep.subr.mxu0 0.0
    %759 = vmatpush1.msra.mxu0 0.0
    %760 = vmatprep.subr.mxu0 0.0
    %761 = vmatpush1.msra.mxu0 0.0
    %762 = vmatprep.subr.mxu0 0.0
    %763 = vmatpush1.msra.mxu0 0.0
    %764 = vmatprep.subr.mxu0 0.0
    %765 = vmatpush1.msra.mxu0 0.0
    %766 = vmatprep.subr.mxu0 0.0
    %767 = vmatpush1.msra.mxu0 0.0
    %768 = vmatprep.subr.mxu0 0.0
    %769 = vmatpush1.msra.mxu0 0.0
    %770 = vmatprep.subr.mxu0 0.0
    %771 = vmatpush1.msra.mxu0 0.0
    %772 = vmatprep.subr.mxu0 0.0
    %773 = vmatpush1.msra.mxu0 0.0
    %774 = vmatprep.subr.mxu0 0.0
    %775 = vmatpush1.msra.mxu0 0.0
    %776 = vmatprep.subr.mxu0 0.0
    %777 = vmatpush1.msra.mxu0 0.0
    %778 = vmatprep.subr.mxu0 0.0
    %779 = vmatpush1.msra.mxu0 0.0
    %780 = vmatprep.subr.mxu0 0.0
    %781 = vmatpush1.msra.mxu0 0.0
    %782 = vmatprep.subr.mxu0 0.0
    %783 = vmatpush1.msra.mxu0 0.0
    %784 = vmatprep.subr.mxu0 0.0
    %785 = vmatpush1.msra.mxu0 0.0
    %786 = vmatprep.subr.mxu0 0.0
    %787 = vmatpush1.msra.mxu0 0.0
    %788 = vmatprep.subr.mxu0 0.0
    %789 = vmatpush1.msra.mxu0 0.0
    %790 = vmatprep.subr.mxu0 0.0
    %791 = vmatpush1.msra.mxu0 0.0
    %792 = vmatprep.subr.mxu0 0.0
    %793 = vmatpush1.msra.mxu0 0.0
    %794 = vmatprep.subr.mxu0 0.0
    %795 = vmatpush1.msra.mxu0 0.0
    %796 = vmatprep.mubr.f32.mxu0 0.0
    %797 = vmatmul.mubr.f32.gmra.mrb[0].mxu0 %v730
    %v798 = vpop.f32.mrb[0].mxu0
    %v799 = vadd.f32 0.0, %v798
    %v800 = vpop.f32.mrb[0].mxu0
    %801 = vdwg.mxu0
    %v803 = vrot.slane %v799, 6
    %v805 = vadd.f32 %v647, %v803
    %v806 = vxor.u32 %v726, 2147483648
    %v807 = vmul.f32 %v806, 1.442695
    %v808 = vpow.pop %v807
    %v809 = vadd.f32 %v808, 1.0
    %v810 = vrcp.pop %v809
    %v811 = vmul.f32 1.0, %v810
    %v812 = vtanh.pop %v726
    %v813 = vxor.u32 %v805, 2147483648
    %v814 = vmul.f32 %v813, 1.442695
    %v815 = vpow.pop %v814
    %v816 = vadd.f32 %v815, 1.0
    %v817 = vrcp.pop %v816
    %v818 = vmul.f32 1.0, %v817
    %v819 = vtanh.pop %v805
    %v821 = vrot.slane %v607, 6
    %v823 = vmul.f32 %v811, %v821
    %825 = vrot.lane.b32.xlu0 %v812, 64
    %v826 = vpop.permute.xlu0 %825
    %v828 = vmul.f32 %v811, %v826
    %830 = vrot.lane.b32.xlu0 %v828, 32
    %v831 = vpop.permute.xlu0 %830
    %v833 = vadd.f32 %v823, %v831
    %v834 = vtanh.pop %v833
    %836 = vrot.lane.b32.xlu0 %v834, 64
    %v837 = vpop.permute.xlu0 %836
    %v839 = vmul.f32 %v811, %v837
    %v841 = vrot.slane %v627, 2
    %v843 = vmul.f32 %v818, %v841
    %845 = vrot.lane.b32.xlu0 %v819, 64
    %v846 = vpop.permute.xlu0 %845
    %v848 = vmul.f32 %v818, %v846
    %850 = vrot.lane.b32.xlu0 %v848, 32
    %v851 = vpop.permute.xlu0 %850
    %v853 = vadd.f32 %v843, %v851
    %v854 = vtanh.pop %v853
    %856 = vrot.lane.b32.xlu0 %v854, 64
    %v857 = vpop.permute.xlu0 %856
    %v859 = vmul.f32 %v818, %v857
    %861 = vrot.lane.b32.xlu0 %v839, 32
    %v862 = vpop.permute.xlu0 %861
    %vm864 = vcmask 259076
    %865 = vst.msk [vmem:[#allocation2] sm:$0x30] %vm864, %v862
    %867 = vrot.lane.b32.xlu0 %v859, 64
    %v868 = vpop.permute.xlu0 %867
    %vm870 = vcmask 519426
    %871 = vst.msk [vmem:[#allocation2 + $0x8] sm:$0xc] %vm870, %v868
    %v872 = vld [vmem:[#allocation3] sm:$0xc0]
    %v873 = vld [vmem:[#allocation3 + $0x18] sm:$0x3]
    %v874 = vrot.slane %v839, 4
    %875 = vrot.lane.b32.xlu0 %v874, 32
    %v876 = vpop.permute.xlu0 %875
    %v877 = vsel %vm214, %v876, 0
    %879 = vmatprep.subr.mxu0 0.0
    %880 = vmatpush1.msra.mxu0 %v103
    %881 = vmatprep.subr.mxu0 0.0
    %882 = vmatpush1.msra.mxu0 %v104
    %883 = vmatprep.subr.mxu0 0.0
    %884 = vmatpush1.msra.mxu0 %v105
    %885 = vmatprep.subr.mxu0 0.0
    %886 = vmatpush1.msra.mxu0 %v106
    %887 = vmatprep.subr.mxu0 0.0
    %888 = vmatpush1.msra.mxu0 0.0
    %889 = vmatprep.subr.mxu0 0.0
    %890 = vmatpush1.msra.mxu0 0.0
    %891 = vmatprep.subr.mxu0 0.0
    %892 = vmatpush1.msra.mxu0 0.0
    %893 = vmatprep.subr.mxu0 0.0
    %894 = vmatpush1.msra.mxu0 0.0
    %895 = vmatprep.subr.mxu0 0.0
    %896 = vmatpush1.msra.mxu0 0.0
    %897 = vmatprep.subr.mxu0 0.0
    %898 = vmatpush1.msra.mxu0 0.0
    %899 = vmatprep.subr.mxu0 0.0
    %900 = vmatpush1.msra.mxu0 0.0
    %901 = vmatprep.subr.mxu0 0.0
    %902 = vmatpush1.msra.mxu0 0.0
    %903 = vmatprep.subr.mxu0 0.0
    %904 = vmatpush1.msra.mxu0 0.0
    %905 = vmatprep.subr.mxu0 0.0
    %906 = vmatpush1.msra.mxu0 0.0
    %907 = vmatprep.subr.mxu0 0.0
    %908 = vmatpush1.msra.mxu0 0.0
    %909 = vmatprep.subr.mxu0 0.0
    %910 = vmatpush1.msra.mxu0 0.0
    %911 = vmatprep.subr.mxu0 0.0
    %912 = vmatpush1.msra.mxu0 0.0
    %913 = vmatprep.subr.mxu0 0.0
    %914 = vmatpush1.msra.mxu0 0.0
    %915 = vmatprep.subr.mxu0 0.0
    %916 = vmatpush1.msra.mxu0 0.0
    %917 = vmatprep.subr.mxu0 0.0
    %918 = vmatpush1.msra.mxu0 0.0
    %919 = vmatprep.subr.mxu0 0.0
    %920 = vmatpush1.msra.mxu0 0.0
    %921 = vmatprep.subr.mxu0 0.0
    %922 = vmatpush1.msra.mxu0 0.0
    %923 = vmatprep.subr.mxu0 0.0
    %924 = vmatpush1.msra.mxu0 0.0
    %925 = vmatprep.subr.mxu0 0.0
    %926 = vmatpush1.msra.mxu0 0.0
    %927 = vmatprep.subr.mxu0 0.0
    %928 = vmatpush1.msra.mxu0 0.0
    %929 = vmatprep.subr.mxu0 0.0
    %930 = vmatpush1.msra.mxu0 0.0
    %931 = vmatprep.subr.mxu0 0.0
    %932 = vmatpush1.msra.mxu0 0.0
    %933 = vmatprep.subr.mxu0 0.0
    %934 = vmatpush1.msra.mxu0 0.0
    %935 = vmatprep.subr.mxu0 0.0
    %936 = vmatpush1.msra.mxu0 0.0
    %937 = vmatprep.subr.mxu0 0.0
    %938 = vmatpush1.msra.mxu0 0.0
    %939 = vmatprep.subr.mxu0 0.0
    %940 = vmatpush1.msra.mxu0 0.0
    %941 = vmatprep.subr.mxu0 0.0
    %942 = vmatpush1.msra.mxu0 0.0
    %943 = vmatprep.mubr.f32.mxu0 0.0
    %944 = vmatmul.mubr.f32.gmra.mrb[0].mxu0 %v877
    %v945 = vpop.f32.mrb[0].mxu0
    %v946 = vadd.f32 0.0, %v945
    %v947 = vpop.f32.mrb[0].mxu0
    %948 = vdwg.mxu0
    %v950 = vrot.slane %v946, 2
    %v952 = vadd.f32 %v872, %v950
    %v953 = vrot.slane %v859, 2
    %954 = vrot.lane.b32.xlu0 %v953, 32
    %v955 = vpop.permute.xlu0 %954
    %v956 = vsel %vm214, %v955, 0
    %958 = vmatprep.subr.mxu0 0.0
    %959 = vmatpush1.msra.mxu0 %v107
    %960 = vmatprep.subr.mxu0 0.0
    %961 = vmatpush1.msra.mxu0 %v108
    %962 = vmatprep.subr.mxu0 0.0
    %963 = vmatpush1.msra.mxu0 %v109
    %964 = vmatprep.subr.mxu0 0.0
    %965 = vmatpush1.msra.mxu0 %v110
    %966 = vmatprep.subr.mxu0 0.0
    %967 = vmatpush1.msra.mxu0 0.0
    %968 = vmatprep.subr.mxu0 0.0
    %969 = vmatpush1.msra.mxu0 0.0
    %970 = vmatprep.subr.mxu0 0.0
    %971 = vmatpush1.msra.mxu0 0.0
    %972 = vmatprep.subr.mxu0 0.0
    %973 = vmatpush1.msra.mxu0 0.0
    %974 = vmatprep.subr.mxu0 0.0
    %975 = vmatpush1.msra.mxu0 0.0
    %976 = vmatprep.subr.mxu0 0.0
    %977 = vmatpush1.msra.mxu0 0.0
    %978 = vmatprep.subr.mxu0 0.0
    %979 = vmatpush1.msra.mxu0 0.0
    %980 = vmatprep.subr.mxu0 0.0
    %981 = vmatpush1.msra.mxu0 0.0
    %982 = vmatprep.subr.mxu0 0.0
    %983 = vmatpush1.msra.mxu0 0.0
    %984 = vmatprep.subr.mxu0 0.0
    %985 = vmatpush1.msra.mxu0 0.0
    %986 = vmatprep.subr.mxu0 0.0
    %987 = vmatpush1.msra.mxu0 0.0
    %988 = vmatprep.subr.mxu0 0.0
    %989 = vmatpush1.msra.mxu0 0.0
    %990 = vmatprep.subr.mxu0 0.0
    %991 = vmatpush1.msra.mxu0 0.0
    %992 = vmatprep.subr.mxu0 0.0
    %993 = vmatpush1.msra.mxu0 0.0
    %994 = vmatprep.subr.mxu0 0.0
    %995 = vmatpush1.msra.mxu0 0.0
    %996 = vmatprep.subr.mxu0 0.0
    %997 = vmatpush1.msra.mxu0 0.0
    %998 = vmatprep.subr.mxu0 0.0
    %999 = vmatpush1.msra.mxu0 0.0
    %1000 = vmatprep.subr.mxu0 0.0
    %1001 = vmatpush1.msra.mxu0 0.0
    %1002 = vmatprep.subr.mxu0 0.0
    %1003 = vmatpush1.msra.mxu0 0.0
    %1004 = vmatprep.subr.mxu0 0.0
    %1005 = vmatpush1.msra.mxu0 0.0
    %1006 = vmatprep.subr.mxu0 0.0
    %1007 = vmatpush1.msra.mxu0 0.0
    %1008 = vmatprep.subr.mxu0 0.0
    %1009 = vmatpush1.msra.mxu0 0.0
    %1010 = vmatprep.subr.mxu0 0.0
    %1011 = vmatpush1.msra.mxu0 0.0
    %1012 = vmatprep.subr.mxu0 0.0
    %1013 = vmatpush1.msra.mxu0 0.0
    %1014 = vmatprep.subr.mxu0 0.0
    %1015 = vmatpush1.msra.mxu0 0.0
    %1016 = vmatprep.subr.mxu0 0.0
    %1017 = vmatpush1.msra.mxu0 0.0
    %1018 = vmatprep.subr.mxu0 0.0
    %1019 = vmatpush1.msra.mxu0 0.0
    %1020 = vmatprep.subr.mxu0 0.0
    %1021 = vmatpush1.msra.mxu0 0.0
    %1022 = vmatprep.mubr.f32.mxu0 0.0
    %1023 = vmatmul.mubr.f32.gmra.mrb[0].mxu0 %v956
    %v1024 = vpop.f32.mrb[0].mxu0
    %v1025 = vadd.f32 0.0, %v1024
    %v1026 = vpop.f32.mrb[0].mxu0
    %1027 = vdwg.mxu0
    %v1028 = vadd.f32 %v873, %v1025
    %v1029 = vxor.u32 %v952, 2147483648
    %v1030 = vmul.f32 %v1029, 1.442695
    %v1031 = vpow.pop %v1030
    %v1032 = vadd.f32 %v1031, 1.0
    %v1033 = vrcp.pop %v1032
    %v1034 = vmul.f32 1.0, %v1033
    %v1035 = vtanh.pop %v952
    %v1036 = vxor.u32 %v1028, 2147483648
    %v1037 = vmul.f32 %v1036, 1.442695
    %v1038 = vpow.pop %v1037
    %v1039 = vadd.f32 %v1038, 1.0
    %v1040 = vrcp.pop %v1039
    %v1041 = vmul.f32 1.0, %v1040
    %v1042 = vtanh.pop %v1028
    %v1044 = vrot.slane %v833, 6
    %v1046 = vmul.f32 %v1034, %v1044
    %1048 = vrot.lane.b32.xlu0 %v1035, 64
    %v1049 = vpop.permute.xlu0 %1048
    %v1051 = vmul.f32 %v1034, %v1049
    %1053 = vrot.lane.b32.xlu0 %v1051, 32
    %v1054 = vpop.permute.xlu0 %1053
    %v1056 = vadd.f32 %v1046, %v1054
    %v1057 = vtanh.pop %v1056
    %1059 = vrot.lane.b32.xlu0 %v1057, 64
    %v1060 = vpop.permute.xlu0 %1059
    %v1062 = vmul.f32 %v1034, %v1060
    %v1064 = vrot.slane %v853, 2
    %v1066 = vmul.f32 %v1041, %v1064
    %1068 = vrot.lane.b32.xlu0 %v1042, 64
    %v1069 = vpop.permute.xlu0 %1068
    %v1071 = vmul.f32 %v1041, %v1069
    %1073 = vrot.lane.b32.xlu0 %v1071, 32
    %v1074 = vpop.permute.xlu0 %1073
    %v1076 = vadd.f32 %v1066, %v1074
    %v1077 = vtanh.pop %v1076
    %1079 = vrot.lane.b32.xlu0 %v1077, 64
    %v1080 = vpop.permute.xlu0 %1079
    %v1082 = vmul.f32 %v1041, %v1080
    %1084 = vrot.lane.b32.xlu0 %v1062, 32
    %v1085 = vpop.permute.xlu0 %1084
    %vm1087 = vcmask 261126
    %1088 = vst.msk [vmem:[#allocation2] sm:$0xc0] %vm1087, %v1085
    %1090 = vrot.lane.b32.xlu0 %v1082, 64
    %v1091 = vpop.permute.xlu0 %1090
    %vm1093 = vcmask 517376
    %1094 = vst.msk [vmem:[#allocation2 + $0x8] sm:$0x3] %vm1093, %v1091
    %v1095 = vld [vmem:[#allocation3 + $0x10] sm:$0x3]
    %v1096 = vld [vmem:[#allocation3 + $0x8] sm:$0xc0]
    %v1097 = vrot.slane %v1062, 6
    %1098 = vrot.lane.b32.xlu0 %v1097, 32
    %v1099 = vpop.permute.xlu0 %1098
    %v1100 = vsel %vm214, %v1099, 0
    %1102 = vmatprep.subr.mxu0 0.0
    %1103 = vmatpush1.msra.mxu0 %v103
    %1104 = vmatprep.subr.mxu0 0.0
    %1105 = vmatpush1.msra.mxu0 %v104
    %1106 = vmatprep.subr.mxu0 0.0
    %1107 = vmatpush1.msra.mxu0 %v105
    %1108 = vmatprep.subr.mxu0 0.0
    %1109 = vmatpush1.msra.mxu0 %v106
    %1110 = vmatprep.subr.mxu0 0.0
    %1111 = vmatpush1.msra.mxu0 0.0
    %1112 = vmatprep.subr.mxu0 0.0
    %1113 = vmatpush1.msra.mxu0 0.0
    %1114 = vmatprep.subr.mxu0 0.0
    %1115 = vmatpush1.msra.mxu0 0.0
    %1116 = vmatprep.subr.mxu0 0.0
    %1117 = vmatpush1.msra.mxu0 0.0
    %1118 = vmatprep.subr.mxu0 0.0
    %1119 = vmatpush1.msra.mxu0 0.0
    %1120 = vmatprep.subr.mxu0 0.0
    %1121 = vmatpush1.msra.mxu0 0.0
    %1122 = vmatprep.subr.mxu0 0.0
    %1123 = vmatpush1.msra.mxu0 0.0
    %1124 = vmatprep.subr.mxu0 0.0
    %1125 = vmatpush1.msra.mxu0 0.0
    %1126 = vmatprep.subr.mxu0 0.0
    %1127 = vmatpush1.msra.mxu0 0.0
    %1128 = vmatprep.subr.mxu0 0.0
    %1129 = vmatpush1.msra.mxu0 0.0
    %1130 = vmatprep.subr.mxu0 0.0
    %1131 = vmatpush1.msra.mxu0 0.0
    %1132 = vmatprep.subr.mxu0 0.0
    %1133 = vmatpush1.msra.mxu0 0.0
    %1134 = vmatprep.subr.mxu0 0.0
    %1135 = vmatpush1.msra.mxu0 0.0
    %1136 = vmatprep.subr.mxu0 0.0
    %1137 = vmatpush1.msra.mxu0 0.0
    %1138 = vmatprep.subr.mxu0 0.0
    %1139 = vmatpush1.msra.mxu0 0.0
    %1140 = vmatprep.subr.mxu0 0.0
    %1141 = vmatpush1.msra.mxu0 0.0
    %1142 = vmatprep.subr.mxu0 0.0
    %1143 = vmatpush1.msra.mxu0 0.0
    %1144 = vmatprep.subr.mxu0 0.0
    %1145 = vmatpush1.msra.mxu0 0.0
    %1146 = vmatprep.subr.mxu0 0.0
    %1147 = vmatpush1.msra.mxu0 0.0
    %1148 = vmatprep.subr.mxu0 0.0
    %1149 = vmatpush1.msra.mxu0 0.0
    %1150 = vmatprep.subr.mxu0 0.0
    %1151 = vmatpush1.msra.mxu0 0.0
    %1152 = vmatprep.subr.mxu0 0.0
    %1153 = vmatpush1.msra.mxu0 0.0
    %1154 = vmatprep.subr.mxu0 0.0
    %1155 = vmatpush1.msra.mxu0 0.0
    %1156 = vmatprep.subr.mxu0 0.0
    %1157 = vmatpush1.msra.mxu0 0.0
    %1158 = vmatprep.subr.mxu0 0.0
    %1159 = vmatpush1.msra.mxu0 0.0
    %1160 = vmatprep.subr.mxu0 0.0
    %1161 = vmatpush1.msra.mxu0 0.0
    %1162 = vmatprep.subr.mxu0 0.0
    %1163 = vmatpush1.msra.mxu0 0.0
    %1164 = vmatprep.subr.mxu0 0.0
    %1165 = vmatpush1.msra.mxu0 0.0
    %1166 = vmatprep.mubr.f32.mxu0 0.0
    %1167 = vmatmul.mubr.f32.gmra.mrb[0].mxu0 %v1100
    %v1168 = vpop.f32.mrb[0].mxu0
    %v1169 = vadd.f32 0.0, %v1168
    %v1170 = vpop.f32.mrb[0].mxu0
    %1171 = vdwg.mxu0
    %v1172 = vadd.f32 %v1095, %v1169
    %1173 = vrot.lane.b32.xlu0 %v1082, 32
    %v1174 = vpop.permute.xlu0 %1173
    %v1175 = vsel %vm214, %v1174, 0
    %1177 = vmatprep.subr.mxu0 0.0
    %1178 = vmatpush1.msra.mxu0 %v107
    %1179 = vmatprep.subr.mxu0 0.0
    %1180 = vmatpush1.msra.mxu0 %v108
    %1181 = vmatprep.subr.mxu0 0.0
    %1182 = vmatpush1.msra.mxu0 %v109
    %1183 = vmatprep.subr.mxu0 0.0
    %1184 = vmatpush1.msra.mxu0 %v110
    %1185 = vmatprep.subr.mxu0 0.0
    %1186 = vmatpush1.msra.mxu0 0.0
    %1187 = vmatprep.subr.mxu0 0.0
    %1188 = vmatpush1.msra.mxu0 0.0
    %1189 = vmatprep.subr.mxu0 0.0
    %1190 = vmatpush1.msra.mxu0 0.0
    %1191 = vmatprep.subr.mxu0 0.0
    %1192 = vmatpush1.msra.mxu0 0.0
    %1193 = vmatprep.subr.mxu0 0.0
    %1194 = vmatpush1.msra.mxu0 0.0
    %1195 = vmatprep.subr.mxu0 0.0
    %1196 = vmatpush1.msra.mxu0 0.0
    %1197 = vmatprep.subr.mxu0 0.0
    %1198 = vmatpush1.msra.mxu0 0.0
    %1199 = vmatprep.subr.mxu0 0.0
    %1200 = vmatpush1.msra.mxu0 0.0
    %1201 = vmatprep.subr.mxu0 0.0
    %1202 = vmatpush1.msra.mxu0 0.0
    %1203 = vmatprep.subr.mxu0 0.0
    %1204 = vmatpush1.msra.mxu0 0.0
    %1205 = vmatprep.subr.mxu0 0.0
    %1206 = vmatpush1.msra.mxu0 0.0
    %1207 = vmatprep.subr.mxu0 0.0
    %1208 = vmatpush1.msra.mxu0 0.0
    %1209 = vmatprep.subr.mxu0 0.0
    %1210 = vmatpush1.msra.mxu0 0.0
    %1211 = vmatprep.subr.mxu0 0.0
    %1212 = vmatpush1.msra.mxu0 0.0
    %1213 = vmatprep.subr.mxu0 0.0
    %1214 = vmatpush1.msra.mxu0 0.0
    %1215 = vmatprep.subr.mxu0 0.0
    %1216 = vmatpush1.msra.mxu0 0.0
    %1217 = vmatprep.subr.mxu0 0.0
    %1218 = vmatpush1.msra.mxu0 0.0
    %1219 = vmatprep.subr.mxu0 0.0
    %1220 = vmatpush1.msra.mxu0 0.0
    %1221 = vmatprep.subr.mxu0 0.0
    %1222 = vmatpush1.msra.mxu0 0.0
    %1223 = vmatprep.subr.mxu0 0.0
    %1224 = vmatpush1.msra.mxu0 0.0
    %1225 = vmatprep.subr.mxu0 0.0
    %1226 = vmatpush1.msra.mxu0 0.0
    %1227 = vmatprep.subr.mxu0 0.0
    %1228 = vmatpush1.msra.mxu0 0.0
    %1229 = vmatprep.subr.mxu0 0.0
    %1230 = vmatpush1.msra.mxu0 0.0
    %1231 = vmatprep.subr.mxu0 0.0
    %1232 = vmatpush1.msra.mxu0 0.0
    %1233 = vmatprep.subr.mxu0 0.0
    %1234 = vmatpush1.msra.mxu0 0.0
    %1235 = vmatprep.subr.mxu0 0.0
    %1236 = vmatpush1.msra.mxu0 0.0
    %1237 = vmatprep.subr.mxu0 0.0
    %1238 = vmatpush1.msra.mxu0 0.0
    %1239 = vmatprep.subr.mxu0 0.0
    %1240 = vmatpush1.msra.mxu0 0.0
    %1241 = vmatprep.mubr.f32.mxu0 0.0
    %1242 = vmatmul.mubr.f32.gmra.mrb[0].mxu0 %v1175
    %v1243 = vpop.f32.mrb[0].mxu0
    %v1244 = vadd.f32 0.0, %v1243
    %v1245 = vpop.f32.mrb[0].mxu0
    %1246 = vdwg.mxu0
    %v1248 = vrot.slane %v1244, 2
    %v1250 = vadd.f32 %v1096, %v1248
    %v1251 = vxor.u32 %v1172, 2147483648
    %v1252 = vmul.f32 %v1251, 1.442695
    %v1253 = vpow.pop %v1252
    %v1254 = vadd.f32 %v1253, 1.0
    %v1255 = vrcp.pop %v1254
    %v1256 = vmul.f32 1.0, %v1255
    %v1257 = vtanh.pop %v1172
    %v1258 = vxor.u32 %v1250, 2147483648
    %v1259 = vmul.f32 %v1258, 1.442695
    %v1260 = vpow.pop %v1259
    %v1261 = vadd.f32 %v1260, 1.0
    %v1262 = vrcp.pop %v1261
    %v1263 = vmul.f32 1.0, %v1262
    %v1264 = vtanh.pop %v1250
    %v1266 = vrot.slane %v1056, 6
    %v1268 = vmul.f32 %v1256, %v1266
    %1270 = vrot.lane.b32.xlu0 %v1257, 64
    %v1271 = vpop.permute.xlu0 %1270
    %v1273 = vmul.f32 %v1256, %v1271
    %1275 = vrot.lane.b32.xlu0 %v1273, 32
    %v1276 = vpop.permute.xlu0 %1275
    %v1278 = vadd.f32 %v1268, %v1276
    %v1279 = vtanh.pop %v1278
    %1281 = vrot.lane.b32.xlu0 %v1279, 64
    %v1282 = vpop.permute.xlu0 %1281
    %v1284 = vmul.f32 %v1256, %v1282
    %v1286 = vrot.slane %v1076, 2
    %v1288 = vmul.f32 %v1263, %v1286
    %1290 = vrot.lane.b32.xlu0 %v1264, 64
    %v1291 = vpop.permute.xlu0 %1290
    %v1293 = vmul.f32 %v1263, %v1291
    %1295 = vrot.lane.b32.xlu0 %v1293, 32
    %v1296 = vpop.permute.xlu0 %1295
    %v1298 = vadd.f32 %v1288, %v1296
    %v1299 = vtanh.pop %v1298
    %1301 = vrot.lane.b32.xlu0 %v1299, 64
    %v1302 = vpop.permute.xlu0 %1301
    %v1304 = vmul.f32 %v1263, %v1302
    %1306 = vrot.lane.b32.xlu0 %v1284, 32
    %v1307 = vpop.permute.xlu0 %1306
    %1309 = vst.msk [vmem:[#allocation2 + $0x8] sm:$0x3] %vm415, %v1307
    %1311 = vrot.lane.b32.xlu0 %v1304, 64
    %v1312 = vpop.permute.xlu0 %1311
    %1314 = vst.msk [vmem:[#allocation2] sm:$0xc0] %vm421, %v1312
    %v1315 = vld [vmem:[#allocation3 + $0x10] sm:$0xc]
    %v1316 = vld [vmem:[#allocation3 + $0x8] sm:$0x30]
    %v1317 = vsel %vm214, %v1307, 0
    %1319 = vmatprep.subr.mxu0 0.0
    %1320 = vmatpush1.msra.mxu0 %v103
    %1321 = vmatprep.subr.mxu0 0.0
    %1322 = vmatpush1.msra.mxu0 %v104
    %1323 = vmatprep.subr.mxu0 0.0
    %1324 = vmatpush1.msra.mxu0 %v105
    %1325 = vmatprep.subr.mxu0 0.0
    %1326 = vmatpush1.msra.mxu0 %v106
    %1327 = vmatprep.subr.mxu0 0.0
    %1328 = vmatpush1.msra.mxu0 0.0
    %1329 = vmatprep.subr.mxu0 0.0
    %1330 = vmatpush1.msra.mxu0 0.0
    %1331 = vmatprep.subr.mxu0 0.0
    %1332 = vmatpush1.msra.mxu0 0.0
    %1333 = vmatprep.subr.mxu0 0.0
    %1334 = vmatpush1.msra.mxu0 0.0
    %1335 = vmatprep.subr.mxu0 0.0
    %1336 = vmatpush1.msra.mxu0 0.0
    %1337 = vmatprep.subr.mxu0 0.0
    %1338 = vmatpush1.msra.mxu0 0.0
    %1339 = vmatprep.subr.mxu0 0.0
    %1340 = vmatpush1.msra.mxu0 0.0
    %1341 = vmatprep.subr.mxu0 0.0
    %1342 = vmatpush1.msra.mxu0 0.0
    %1343 = vmatprep.subr.mxu0 0.0
    %1344 = vmatpush1.msra.mxu0 0.0
    %1345 = vmatprep.subr.mxu0 0.0
    %1346 = vmatpush1.msra.mxu0 0.0
    %1347 = vmatprep.subr.mxu0 0.0
    %1348 = vmatpush1.msra.mxu0 0.0
    %1349 = vmatprep.subr.mxu0 0.0
    %1350 = vmatpush1.msra.mxu0 0.0
    %1351 = vmatprep.subr.mxu0 0.0
    %1352 = vmatpush1.msra.mxu0 0.0
    %1353 = vmatprep.subr.mxu0 0.0
    %1354 = vmatpush1.msra.mxu0 0.0
    %1355 = vmatprep.subr.mxu0 0.0
    %1356 = vmatpush1.msra.mxu0 0.0
    %1357 = vmatprep.subr.mxu0 0.0
    %1358 = vmatpush1.msra.mxu0 0.0
    %1359 = vmatprep.subr.mxu0 0.0
    %1360 = vmatpush1.msra.mxu0 0.0
    %1361 = vmatprep.subr.mxu0 0.0
    %1362 = vmatpush1.msra.mxu0 0.0
    %1363 = vmatprep.subr.mxu0 0.0
    %1364 = vmatpush1.msra.mxu0 0.0
    %1365 = vmatprep.subr.mxu0 0.0
    %1366 = vmatpush1.msra.mxu0 0.0
    %1367 = vmatprep.subr.mxu0 0.0
    %1368 = vmatpush1.msra.mxu0 0.0
    %1369 = vmatprep.subr.mxu0 0.0
    %1370 = vmatpush1.msra.mxu0 0.0
    %1371 = vmatprep.subr.mxu0 0.0
    %1372 = vmatpush1.msra.mxu0 0.0
    %1373 = vmatprep.subr.mxu0 0.0
    %1374 = vmatpush1.msra.mxu0 0.0
    %1375 = vmatprep.subr.mxu0 0.0
    %1376 = vmatpush1.msra.mxu0 0.0
    %1377 = vmatprep.subr.mxu0 0.0
    %1378 = vmatpush1.msra.mxu0 0.0
    %1379 = vmatprep.subr.mxu0 0.0
    %1380 = vmatpush1.msra.mxu0 0.0
    %1381 = vmatprep.subr.mxu0 0.0
    %1382 = vmatpush1.msra.mxu0 0.0
    %1383 = vmatprep.mubr.f32.mxu0 0.0
    %1384 = vmatmul.mubr.f32.gmra.mrb[0].mxu0 %v1317
    %v1385 = vpop.f32.mrb[0].mxu0
    %v1386 = vadd.f32 0.0, %v1385
    %v1387 = vpop.f32.mrb[0].mxu0
    %1388 = vdwg.mxu0
    %v1390 = vrot.slane %v1386, 6
    %v1392 = vadd.f32 %v1315, %v1390
    %v1393 = vrot.slane %v1304, 6
    %1394 = vrot.lane.b32.xlu0 %v1393, 32
    %v1395 = vpop.permute.xlu0 %1394
    %v1396 = vsel %vm214, %v1395, 0
    %1398 = vmatprep.subr.mxu0 0.0
    %1399 = vmatpush1.msra.mxu0 %v107
    %1400 = vmatprep.subr.mxu0 0.0
    %1401 = vmatpush1.msra.mxu0 %v108
    %1402 = vmatprep.subr.mxu0 0.0
    %1403 = vmatpush1.msra.mxu0 %v109
    %1404 = vmatprep.subr.mxu0 0.0
    %1405 = vmatpush1.msra.mxu0 %v110
    %1406 = vmatprep.subr.mxu0 0.0
    %1407 = vmatpush1.msra.mxu0 0.0
    %1408 = vmatprep.subr.mxu0 0.0
    %1409 = vmatpush1.msra.mxu0 0.0
    %1410 = vmatprep.subr.mxu0 0.0
    %1411 = vmatpush1.msra.mxu0 0.0
    %1412 = vmatprep.subr.mxu0 0.0
    %1413 = vmatpush1.msra.mxu0 0.0
    %1414 = vmatprep.subr.mxu0 0.0
    %1415 = vmatpush1.msra.mxu0 0.0
    %1416 = vmatprep.subr.mxu0 0.0
    %1417 = vmatpush1.msra.mxu0 0.0
    %1418 = vmatprep.subr.mxu0 0.0
    %1419 = vmatpush1.msra.mxu0 0.0
    %1420 = vmatprep.subr.mxu0 0.0
    %1421 = vmatpush1.msra.mxu0 0.0
    %1422 = vmatprep.subr.mxu0 0.0
    %1423 = vmatpush1.msra.mxu0 0.0
    %1424 = vmatprep.subr.mxu0 0.0
    %1425 = vmatpush1.msra.mxu0 0.0
    %1426 = vmatprep.subr.mxu0 0.0
    %1427 = vmatpush1.msra.mxu0 0.0
    %1428 = vmatprep.subr.mxu0 0.0
    %1429 = vmatpush1.msra.mxu0 0.0
    %1430 = vmatprep.subr.mxu0 0.0
    %1431 = vmatpush1.msra.mxu0 0.0
    %1432 = vmatprep.subr.mxu0 0.0
    %1433 = vmatpush1.msra.mxu0 0.0
    %1434 = vmatprep.subr.mxu0 0.0
    %1435 = vmatpush1.msra.mxu0 0.0
    %1436 = vmatprep.subr.mxu0 0.0
    %1437 = vmatpush1.msra.mxu0 0.0
    %1438 = vmatprep.subr.mxu0 0.0
    %1439 = vmatpush1.msra.mxu0 0.0
    %1440 = vmatprep.subr.mxu0 0.0
    %1441 = vmatpush1.msra.mxu0 0.0
    %1442 = vmatprep.subr.mxu0 0.0
    %1443 = vmatpush1.msra.mxu0 0.0
    %1444 = vmatprep.subr.mxu0 0.0
    %1445 = vmatpush1.msra.mxu0 0.0
    %1446 = vmatprep.subr.mxu0 0.0
    %1447 = vmatpush1.msra.mxu0 0.0
    %1448 = vmatprep.subr.mxu0 0.0
    %1449 = vmatpush1.msra.mxu0 0.0
    %1450 = vmatprep.subr.mxu0 0.0
    %1451 = vmatpush1.msra.mxu0 0.0
    %1452 = vmatprep.subr.mxu0 0.0
    %1453 = vmatpush1.msra.mxu0 0.0
    %1454 = vmatprep.subr.mxu0 0.0
    %1455 = vmatpush1.msra.mxu0 0.0
    %1456 = vmatprep.subr.mxu0 0.0
    %1457 = vmatpush1.msra.mxu0 0.0
    %1458 = vmatprep.subr.mxu0 0.0
    %1459 = vmatpush1.msra.mxu0 0.0
    %1460 = vmatprep.subr.mxu0 0.0
    %1461 = vmatpush1.msra.mxu0 0.0
    %1462 = vmatprep.mubr.f32.mxu0 0.0
    %1463 = vmatmul.mubr.f32.gmra.mrb[0].mxu0 %v1396
    %v1464 = vpop.f32.mrb[0].mxu0
    %v1465 = vadd.f32 0.0, %v1464
    %v1466 = vpop.f32.mrb[0].mxu0
    %1467 = vdwg.mxu0
    %v1469 = vrot.slane %v1465, 4
    %v1471 = vadd.f32 %v1316, %v1469
    %v1472 = vxor.u32 %v1392, 2147483648
    %v1473 = vmul.f32 %v1472, 1.442695
    %v1474 = vpow.pop %v1473
    %v1475 = vadd.f32 %v1474, 1.0
    %v1476 = vrcp.pop %v1475
    %v1477 = vmul.f32 1.0, %v1476
    %v1478 = vtanh.pop %v1392
    %v1479 = vxor.u32 %v1471, 2147483648
    %v1480 = vmul.f32 %v1479, 1.442695
    %v1481 = vpow.pop %v1480
    %v1482 = vadd.f32 %v1481, 1.0
    %v1483 = vrcp.pop %v1482
    %v1484 = vmul.f32 1.0, %v1483
    %v1485 = vtanh.pop %v1471
    %v1487 = vrot.slane %v1278, 6
    %v1489 = vmul.f32 %v1477, %v1487
    %1491 = vrot.lane.b32.xlu0 %v1478, 64
    %v1492 = vpop.permute.xlu0 %1491
    %v1494 = vmul.f32 %v1477, %v1492
    %1496 = vrot.lane.b32.xlu0 %v1494, 32
    %v1497 = vpop.permute.xlu0 %1496
    %v1499 = vadd.f32 %v1489, %v1497
    %v1500 = vtanh.pop %v1499
    %1502 = vrot.lane.b32.xlu0 %v1500, 64
    %v1503 = vpop.permute.xlu0 %1502
    %v1505 = vmul.f32 %v1477, %v1503
    %v1507 = vrot.slane %v1298, 2
    %v1509 = vmul.f32 %v1484, %v1507
    %1511 = vrot.lane.b32.xlu0 %v1485, 64
    %v1512 = vpop.permute.xlu0 %1511
    %v1514 = vmul.f32 %v1484, %v1512
    %1516 = vrot.lane.b32.xlu0 %v1514, 32
    %v1517 = vpop.permute.xlu0 %1516
    %v1519 = vadd.f32 %v1509, %v1517
    %v1520 = vtanh.pop %v1519
    %1522 = vrot.lane.b32.xlu0 %v1520, 64
    %v1523 = vpop.permute.xlu0 %1522
    %v1525 = vmul.f32 %v1484, %v1523
    %1527 = vrot.lane.b32.xlu0 %v1505, 32
    %v1528 = vpop.permute.xlu0 %1527
    %1530 = vst.msk [vmem:[#allocation2 + $0x8] sm:$0xc] %vm638, %v1528
    %1532 = vrot.lane.b32.xlu0 %v1525, 64
    %v1533 = vpop.permute.xlu0 %1532
    %1535 = vst.msk [vmem:[#allocation2] sm:$0x30] %vm644, %v1533
    %v1536 = vld [vmem:[#allocation3 + $0x10] sm:$0x30]
    %v1537 = vld [vmem:[#allocation3 + $0x8] sm:$0xc]
    %v1538 = vrot.slane %v1505, 2
    %1539 = vrot.lane.b32.xlu0 %v1538, 32
    %v1540 = vpop.permute.xlu0 %1539
    %v1541 = vsel %vm214, %v1540, 0
    %1543 = vmatprep.subr.mxu0 0.0
    %1544 = vmatpush1.msra.mxu0 %v103
    %1545 = vmatprep.subr.mxu0 0.0
    %1546 = vmatpush1.msra.mxu0 %v104
    %1547 = vmatprep.subr.mxu0 0.0
    %1548 = vmatpush1.msra.mxu0 %v105
    %1549 = vmatprep.subr.mxu0 0.0
    %1550 = vmatpush1.msra.mxu0 %v106
    %1551 = vmatprep.subr.mxu0 0.0
    %1552 = vmatpush1.msra.mxu0 0.0
    %1553 = vmatprep.subr.mxu0 0.0
    %1554 = vmatpush1.msra.mxu0 0.0
    %1555 = vmatprep.subr.mxu0 0.0
    %1556 = vmatpush1.msra.mxu0 0.0
    %1557 = vmatprep.subr.mxu0 0.0
    %1558 = vmatpush1.msra.mxu0 0.0
    %1559 = vmatprep.subr.mxu0 0.0
    %1560 = vmatpush1.msra.mxu0 0.0
    %1561 = vmatprep.subr.mxu0 0.0
    %1562 = vmatpush1.msra.mxu0 0.0
    %1563 = vmatprep.subr.mxu0 0.0
    %1564 = vmatpush1.msra.mxu0 0.0
    %1565 = vmatprep.subr.mxu0 0.0
    %1566 = vmatpush1.msra.mxu0 0.0
    %1567 = vmatprep.subr.mxu0 0.0
    %1568 = vmatpush1.msra.mxu0 0.0
    %1569 = vmatprep.subr.mxu0 0.0
    %1570 = vmatpush1.msra.mxu0 0.0
    %1571 = vmatprep.subr.mxu0 0.0
    %1572 = vmatpush1.msra.mxu0 0.0
    %1573 = vmatprep.subr.mxu0 0.0
    %1574 = vmatpush1.msra.mxu0 0.0
    %1575 = vmatprep.subr.mxu0 0.0
    %1576 = vmatpush1.msra.mxu0 0.0
    %1577 = vmatprep.subr.mxu0 0.0
    %1578 = vmatpush1.msra.mxu0 0.0
    %1579 = vmatprep.subr.mxu0 0.0
    %1580 = vmatpush1.msra.mxu0 0.0
    %1581 = vmatprep.subr.mxu0 0.0
    %1582 = vmatpush1.msra.mxu0 0.0
    %1583 = vmatprep.subr.mxu0 0.0
    %1584 = vmatpush1.msra.mxu0 0.0
    %1585 = vmatprep.subr.mxu0 0.0
    %1586 = vmatpush1.msra.mxu0 0.0
    %1587 = vmatprep.subr.mxu0 0.0
    %1588 = vmatpush1.msra.mxu0 0.0
    %1589 = vmatprep.subr.mxu0 0.0
    %1590 = vmatpush1.msra.mxu0 0.0
    %1591 = vmatprep.subr.mxu0 0.0
    %1592 = vmatpush1.msra.mxu0 0.0
    %1593 = vmatprep.subr.mxu0 0.0
    %1594 = vmatpush1.msra.mxu0 0.0
    %1595 = vmatprep.subr.mxu0 0.0
    %1596 = vmatpush1.msra.mxu0 0.0
    %1597 = vmatprep.subr.mxu0 0.0
    %1598 = vmatpush1.msra.mxu0 0.0
    %1599 = vmatprep.subr.mxu0 0.0
    %1600 = vmatpush1.msra.mxu0 0.0
    %1601 = vmatprep.subr.mxu0 0.0
    %1602 = vmatpush1.msra.mxu0 0.0
    %1603 = vmatprep.subr.mxu0 0.0
    %1604 = vmatpush1.msra.mxu0 0.0
    %1605 = vmatprep.subr.mxu0 0.0
    %1606 = vmatpush1.msra.mxu0 0.0
    %1607 = vmatprep.mubr.f32.mxu0 0.0
    %1608 = vmatmul.mubr.f32.gmra.mrb[0].mxu0 %v1541
    %v1609 = vpop.f32.mrb[0].mxu0
    %v1610 = vadd.f32 0.0, %v1609
    %v1611 = vpop.f32.mrb[0].mxu0
    %1612 = vdwg.mxu0
    %v1614 = vrot.slane %v1610, 4
    %v1616 = vadd.f32 %v1536, %v1614
    %v1617 = vrot.slane %v1525, 4
    %1618 = vrot.lane.b32.xlu0 %v1617, 32
    %v1619 = vpop.permute.xlu0 %1618
    %v1620 = vsel %vm214, %v1619, 0
    %1622 = vmatprep.subr.mxu0 0.0
    %1623 = vmatpush1.msra.mxu0 %v107
    %1624 = vmatprep.subr.mxu0 0.0
    %1625 = vmatpush1.msra.mxu0 %v108
    %1626 = vmatprep.subr.mxu0 0.0
    %1627 = vmatpush1.msra.mxu0 %v109
    %1628 = vmatprep.subr.mxu0 0.0
    %1629 = vmatpush1.msra.mxu0 %v110
    %1630 = vmatprep.subr.mxu0 0.0
    %1631 = vmatpush1.msra.mxu0 0.0
    %1632 = vmatprep.subr.mxu0 0.0
    %1633 = vmatpush1.msra.mxu0 0.0
    %1634 = vmatprep.subr.mxu0 0.0
    %1635 = vmatpush1.msra.mxu0 0.0
    %1636 = vmatprep.subr.mxu0 0.0
    %1637 = vmatpush1.msra.mxu0 0.0
    %1638 = vmatprep.subr.mxu0 0.0
    %1639 = vmatpush1.msra.mxu0 0.0
    %1640 = vmatprep.subr.mxu0 0.0
    %1641 = vmatpush1.msra.mxu0 0.0
    %1642 = vmatprep.subr.mxu0 0.0
    %1643 = vmatpush1.msra.mxu0 0.0
    %1644 = vmatprep.subr.mxu0 0.0
    %1645 = vmatpush1.msra.mxu0 0.0
    %1646 = vmatprep.subr.mxu0 0.0
    %1647 = vmatpush1.msra.mxu0 0.0
    %1648 = vmatprep.subr.mxu0 0.0
    %1649 = vmatpush1.msra.mxu0 0.0
    %1650 = vmatprep.subr.mxu0 0.0
    %1651 = vmatpush1.msra.mxu0 0.0
    %1652 = vmatprep.subr.mxu0 0.0
    %1653 = vmatpush1.msra.mxu0 0.0
    %1654 = vmatprep.subr.mxu0 0.0
    %1655 = vmatpush1.msra.mxu0 0.0
    %1656 = vmatprep.subr.mxu0 0.0
    %1657 = vmatpush1.msra.mxu0 0.0
    %1658 = vmatprep.subr.mxu0 0.0
    %1659 = vmatpush1.msra.mxu0 0.0
    %1660 = vmatprep.subr.mxu0 0.0
    %1661 = vmatpush1.msra.mxu0 0.0
    %1662 = vmatprep.subr.mxu0 0.0
    %1663 = vmatpush1.msra.mxu0 0.0
    %1664 = vmatprep.subr.mxu0 0.0
    %1665 = vmatpush1.msra.mxu0 0.0
    %1666 = vmatprep.subr.mxu0 0.0
    %1667 = vmatpush1.msra.mxu0 0.0
    %1668 = vmatprep.subr.mxu0 0.0
    %1669 = vmatpush1.msra.mxu0 0.0
    %1670 = vmatprep.subr.mxu0 0.0
    %1671 = vmatpush1.msra.mxu0 0.0
    %1672 = vmatprep.subr.mxu0 0.0
    %1673 = vmatpush1.msra.mxu0 0.0
    %1674 = vmatprep.subr.mxu0 0.0
    %1675 = vmatpush1.msra.mxu0 0.0
    %1676 = vmatprep.subr.mxu0 0.0
    %1677 = vmatpush1.msra.mxu0 0.0
    %1678 = vmatprep.subr.mxu0 0.0
    %1679 = vmatpush1.msra.mxu0 0.0
    %1680 = vmatprep.subr.mxu0 0.0
    %1681 = vmatpush1.msra.mxu0 0.0
    %1682 = vmatprep.subr.mxu0 0.0
    %1683 = vmatpush1.msra.mxu0 0.0
    %1684 = vmatprep.subr.mxu0 0.0
    %1685 = vmatpush1.msra.mxu0 0.0
    %1686 = vmatprep.mubr.f32.mxu0 0.0
    %1687 = vmatmul.mubr.f32.gmra.mrb[0].mxu0 %v1620
    %v1688 = vpop.f32.mrb[0].mxu0
    %v1689 = vadd.f32 0.0, %v1688
    %v1690 = vpop.f32.mrb[0].mxu0
    %1691 = vdwg.mxu0
    %v1693 = vrot.slane %v1689, 6
    %v1695 = vadd.f32 %v1537, %v1693
    %v1696 = vxor.u32 %v1616, 2147483648
    %v1697 = vmul.f32 %v1696, 1.442695
    %v1698 = vpow.pop %v1697
    %v1699 = vadd.f32 %v1698, 1.0
    %v1700 = vrcp.pop %v1699
    %v1701 = vmul.f32 1.0, %v1700
    %v1702 = vtanh.pop %v1616
    %v1703 = vxor.u32 %v1695, 2147483648
    %v1704 = vmul.f32 %v1703, 1.442695
    %v1705 = vpow.pop %v1704
    %v1706 = vadd.f32 %v1705, 1.0
    %v1707 = vrcp.pop %v1706
    %v1708 = vmul.f32 1.0, %v1707
    %v1709 = vtanh.pop %v1695
    %v1711 = vrot.slane %v1499, 6
    %v1713 = vmul.f32 %v1701, %v1711
    %1715 = vrot.lane.b32.xlu0 %v1702, 64
    %v1716 = vpop.permute.xlu0 %1715
    %v1718 = vmul.f32 %v1701, %v1716
    %1720 = vrot.lane.b32.xlu0 %v1718, 32
    %v1721 = vpop.permute.xlu0 %1720
    %v1723 = vadd.f32 %v1713, %v1721
    %v1724 = vtanh.pop %v1723
    %1726 = vrot.lane.b32.xlu0 %v1724, 64
    %v1727 = vpop.permute.xlu0 %1726
    %v1729 = vmul.f32 %v1701, %v1727
    %v1731 = vrot.slane %v1519, 2
    %v1733 = vmul.f32 %v1708, %v1731
    %1735 = vrot.lane.b32.xlu0 %v1709, 64
    %v1736 = vpop.permute.xlu0 %1735
    %v1738 = vmul.f32 %v1708, %v1736
    %1740 = vrot.lane.b32.xlu0 %v1738, 32
    %v1741 = vpop.permute.xlu0 %1740
    %v1743 = vadd.f32 %v1733, %v1741
    %v1744 = vtanh.pop %v1743
    %1746 = vrot.lane.b32.xlu0 %v1744, 64
    %v1747 = vpop.permute.xlu0 %1746
    %v1749 = vmul.f32 %v1708, %v1747
    %1751 = vrot.lane.b32.xlu0 %v1729, 32
    %v1752 = vpop.permute.xlu0 %1751
    %1754 = vst.msk [vmem:[#allocation2 + $0x8] sm:$0x30] %vm864, %v1752
    %1756 = vrot.lane.b32.xlu0 %v1749, 64
    %v1757 = vpop.permute.xlu0 %1756
    %1759 = vst.msk [vmem:[#allocation2] sm:$0xc] %vm870, %v1757
    %v1760 = vld [vmem:[#allocation3 + $0x10] sm:$0xc0]
    %v1761 = vld [vmem:[#allocation3 + $0x8] sm:$0x3]
    %v1762 = vrot.slane %v1729, 4
    %1763 = vrot.lane.b32.xlu0 %v1762, 32
    %v1764 = vpop.permute.xlu0 %1763
    %v1765 = vsel %vm214, %v1764, 0
    %1767 = vmatprep.subr.mxu0 0.0
    %1768 = vmatpush1.msra.mxu0 %v103
    %1769 = vmatprep.subr.mxu0 0.0
    %1770 = vmatpush1.msra.mxu0 %v104
    %1771 = vmatprep.subr.mxu0 0.0
    %1772 = vmatpush1.msra.mxu0 %v105
    %1773 = vmatprep.subr.mxu0 0.0
    %1774 = vmatpush1.msra.mxu0 %v106
    %1775 = vmatprep.subr.mxu0 0.0
    %1776 = vmatpush1.msra.mxu0 0.0
    %1777 = vmatprep.subr.mxu0 0.0
    %1778 = vmatpush1.msra.mxu0 0.0
    %1779 = vmatprep.subr.mxu0 0.0
    %1780 = vmatpush1.msra.mxu0 0.0
    %1781 = vmatprep.subr.mxu0 0.0
    %1782 = vmatpush1.msra.mxu0 0.0
    %1783 = vmatprep.subr.mxu0 0.0
    %1784 = vmatpush1.msra.mxu0 0.0
    %1785 = vmatprep.subr.mxu0 0.0
    %1786 = vmatpush1.msra.mxu0 0.0
    %1787 = vmatprep.subr.mxu0 0.0
    %1788 = vmatpush1.msra.mxu0 0.0
    %1789 = vmatprep.subr.mxu0 0.0
    %1790 = vmatpush1.msra.mxu0 0.0
    %1791 = vmatprep.subr.mxu0 0.0
    %1792 = vmatpush1.msra.mxu0 0.0
    %1793 = vmatprep.subr.mxu0 0.0
    %1794 = vmatpush1.msra.mxu0 0.0
    %1795 = vmatprep.subr.mxu0 0.0
    %1796 = vmatpush1.msra.mxu0 0.0
    %1797 = vmatprep.subr.mxu0 0.0
    %1798 = vmatpush1.msra.mxu0 0.0
    %1799 = vmatprep.subr.mxu0 0.0
    %1800 = vmatpush1.msra.mxu0 0.0
    %1801 = vmatprep.subr.mxu0 0.0
    %1802 = vmatpush1.msra.mxu0 0.0
    %1803 = vmatprep.subr.mxu0 0.0
    %1804 = vmatpush1.msra.mxu0 0.0
    %1805 = vmatprep.subr.mxu0 0.0
    %1806 = vmatpush1.msra.mxu0 0.0
    %1807 = vmatprep.subr.mxu0 0.0
    %1808 = vmatpush1.msra.mxu0 0.0
    %1809 = vmatprep.subr.mxu0 0.0
    %1810 = vmatpush1.msra.mxu0 0.0
    %1811 = vmatprep.subr.mxu0 0.0
    %1812 = vmatpush1.msra.mxu0 0.0
    %1813 = vmatprep.subr.mxu0 0.0
    %1814 = vmatpush1.msra.mxu0 0.0
    %1815 = vmatprep.subr.mxu0 0.0
    %1816 = vmatpush1.msra.mxu0 0.0
    %1817 = vmatprep.subr.mxu0 0.0
    %1818 = vmatpush1.msra.mxu0 0.0
    %1819 = vmatprep.subr.mxu0 0.0
    %1820 = vmatpush1.msra.mxu0 0.0
    %1821 = vmatprep.subr.mxu0 0.0
    %1822 = vmatpush1.msra.mxu0 0.0
    %1823 = vmatprep.subr.mxu0 0.0
    %1824 = vmatpush1.msra.mxu0 0.0
    %1825 = vmatprep.subr.mxu0 0.0
    %1826 = vmatpush1.msra.mxu0 0.0
    %1827 = vmatprep.subr.mxu0 0.0
    %1828 = vmatpush1.msra.mxu0 0.0
    %1829 = vmatprep.subr.mxu0 0.0
    %1830 = vmatpush1.msra.mxu0 0.0
    %1831 = vmatprep.mubr.f32.mxu0 0.0
    %1832 = vmatmul.mubr.f32.gmra.mrb[0].mxu0 %v1765
    %v1833 = vpop.f32.mrb[0].mxu0
    %v1834 = vadd.f32 0.0, %v1833
    %v1835 = vpop.f32.mrb[0].mxu0
    %1836 = vdwg.mxu0
    %v1838 = vrot.slane %v1834, 2
    %v1840 = vadd.f32 %v1760, %v1838
    %v1841 = vrot.slane %v1749, 2
    %1842 = vrot.lane.b32.xlu0 %v1841, 32
    %v1843 = vpop.permute.xlu0 %1842
    %v1844 = vsel %vm214, %v1843, 0
    %1846 = vmatprep.subr.mxu0 0.0
    %1847 = vmatpush1.msra.mxu0 %v107
    %1848 = vmatprep.subr.mxu0 0.0
    %1849 = vmatpush1.msra.mxu0 %v108
    %1850 = vmatprep.subr.mxu0 0.0
    %1851 = vmatpush1.msra.mxu0 %v109
    %1852 = vmatprep.subr.mxu0 0.0
    %1853 = vmatpush1.msra.mxu0 %v110
    %1854 = vmatprep.subr.mxu0 0.0
    %1855 = vmatpush1.msra.mxu0 0.0
    %1856 = vmatprep.subr.mxu0 0.0
    %1857 = vmatpush1.msra.mxu0 0.0
    %1858 = vmatprep.subr.mxu0 0.0
    %1859 = vmatpush1.msra.mxu0 0.0
    %1860 = vmatprep.subr.mxu0 0.0
    %1861 = vmatpush1.msra.mxu0 0.0
    %1862 = vmatprep.subr.mxu0 0.0
    %1863 = vmatpush1.msra.mxu0 0.0
    %1864 = vmatprep.subr.mxu0 0.0
    %1865 = vmatpush1.msra.mxu0 0.0
    %1866 = vmatprep.subr.mxu0 0.0
    %1867 = vmatpush1.msra.mxu0 0.0
    %1868 = vmatprep.subr.mxu0 0.0
    %1869 = vmatpush1.msra.mxu0 0.0
    %1870 = vmatprep.subr.mxu0 0.0
    %1871 = vmatpush1.msra.mxu0 0.0
    %1872 = vmatprep.subr.mxu0 0.0
    %1873 = vmatpush1.msra.mxu0 0.0
    %1874 = vmatprep.subr.mxu0 0.0
    %1875 = vmatpush1.msra.mxu0 0.0
    %1876 = vmatprep.subr.mxu0 0.0
    %1877 = vmatpush1.msra.mxu0 0.0
    %1878 = vmatprep.subr.mxu0 0.0
    %1879 = vmatpush1.msra.mxu0 0.0
    %1880 = vmatprep.subr.mxu0 0.0
    %1881 = vmatpush1.msra.mxu0 0.0
    %1882 = vmatprep.subr.mxu0 0.0
    %1883 = vmatpush1.msra.mxu0 0.0
    %1884 = vmatprep.subr.mxu0 0.0
    %1885 = vmatpush1.msra.mxu0 0.0
    %1886 = vmatprep.subr.mxu0 0.0
    %1887 = vmatpush1.msra.mxu0 0.0
    %1888 = vmatprep.subr.mxu0 0.0
    %1889 = vmatpush1.msra.mxu0 0.0
    %1890 = vmatprep.subr.mxu0 0.0
    %1891 = vmatpush1.msra.mxu0 0.0
    %1892 = vmatprep.subr.mxu0 0.0
    %1893 = vmatpush1.msra.mxu0 0.0
    %1894 = vmatprep.subr.mxu0 0.0
    %1895 = vmatpush1.msra.mxu0 0.0
    %1896 = vmatprep.subr.mxu0 0.0
    %1897 = vmatpush1.msra.mxu0 0.0
    %1898 = vmatprep.subr.mxu0 0.0
    %1899 = vmatpush1.msra.mxu0 0.0
    %1900 = vmatprep.subr.mxu0 0.0
    %1901 = vmatpush1.msra.mxu0 0.0
    %1902 = vmatprep.subr.mxu0 0.0
    %1903 = vmatpush1.msra.mxu0 0.0
    %1904 = vmatprep.subr.mxu0 0.0
    %1905 = vmatpush1.msra.mxu0 0.0
    %1906 = vmatprep.subr.mxu0 0.0
    %1907 = vmatpush1.msra.mxu0 0.0
    %1908 = vmatprep.subr.mxu0 0.0
    %1909 = vmatpush1.msra.mxu0 0.0
    %1910 = vmatprep.mubr.f32.mxu0 0.0
    %1911 = vmatmul.mubr.f32.gmra.mrb[0].mxu0 %v1844
    %v1912 = vpop.f32.mrb[0].mxu0
    %v1913 = vadd.f32 0.0, %v1912
    %v1914 = vpop.f32.mrb[0].mxu0
    %1915 = vdwg.mxu0
    %v1916 = vadd.f32 %v1761, %v1913
    %v1917 = vxor.u32 %v1840, 2147483648
    %v1918 = vmul.f32 %v1917, 1.442695
    %v1919 = vpow.pop %v1918
    %v1920 = vadd.f32 %v1919, 1.0
    %v1921 = vrcp.pop %v1920
    %v1922 = vmul.f32 1.0, %v1921
    %v1923 = vtanh.pop %v1840
    %v1924 = vxor.u32 %v1916, 2147483648
    %v1925 = vmul.f32 %v1924, 1.442695
    %v1926 = vpow.pop %v1925
    %v1927 = vadd.f32 %v1926, 1.0
    %v1928 = vrcp.pop %v1927
    %v1929 = vmul.f32 1.0, %v1928
    %v1930 = vtanh.pop %v1916
    %v1932 = vrot.slane %v1723, 6
    %v1934 = vmul.f32 %v1922, %v1932
    %1936 = vrot.lane.b32.xlu0 %v1923, 64
    %v1937 = vpop.permute.xlu0 %1936
    %v1939 = vmul.f32 %v1922, %v1937
    %1941 = vrot.lane.b32.xlu0 %v1939, 32
    %v1942 = vpop.permute.xlu0 %1941
    %v1944 = vadd.f32 %v1934, %v1942
    %v1945 = vtanh.pop %v1944
    %1947 = vrot.lane.b32.xlu0 %v1945, 64
    %v1948 = vpop.permute.xlu0 %1947
    %v1950 = vmul.f32 %v1922, %v1948
    %v1952 = vrot.slane %v1743, 2
    %v1954 = vmul.f32 %v1929, %v1952
    %1956 = vrot.lane.b32.xlu0 %v1930, 64
    %v1957 = vpop.permute.xlu0 %1956
    %v1959 = vmul.f32 %v1929, %v1957
    %1961 = vrot.lane.b32.xlu0 %v1959, 32
    %v1962 = vpop.permute.xlu0 %1961
    %v1964 = vadd.f32 %v1954, %v1962
    %v1965 = vtanh.pop %v1964
    %1967 = vrot.lane.b32.xlu0 %v1965, 64
    %v1968 = vpop.permute.xlu0 %1967
    %v1970 = vmul.f32 %v1929, %v1968
    %1972 = vrot.lane.b32.xlu0 %v1950, 32
    %v1973 = vpop.permute.xlu0 %1972
    %1975 = vst.msk [vmem:[#allocation2 + $0x8] sm:$0xc0] %vm1087, %v1973
    %1977 = vrot.lane.b32.xlu0 %v1970, 64
    %v1978 = vpop.permute.xlu0 %1977
    %1980 = vst.msk [vmem:[#allocation2] sm:$0x3] %vm1093, %v1978
    %v1981 = vld [vmem:[#allocation9] sm:$0xff]
    %v1982 = vld [vmem:[#allocation9 + $0x8] sm:$0xff]
    %v1983 = vld [vmem:[#allocation9 + $0x10] sm:$0xff]
    %v1984 = vld [vmem:[#allocation9 + $0x18] sm:$0xff]
    %v1985 = vld [vmem:[#allocation9 + $0x20] sm:$0xff]
    %v1986 = vld [vmem:[#allocation9 + $0x28] sm:$0xff]
    %v1987 = vld [vmem:[#allocation9 + $0x30] sm:$0xff]
    %v1988 = vld [vmem:[#allocation9 + $0x38] sm:$0xff]
    %v1989 = vld [vmem:[#allocation9 + $0x40] sm:$0xff]
    %v1990 = vld [vmem:[#allocation9 + $0x48] sm:$0xff]
    %v1991 = vld [vmem:[#allocation9 + $0x50] sm:$0xff]
    %v1992 = vld [vmem:[#allocation9 + $0x58] sm:$0xff]
    %v1993 = vld [vmem:[#allocation9 + $0x60] sm:$0xff]
    %v1994 = vld [vmem:[#allocation9 + $0x68] sm:$0xff]
    %v1995 = vld [vmem:[#allocation9 + $0x70] sm:$0xff]
    %v1996 = vld [vmem:[#allocation9 + $0x78] sm:$0xff]
    %v1997 = vld [vmem:[%s7] sm:$0x3]
    %v1998 = vld [vmem:[%s8] sm:$0xff]
    %v1999 = vld [vmem:[%s8 + $0x8] sm:$0xff]
    %v2000 = vld [vmem:[%s8 + $0x10] sm:$0xff]
    %v2001 = vld [vmem:[%s8 + $0x18] sm:$0xff]
    %v2002 = vld [vmem:[#allocation11] sm:$0xff]
    %v2003 = vld [vmem:[#allocation11 + $0x8] sm:$0xff]
    %v2004 = vld [vmem:[#allocation11 + $0x10] sm:$0xff]
    %v2005 = vld [vmem:[#allocation11 + $0x18] sm:$0xff]
    %v2006 = vld [vmem:[#allocation2] sm:$0xff]
    %v2007 = vld [vmem:[#allocation2 + $0x8] sm:$0xff]
    %v2009 = vlaneseq
    %v2010 = vshrl.u32 %v2009, 7
    %v2011 = vsub.s32 0, %v2010
    %v2012 = vrot.slane %v1997, %v2011
    %v2013 = vlaneseq
    %v2014 = vshrl.u32 %v2013, 7
    %v2015 = vsub.s32 1, %v2014
    %v2016 = vrot.slane %v1997, %v2015
    %vm2019 = vcmask 523264
    %v2021 = vsel %vm2019, %v2006, 0
    %v2024 = vsel %vm2019, %v2007, 0
    %2026 = vmatprep.subr.mxu0 %v1982
    %2027 = vmatpush1.msra.mxu0 %v1981
    %2028 = vmatprep.subr.mxu0 %v1984
    %2029 = vmatpush1.msra.mxu0 %v1983
    %2030 = vmatprep.subr.mxu0 %v1986
    %2031 = vmatpush1.msra.mxu0 %v1985
    %2032 = vmatprep.subr.mxu0 %v1988
    %2033 = vmatpush1.msra.mxu0 %v1987
    %2034 = vmatprep.subr.mxu0 %v1990
    %2035 = vmatpush1.msra.mxu0 %v1989
    %2036 = vmatprep.subr.mxu0 %v1992
    %2037 = vmatpush1.msra.mxu0 %v1991
    %2038 = vmatprep.subr.mxu0 %v1994
    %2039 = vmatpush1.msra.mxu0 %v1993
    %2040 = vmatprep.subr.mxu0 %v1996
    %2041 = vmatpush1.msra.mxu0 %v1995
    %2042 = vmatprep.subr.mxu0 0.0
    %2043 = vmatpush1.msra.mxu0 0.0
    %2044 = vmatprep.subr.mxu0 0.0
    %2045 = vmatpush1.msra.mxu0 0.0
    %2046 = vmatprep.subr.mxu0 0.0
    %2047 = vmatpush1.msra.mxu0 0.0
    %2048 = vmatprep.subr.mxu0 0.0
    %2049 = vmatpush1.msra.mxu0 0.0
    %2050 = vmatprep.subr.mxu0 0.0
    %2051 = vmatpush1.msra.mxu0 0.0
    %2052 = vmatprep.subr.mxu0 0.0
    %2053 = vmatpush1.msra.mxu0 0.0
    %2054 = vmatprep.subr.mxu0 0.0
    %2055 = vmatpush1.msra.mxu0 0.0
    %2056 = vmatprep.subr.mxu0 0.0
    %2057 = vmatpush1.msra.mxu0 0.0
    %2058 = vmatprep.subr.mxu0 0.0
    %2059 = vmatpush1.msra.mxu0 0.0
    %2060 = vmatprep.subr.mxu0 0.0
    %2061 = vmatpush1.msra.mxu0 0.0
    %2062 = vmatprep.subr.mxu0 0.0
    %2063 = vmatpush1.msra.mxu0 0.0
    %2064 = vmatprep.subr.mxu0 0.0
    %2065 = vmatpush1.msra.mxu0 0.0
    %2066 = vmatprep.subr.mxu0 0.0
    %2067 = vmatpush1.msra.mxu0 0.0
    %2068 = vmatprep.subr.mxu0 0.0
    %2069 = vmatpush1.msra.mxu0 0.0
    %2070 = vmatprep.subr.mxu0 0.0
    %2071 = vmatpush1.msra.mxu0 0.0
    %2072 = vmatprep.subr.mxu0 0.0
    %2073 = vmatpush1.msra.mxu0 0.0
    %2074 = vmatprep.subr.mxu0 0.0
    %2075 = vmatpush1.msra.mxu0 0.0
    %2076 = vmatprep.subr.mxu0 0.0
    %2077 = vmatpush1.msra.mxu0 0.0
    %2078 = vmatprep.subr.mxu0 0.0
    %2079 = vmatpush1.msra.mxu0 0.0
    %2080 = vmatprep.subr.mxu0 0.0
    %2081 = vmatpush1.msra.mxu0 0.0
    %2082 = vmatprep.subr.mxu0 0.0
    %2083 = vmatpush1.msra.mxu0 0.0
    %2084 = vmatprep.subr.mxu0 0.0
    %2085 = vmatpush1.msra.mxu0 0.0
    %2086 = vmatprep.subr.mxu0 0.0
    %2087 = vmatpush1.msra.mxu0 0.0
    %2088 = vmatprep.subr.mxu0 0.0
    %2089 = vmatpush1.msra.mxu0 0.0
    %2090 = vmatprep.mubr.f32.mxu0 0.0
    %2091 = vmatmul.mubr.f32.gmra.mrb[0].mxu0 %v2021
    %v2092 = vpop.f32.mrb[0].mxu0
    %v2093 = vadd.f32 %v2012, %v2092
    %v2094 = vpop.f32.mrb[0].mxu0
    %v2095 = vadd.f32 %v2016, %v2094
    %2096 = vmatprep.mubr.f32.mxu0 0.0
    %2097 = vmatmul.mubr.f32.gmra.mrb[0].mxu0 %v2024
    %v2098 = vpop.f32.mrb[0].mxu0
    %v2099 = vadd.f32 %v2012, %v2098
    %v2100 = vpop.f32.mrb[0].mxu0
    %v2101 = vadd.f32 %v2016, %v2100
    %2102 = vdwg.mxu0
    %2103 = vst [vmem:[#allocation3] sm:$0xff] %v2093
    %2104 = vst [vmem:[#allocation3 + $0x8] sm:$0xff] %v2095
    %2105 = vst [vmem:[#allocation3 + $0x10] sm:$0xff] %v2099
    %2106 = vst [vmem:[#allocation3 + $0x18] sm:$0xff] %v2101
    %v2107 = vld [vmem:[#allocation3] sm:$0x3]
    %v2108 = vld [vmem:[#allocation3 + $0x18] sm:$0xc0]
    %2109 = vmatprep.subr.mxu0 0.0
    %2110 = vmatpush1.msra.mxu0 %v1998
    %2111 = vmatprep.subr.mxu0 0.0
    %2112 = vmatpush1.msra.mxu0 %v1999
    %2113 = vmatprep.subr.mxu0 0.0
    %2114 = vmatpush1.msra.mxu0 %v2000
    %2115 = vmatprep.subr.mxu0 0.0
    %2116 = vmatpush1.msra.mxu0 %v2001
    %2117 = vmatprep.subr.mxu0 0.0
    %2118 = vmatpush1.msra.mxu0 0.0
    %2119 = vmatprep.subr.mxu0 0.0
    %2120 = vmatpush1.msra.mxu0 0.0
    %2121 = vmatprep.subr.mxu0 0.0
    %2122 = vmatpush1.msra.mxu0 0.0
    %2123 = vmatprep.subr.mxu0 0.0
    %2124 = vmatpush1.msra.mxu0 0.0
    %2125 = vmatprep.subr.mxu0 0.0
    %2126 = vmatpush1.msra.mxu0 0.0
    %2127 = vmatprep.subr.mxu0 0.0
    %2128 = vmatpush1.msra.mxu0 0.0
    %2129 = vmatprep.subr.mxu0 0.0
    %2130 = vmatpush1.msra.mxu0 0.0
    %2131 = vmatprep.subr.mxu0 0.0
    %2132 = vmatpush1.msra.mxu0 0.0
    %2133 = vmatprep.subr.mxu0 0.0
    %2134 = vmatpush1.msra.mxu0 0.0
    %2135 = vmatprep.subr.mxu0 0.0
    %2136 = vmatpush1.msra.mxu0 0.0
    %2137 = vmatprep.subr.mxu0 0.0
    %2138 = vmatpush1.msra.mxu0 0.0
    %2139 = vmatprep.subr.mxu0 0.0
    %2140 = vmatpush1.msra.mxu0 0.0
    %2141 = vmatprep.subr.mxu0 0.0
    %2142 = vmatpush1.msra.mxu0 0.0
    %2143 = vmatprep.subr.mxu0 0.0
    %2144 = vmatpush1.msra.mxu0 0.0
    %2145 = vmatprep.subr.mxu0 0.0
    %2146 = vmatpush1.msra.mxu0 0.0
    %2147 = vmatprep.subr.mxu0 0.0
    %2148 = vmatpush1.msra.mxu0 0.0
    %2149 = vmatprep.subr.mxu0 0.0
    %2150 = vmatpush1.msra.mxu0 0.0
    %2151 = vmatprep.subr.mxu0 0.0
    %2152 = vmatpush1.msra.mxu0 0.0
    %2153 = vmatprep.subr.mxu0 0.0
    %2154 = vmatpush1.msra.mxu0 0.0
    %2155 = vmatprep.subr.mxu0 0.0
    %2156 = vmatpush1.msra.mxu0 0.0
    %2157 = vmatprep.subr.mxu0 0.0
    %2158 = vmatpush1.msra.mxu0 0.0
    %2159 = vmatprep.subr.mxu0 0.0
    %2160 = vmatpush1.msra.mxu0 0.0
    %2161 = vmatprep.subr.mxu0 0.0
    %2162 = vmatpush1.msra.mxu0 0.0
    %2163 = vmatprep.subr.mxu0 0.0
    %2164 = vmatpush1.msra.mxu0 0.0
    %2165 = vmatprep.subr.mxu0 0.0
    %2166 = vmatpush1.msra.mxu0 0.0
    %2167 = vmatprep.subr.mxu0 0.0
    %2168 = vmatpush1.msra.mxu0 0.0
    %2169 = vmatprep.subr.mxu0 0.0
    %2170 = vmatpush1.msra.mxu0 0.0
    %2171 = vmatprep.subr.mxu0 0.0
    %2172 = vmatpush1.msra.mxu0 0.0
    %2173 = vmatprep.mubr.f32.mxu0 0.0
    %2174 = vmatmul.mubr.f32.gmra.mrb[0].mxu0 %v216
    %v2175 = vpop.f32.mrb[0].mxu0
    %v2176 = vadd.f32 0.0, %v2175
    %v2177 = vpop.f32.mrb[0].mxu0
    %2178 = vdwg.mxu0
    %v2179 = vadd.f32 %v2107, %v2176
    %2180 = vmatprep.subr.mxu0 0.0
    %2181 = vmatpush1.msra.mxu0 %v2002
    %2182 = vmatprep.subr.mxu0 0.0
    %2183 = vmatpush1.msra.mxu0 %v2003
    %2184 = vmatprep.subr.mxu0 0.0
    %2185 = vmatpush1.msra.mxu0 %v2004
    %2186 = vmatprep.subr.mxu0 0.0
    %2187 = vmatpush1.msra.mxu0 %v2005
    %2188 = vmatprep.subr.mxu0 0.0
    %2189 = vmatpush1.msra.mxu0 0.0
    %2190 = vmatprep.subr.mxu0 0.0
    %2191 = vmatpush1.msra.mxu0 0.0
    %2192 = vmatprep.subr.mxu0 0.0
    %2193 = vmatpush1.msra.mxu0 0.0
    %2194 = vmatprep.subr.mxu0 0.0
    %2195 = vmatpush1.msra.mxu0 0.0
    %2196 = vmatprep.subr.mxu0 0.0
    %2197 = vmatpush1.msra.mxu0 0.0
    %2198 = vmatprep.subr.mxu0 0.0
    %2199 = vmatpush1.msra.mxu0 0.0
    %2200 = vmatprep.subr.mxu0 0.0
    %2201 = vmatpush1.msra.mxu0 0.0
    %2202 = vmatprep.subr.mxu0 0.0
    %2203 = vmatpush1.msra.mxu0 0.0
    %2204 = vmatprep.subr.mxu0 0.0
    %2205 = vmatpush1.msra.mxu0 0.0
    %2206 = vmatprep.subr.mxu0 0.0
    %2207 = vmatpush1.msra.mxu0 0.0
    %2208 = vmatprep.subr.mxu0 0.0
    %2209 = vmatpush1.msra.mxu0 0.0
    %2210 = vmatprep.subr.mxu0 0.0
    %2211 = vmatpush1.msra.mxu0 0.0
    %2212 = vmatprep.subr.mxu0 0.0
    %2213 = vmatpush1.msra.mxu0 0.0
    %2214 = vmatprep.subr.mxu0 0.0
    %2215 = vmatpush1.msra.mxu0 0.0
    %2216 = vmatprep.subr.mxu0 0.0
    %2217 = vmatpush1.msra.mxu0 0.0
    %2218 = vmatprep.subr.mxu0 0.0
    %2219 = vmatpush1.msra.mxu0 0.0
    %2220 = vmatprep.subr.mxu0 0.0
    %2221 = vmatpush1.msra.mxu0 0.0
    %2222 = vmatprep.subr.mxu0 0.0
    %2223 = vmatpush1.msra.mxu0 0.0
    %2224 = vmatprep.subr.mxu0 0.0
    %2225 = vmatpush1.msra.mxu0 0.0
    %2226 = vmatprep.subr.mxu0 0.0
    %2227 = vmatpush1.msra.mxu0 0.0
    %2228 = vmatprep.subr.mxu0 0.0
    %2229 = vmatpush1.msra.mxu0 0.0
    %2230 = vmatprep.subr.mxu0 0.0
    %2231 = vmatpush1.msra.mxu0 0.0
    %2232 = vmatprep.subr.mxu0 0.0
    %2233 = vmatpush1.msra.mxu0 0.0
    %2234 = vmatprep.subr.mxu0 0.0
    %2235 = vmatpush1.msra.mxu0 0.0
    %2236 = vmatprep.subr.mxu0 0.0
    %2237 = vmatpush1.msra.mxu0 0.0
    %2238 = vmatprep.subr.mxu0 0.0
    %2239 = vmatpush1.msra.mxu0 0.0
    %2240 = vmatprep.subr.mxu0 0.0
    %2241 = vmatpush1.msra.mxu0 0.0
    %2242 = vmatprep.subr.mxu0 0.0
    %2243 = vmatpush1.msra.mxu0 0.0
    %2244 = vmatprep.mubr.f32.mxu0 0.0
    %2245 = vmatmul.mubr.f32.gmra.mrb[0].mxu0 %v216
    %v2246 = vpop.f32.mrb[0].mxu0
    %v2247 = vadd.f32 0.0, %v2246
    %v2248 = vpop.f32.mrb[0].mxu0
    %2249 = vdwg.mxu0
    %v2251 = vrot.slane %v2247, 2
    %v2253 = vadd.f32 %v2108, %v2251
    %v2254 = vxor.u32 %v2179, 2147483648
    %v2255 = vmul.f32 %v2254, 1.442695
    %v2256 = vpow.pop %v2255
    %v2257 = vadd.f32 %v2256, 1.0
    %v2258 = vrcp.pop %v2257
    %v2259 = vmul.f32 1.0, %v2258
    %v2260 = vtanh.pop %v2179
    %v2261 = vxor.u32 %v2253, 2147483648
    %v2262 = vmul.f32 %v2261, 1.442695
    %v2263 = vpow.pop %v2262
    %v2264 = vadd.f32 %v2263, 1.0
    %v2265 = vrcp.pop %v2264
    %v2266 = vmul.f32 1.0, %v2265
    %v2267 = vtanh.pop %v2253
    %v2268 = vmul.f32 %v2259, 0.0
    %2270 = vrot.lane.b32.xlu0 %v2260, 64
    %v2271 = vpop.permute.xlu0 %2270
    %v2273 = vmul.f32 %v2259, %v2271
    %2275 = vrot.lane.b32.xlu0 %v2273, 32
    %v2276 = vpop.permute.xlu0 %2275
    %v2278 = vadd.f32 %v2268, %v2276
    %v2279 = vtanh.pop %v2278
    %2281 = vrot.lane.b32.xlu0 %v2279, 64
    %v2282 = vpop.permute.xlu0 %2281
    %v2284 = vmul.f32 %v2259, %v2282
    %v2285 = vmul.f32 %v2266, 0.0
    %2287 = vrot.lane.b32.xlu0 %v2267, 64
    %v2288 = vpop.permute.xlu0 %2287
    %v2290 = vmul.f32 %v2266, %v2288
    %2292 = vrot.lane.b32.xlu0 %v2290, 32
    %v2293 = vpop.permute.xlu0 %2292
    %v2295 = vadd.f32 %v2285, %v2293
    %v2296 = vtanh.pop %v2295
    %2298 = vrot.lane.b32.xlu0 %v2296, 64
    %v2299 = vpop.permute.xlu0 %2298
    %v2301 = vmul.f32 %v2266, %v2299
    %2303 = vrot.lane.b32.xlu0 %v2284, 32
    %v2304 = vpop.permute.xlu0 %2303
    %2306 = vst.msk [vmem:[%s10] sm:$0x3] %vm415, %v2304
    %2308 = vrot.lane.b32.xlu0 %v2301, 64
    %v2309 = vpop.permute.xlu0 %2308
    %2311 = vst.msk [vmem:[%s10 + $0x8] sm:$0xc0] %vm421, %v2309
    %2313 = vrot.lane.b32.xlu0 %v99, 64
    %v2314 = vpop.permute.xlu0 %2313
    %vm2316 = vcmask 648704
    %2317 = vst.msk [vmem:[%s10] sm:$0x3] %vm2316, %v2314
    %v2318 = vld [vmem:[#allocation3] sm:$0xc]
    %v2319 = vld [vmem:[#allocation3 + $0x18] sm:$0x30]
    %v2320 = vsel %vm214, %v2304, 0
    %2322 = vmatprep.subr.mxu0 0.0
    %2323 = vmatpush1.msra.mxu0 %v1998
    %2324 = vmatprep.subr.mxu0 0.0
    %2325 = vmatpush1.msra.mxu0 %v1999
    %2326 = vmatprep.subr.mxu0 0.0
    %2327 = vmatpush1.msra.mxu0 %v2000
    %2328 = vmatprep.subr.mxu0 0.0
    %2329 = vmatpush1.msra.mxu0 %v2001
    %2330 = vmatprep.subr.mxu0 0.0
    %2331 = vmatpush1.msra.mxu0 0.0
    %2332 = vmatprep.subr.mxu0 0.0
    %2333 = vmatpush1.msra.mxu0 0.0
    %2334 = vmatprep.subr.mxu0 0.0
    %2335 = vmatpush1.msra.mxu0 0.0
    %2336 = vmatprep.subr.mxu0 0.0
    %2337 = vmatpush1.msra.mxu0 0.0
    %2338 = vmatprep.subr.mxu0 0.0
    %2339 = vmatpush1.msra.mxu0 0.0
    %2340 = vmatprep.subr.mxu0 0.0
    %2341 = vmatpush1.msra.mxu0 0.0
    %2342 = vmatprep.subr.mxu0 0.0
    %2343 = vmatpush1.msra.mxu0 0.0
    %2344 = vmatprep.subr.mxu0 0.0
    %2345 = vmatpush1.msra.mxu0 0.0
    %2346 = vmatprep.subr.mxu0 0.0
    %2347 = vmatpush1.msra.mxu0 0.0
    %2348 = vmatprep.subr.mxu0 0.0
    %2349 = vmatpush1.msra.mxu0 0.0
    %2350 = vmatprep.subr.mxu0 0.0
    %2351 = vmatpush1.msra.mxu0 0.0
    %2352 = vmatprep.subr.mxu0 0.0
    %2353 = vmatpush1.msra.mxu0 0.0
    %2354 = vmatprep.subr.mxu0 0.0
    %2355 = vmatpush1.msra.mxu0 0.0
    %2356 = vmatprep.subr.mxu0 0.0
    %2357 = vmatpush1.msra.mxu0 0.0
    %2358 = vmatprep.subr.mxu0 0.0
    %2359 = vmatpush1.msra.mxu0 0.0
    %2360 = vmatprep.subr.mxu0 0.0
    %2361 = vmatpush1.msra.mxu0 0.0
    %2362 = vmatprep.subr.mxu0 0.0
    %2363 = vmatpush1.msra.mxu0 0.0
    %2364 = vmatprep.subr.mxu0 0.0
    %2365 = vmatpush1.msra.mxu0 0.0
    %2366 = vmatprep.subr.mxu0 0.0
    %2367 = vmatpush1.msra.mxu0 0.0
    %2368 = vmatprep.subr.mxu0 0.0
    %2369 = vmatpush1.msra.mxu0 0.0
    %2370 = vmatprep.subr.mxu0 0.0
    %2371 = vmatpush1.msra.mxu0 0.0
    %2372 = vmatprep.subr.mxu0 0.0
    %2373 = vmatpush1.msra.mxu0 0.0
    %2374 = vmatprep.subr.mxu0 0.0
    %2375 = vmatpush1.msra.mxu0 0.0
    %2376 = vmatprep.subr.mxu0 0.0
    %2377 = vmatpush1.msra.mxu0 0.0
    %2378 = vmatprep.subr.mxu0 0.0
    %2379 = vmatpush1.msra.mxu0 0.0
    %2380 = vmatprep.subr.mxu0 0.0
    %2381 = vmatpush1.msra.mxu0 0.0
    %2382 = vmatprep.subr.mxu0 0.0
    %2383 = vmatpush1.msra.mxu0 0.0
    %2384 = vmatprep.subr.mxu0 0.0
    %2385 = vmatpush1.msra.mxu0 0.0
    %2386 = vmatprep.mubr.f32.mxu0 0.0
    %2387 = vmatmul.mubr.f32.gmra.mrb[0].mxu0 %v2320
    %v2388 = vpop.f32.mrb[0].mxu0
    %v2389 = vadd.f32 0.0, %v2388
    %v2390 = vpop.f32.mrb[0].mxu0
    %2391 = vdwg.mxu0
    %v2393 = vrot.slane %v2389, 6
    %v2395 = vadd.f32 %v2318, %v2393
    %v2396 = vrot.slane %v2301, 6
    %2397 = vrot.lane.b32.xlu0 %v2396, 32
    %v2398 = vpop.permute.xlu0 %2397
    %v2399 = vsel %vm214, %v2398, 0
    %2401 = vmatprep.subr.mxu0 0.0
    %2402 = vmatpush1.msra.mxu0 %v2002
    %2403 = vmatprep.subr.mxu0 0.0
    %2404 = vmatpush1.msra.mxu0 %v2003
    %2405 = vmatprep.subr.mxu0 0.0
    %2406 = vmatpush1.msra.mxu0 %v2004
    %2407 = vmatprep.subr.mxu0 0.0
    %2408 = vmatpush1.msra.mxu0 %v2005
    %2409 = vmatprep.subr.mxu0 0.0
    %2410 = vmatpush1.msra.mxu0 0.0
    %2411 = vmatprep.subr.mxu0 0.0
    %2412 = vmatpush1.msra.mxu0 0.0
    %2413 = vmatprep.subr.mxu0 0.0
    %2414 = vmatpush1.msra.mxu0 0.0
    %2415 = vmatprep.subr.mxu0 0.0
    %2416 = vmatpush1.msra.mxu0 0.0
    %2417 = vmatprep.subr.mxu0 0.0
    %2418 = vmatpush1.msra.mxu0 0.0
    %2419 = vmatprep.subr.mxu0 0.0
    %2420 = vmatpush1.msra.mxu0 0.0
    %2421 = vmatprep.subr.mxu0 0.0
    %2422 = vmatpush1.msra.mxu0 0.0
    %2423 = vmatprep.subr.mxu0 0.0
    %2424 = vmatpush1.msra.mxu0 0.0
    %2425 = vmatprep.subr.mxu0 0.0
    %2426 = vmatpush1.msra.mxu0 0.0
    %2427 = vmatprep.subr.mxu0 0.0
    %2428 = vmatpush1.msra.mxu0 0.0
    %2429 = vmatprep.subr.mxu0 0.0
    %2430 = vmatpush1.msra.mxu0 0.0
    %2431 = vmatprep.subr.mxu0 0.0
    %2432 = vmatpush1.msra.mxu0 0.0
    %2433 = vmatprep.subr.mxu0 0.0
    %2434 = vmatpush1.msra.mxu0 0.0
    %2435 = vmatprep.subr.mxu0 0.0
    %2436 = vmatpush1.msra.mxu0 0.0
    %2437 = vmatprep.subr.mxu0 0.0
    %2438 = vmatpush1.msra.mxu0 0.0
    %2439 = vmatprep.subr.mxu0 0.0
    %2440 = vmatpush1.msra.mxu0 0.0
    %2441 = vmatprep.subr.mxu0 0.0
    %2442 = vmatpush1.msra.mxu0 0.0
    %2443 = vmatprep.subr.mxu0 0.0
    %2444 = vmatpush1.msra.mxu0 0.0
    %2445 = vmatprep.subr.mxu0 0.0
    %2446 = vmatpush1.msra.mxu0 0.0
    %2447 = vmatprep.subr.mxu0 0.0
    %2448 = vmatpush1.msra.mxu0 0.0
    %2449 = vmatprep.subr.mxu0 0.0
    %2450 = vmatpush1.msra.mxu0 0.0
    %2451 = vmatprep.subr.mxu0 0.0
    %2452 = vmatpush1.msra.mxu0 0.0
    %2453 = vmatprep.subr.mxu0 0.0
    %2454 = vmatpush1.msra.mxu0 0.0
    %2455 = vmatprep.subr.mxu0 0.0
    %2456 = vmatpush1.msra.mxu0 0.0
    %2457 = vmatprep.subr.mxu0 0.0
    %2458 = vmatpush1.msra.mxu0 0.0
    %2459 = vmatprep.subr.mxu0 0.0
    %2460 = vmatpush1.msra.mxu0 0.0
    %2461 = vmatprep.subr.mxu0 0.0
    %2462 = vmatpush1.msra.mxu0 0.0
    %2463 = vmatprep.subr.mxu0 0.0
    %2464 = vmatpush1.msra.mxu0 0.0
    %2465 = vmatprep.mubr.f32.mxu0 0.0
    %2466 = vmatmul.mubr.f32.gmra.mrb[0].mxu0 %v2399
    %v2467 = vpop.f32.mrb[0].mxu0
    %v2468 = vadd.f32 0.0, %v2467
    %v2469 = vpop.f32.mrb[0].mxu0
    %2470 = vdwg.mxu0
    %v2472 = vrot.slane %v2468, 4
    %v2474 = vadd.f32 %v2319, %v2472
    %v2475 = vxor.u32 %v2395, 2147483648
    %v2476 = vmul.f32 %v2475, 1.442695
    %v2477 = vpow.pop %v2476
    %v2478 = vadd.f32 %v2477, 1.0
    %v2479 = vrcp.pop %v2478
    %v2480 = vmul.f32 1.0, %v2479
    %v2481 = vtanh.pop %v2395
    %v2482 = vxor.u32 %v2474, 2147483648
    %v2483 = vmul.f32 %v2482, 1.442695
    %v2484 = vpow.pop %v2483
    %v2485 = vadd.f32 %v2484, 1.0
    %v2486 = vrcp.pop %v2485
    %v2487 = vmul.f32 1.0, %v2486
    %v2488 = vtanh.pop %v2474
    %v2490 = vrot.slane %v2278, 6
    %v2492 = vmul.f32 %v2480, %v2490
    %2494 = vrot.lane.b32.xlu0 %v2481, 64
    %v2495 = vpop.permute.xlu0 %2494
    %v2497 = vmul.f32 %v2480, %v2495
    %2499 = vrot.lane.b32.xlu0 %v2497, 32
    %v2500 = vpop.permute.xlu0 %2499
    %v2502 = vadd.f32 %v2492, %v2500
    %v2503 = vtanh.pop %v2502
    %2505 = vrot.lane.b32.xlu0 %v2503, 64
    %v2506 = vpop.permute.xlu0 %2505
    %v2508 = vmul.f32 %v2480, %v2506
    %v2510 = vrot.slane %v2295, 2
    %v2512 = vmul.f32 %v2487, %v2510
    %2514 = vrot.lane.b32.xlu0 %v2488, 64
    %v2515 = vpop.permute.xlu0 %2514
    %v2517 = vmul.f32 %v2487, %v2515
    %2519 = vrot.lane.b32.xlu0 %v2517, 32
    %v2520 = vpop.permute.xlu0 %2519
    %v2522 = vadd.f32 %v2512, %v2520
    %v2523 = vtanh.pop %v2522
    %2525 = vrot.lane.b32.xlu0 %v2523, 64
    %v2526 = vpop.permute.xlu0 %2525
    %v2528 = vmul.f32 %v2487, %v2526
    %2530 = vrot.lane.b32.xlu0 %v2508, 32
    %v2531 = vpop.permute.xlu0 %2530
    %2533 = vst.msk [vmem:[%s10] sm:$0xc] %vm638, %v2531
    %2535 = vrot.lane.b32.xlu0 %v2528, 64
    %v2536 = vpop.permute.xlu0 %2535
    %2538 = vst.msk [vmem:[%s10 + $0x8] sm:$0x30] %vm644, %v2536
    %2539 = vst.msk [vmem:[%s10 + $0x2] sm:$0x3] %vm2316, %v2314
    %v2540 = vld [vmem:[#allocation3] sm:$0x30]
    %v2541 = vld [vmem:[#allocation3 + $0x18] sm:$0xc]
    %v2542 = vrot.slane %v2508, 2
    %2543 = vrot.lane.b32.xlu0 %v2542, 32
    %v2544 = vpop.permute.xlu0 %2543
    %v2545 = vsel %vm214, %v2544, 0
    %2547 = vmatprep.subr.mxu0 0.0
    %2548 = vmatpush1.msra.mxu0 %v1998
    %2549 = vmatprep.subr.mxu0 0.0
    %2550 = vmatpush1.msra.mxu0 %v1999
    %2551 = vmatprep.subr.mxu0 0.0
    %2552 = vmatpush1.msra.mxu0 %v2000
    %2553 = vmatprep.subr.mxu0 0.0
    %2554 = vmatpush1.msra.mxu0 %v2001
    %2555 = vmatprep.subr.mxu0 0.0
    %2556 = vmatpush1.msra.mxu0 0.0
    %2557 = vmatprep.subr.mxu0 0.0
    %2558 = vmatpush1.msra.mxu0 0.0
    %2559 = vmatprep.subr.mxu0 0.0
    %2560 = vmatpush1.msra.mxu0 0.0
    %2561 = vmatprep.subr.mxu0 0.0
    %2562 = vmatpush1.msra.mxu0 0.0
    %2563 = vmatprep.subr.mxu0 0.0
    %2564 = vmatpush1.msra.mxu0 0.0
    %2565 = vmatprep.subr.mxu0 0.0
    %2566 = vmatpush1.msra.mxu0 0.0
    %2567 = vmatprep.subr.mxu0 0.0
    %2568 = vmatpush1.msra.mxu0 0.0
    %2569 = vmatprep.subr.mxu0 0.0
    %2570 = vmatpush1.msra.mxu0 0.0
    %2571 = vmatprep.subr.mxu0 0.0
    %2572 = vmatpush1.msra.mxu0 0.0
    %2573 = vmatprep.subr.mxu0 0.0
    %2574 = vmatpush1.msra.mxu0 0.0
    %2575 = vmatprep.subr.mxu0 0.0
    %2576 = vmatpush1.msra.mxu0 0.0
    %2577 = vmatprep.subr.mxu0 0.0
    %2578 = vmatpush1.msra.mxu0 0.0
    %2579 = vmatprep.subr.mxu0 0.0
    %2580 = vmatpush1.msra.mxu0 0.0
    %2581 = vmatprep.subr.mxu0 0.0
    %2582 = vmatpush1.msra.mxu0 0.0
    %2583 = vmatprep.subr.mxu0 0.0
    %2584 = vmatpush1.msra.mxu0 0.0
    %2585 = vmatprep.subr.mxu0 0.0
    %2586 = vmatpush1.msra.mxu0 0.0
    %2587 = vmatprep.subr.mxu0 0.0
    %2588 = vmatpush1.msra.mxu0 0.0
    %2589 = vmatprep.subr.mxu0 0.0
    %2590 = vmatpush1.msra.mxu0 0.0
    %2591 = vmatprep.subr.mxu0 0.0
    %2592 = vmatpush1.msra.mxu0 0.0
    %2593 = vmatprep.subr.mxu0 0.0
    %2594 = vmatpush1.msra.mxu0 0.0
    %2595 = vmatprep.subr.mxu0 0.0
    %2596 = vmatpush1.msra.mxu0 0.0
    %2597 = vmatprep.subr.mxu0 0.0
    %2598 = vmatpush1.msra.mxu0 0.0
    %2599 = vmatprep.subr.mxu0 0.0
    %2600 = vmatpush1.msra.mxu0 0.0
    %2601 = vmatprep.subr.mxu0 0.0
    %2602 = vmatpush1.msra.mxu0 0.0
    %2603 = vmatprep.subr.mxu0 0.0
    %2604 = vmatpush1.msra.mxu0 0.0
    %2605 = vmatprep.subr.mxu0 0.0
    %2606 = vmatpush1.msra.mxu0 0.0
    %2607 = vmatprep.subr.mxu0 0.0
    %2608 = vmatpush1.msra.mxu0 0.0
    %2609 = vmatprep.subr.mxu0 0.0
    %2610 = vmatpush1.msra.mxu0 0.0
    %2611 = vmatprep.mubr.f32.mxu0 0.0
    %2612 = vmatmul.mubr.f32.gmra.mrb[0].mxu0 %v2545
    %v2613 = vpop.f32.mrb[0].mxu0
    %v2614 = vadd.f32 0.0, %v2613
    %v2615 = vpop.f32.mrb[0].mxu0
    %2616 = vdwg.mxu0
    %v2618 = vrot.slane %v2614, 4
    %v2620 = vadd.f32 %v2540, %v2618
    %v2621 = vrot.slane %v2528, 4
    %2622 = vrot.lane.b32.xlu0 %v2621, 32
    %v2623 = vpop.permute.xlu0 %2622
    %v2624 = vsel %vm214, %v2623, 0
    %2626 = vmatprep.subr.mxu0 0.0
    %2627 = vmatpush1.msra.mxu0 %v2002
    %2628 = vmatprep.subr.mxu0 0.0
    %2629 = vmatpush1.msra.mxu0 %v2003
    %2630 = vmatprep.subr.mxu0 0.0
    %2631 = vmatpush1.msra.mxu0 %v2004
    %2632 = vmatprep.subr.mxu0 0.0
    %2633 = vmatpush1.msra.mxu0 %v2005
    %2634 = vmatprep.subr.mxu0 0.0
    %2635 = vmatpush1.msra.mxu0 0.0
    %2636 = vmatprep.subr.mxu0 0.0
    %2637 = vmatpush1.msra.mxu0 0.0
    %2638 = vmatprep.subr.mxu0 0.0
    %2639 = vmatpush1.msra.mxu0 0.0
    %2640 = vmatprep.subr.mxu0 0.0
    %2641 = vmatpush1.msra.mxu0 0.0
    %2642 = vmatprep.subr.mxu0 0.0
    %2643 = vmatpush1.msra.mxu0 0.0
    %2644 = vmatprep.subr.mxu0 0.0
    %2645 = vmatpush1.msra.mxu0 0.0
    %2646 = vmatprep.subr.mxu0 0.0
    %2647 = vmatpush1.msra.mxu0 0.0
    %2648 = vmatprep.subr.mxu0 0.0
    %2649 = vmatpush1.msra.mxu0 0.0
    %2650 = vmatprep.subr.mxu0 0.0
    %2651 = vmatpush1.msra.mxu0 0.0
    %2652 = vmatprep.subr.mxu0 0.0
    %2653 = vmatpush1.msra.mxu0 0.0
    %2654 = vmatprep.subr.mxu0 0.0
    %2655 = vmatpush1.msra.mxu0 0.0
    %2656 = vmatprep.subr.mxu0 0.0
    %2657 = vmatpush1.msra.mxu0 0.0
    %2658 = vmatprep.subr.mxu0 0.0
    %2659 = vmatpush1.msra.mxu0 0.0
    %2660 = vmatprep.subr.mxu0 0.0
    %2661 = vmatpush1.msra.mxu0 0.0
    %2662 = vmatprep.subr.mxu0 0.0
    %2663 = vmatpush1.msra.mxu0 0.0
    %2664 = vmatprep.subr.mxu0 0.0
    %2665 = vmatpush1.msra.mxu0 0.0
    %2666 = vmatprep.subr.mxu0 0.0
    %2667 = vmatpush1.msra.mxu0 0.0
    %2668 = vmatprep.subr.mxu0 0.0
    %2669 = vmatpush1.msra.mxu0 0.0
    %2670 = vmatprep.subr.mxu0 0.0
    %2671 = vmatpush1.msra.mxu0 0.0
    %2672 = vmatprep.subr.mxu0 0.0
    %2673 = vmatpush1.msra.mxu0 0.0
    %2674 = vmatprep.subr.mxu0 0.0
    %2675 = vmatpush1.msra.mxu0 0.0
    %2676 = vmatprep.subr.mxu0 0.0
    %2677 = vmatpush1.msra.mxu0 0.0
    %2678 = vmatprep.subr.mxu0 0.0
    %2679 = vmatpush1.msra.mxu0 0.0
    %2680 = vmatprep.subr.mxu0 0.0
    %2681 = vmatpush1.msra.mxu0 0.0
    %2682 = vmatprep.subr.mxu0 0.0
    %2683 = vmatpush1.msra.mxu0 0.0
    %2684 = vmatprep.subr.mxu0 0.0
    %2685 = vmatpush1.msra.mxu0 0.0
    %2686 = vmatprep.subr.mxu0 0.0
    %2687 = vmatpush1.msra.mxu0 0.0
    %2688 = vmatprep.subr.mxu0 0.0
    %2689 = vmatpush1.msra.mxu0 0.0
    %2690 = vmatprep.mubr.f32.mxu0 0.0
    %2691 = vmatmul.mubr.f32.gmra.mrb[0].mxu0 %v2624
    %v2692 = vpop.f32.mrb[0].mxu0
    %v2693 = vadd.f32 0.0, %v2692
    %v2694 = vpop.f32.mrb[0].mxu0
    %2695 = vdwg.mxu0
    %v2697 = vrot.slane %v2693, 6
    %v2699 = vadd.f32 %v2541, %v2697
    %v2700 = vxor.u32 %v2620, 2147483648
    %v2701 = vmul.f32 %v2700, 1.442695
    %v2702 = vpow.pop %v2701
    %v2703 = vadd.f32 %v2702, 1.0
    %v2704 = vrcp.pop %v2703
    %v2705 = vmul.f32 1.0, %v2704
    %v2706 = vtanh.pop %v2620
    %v2707 = vxor.u32 %v2699, 2147483648
    %v2708 = vmul.f32 %v2707, 1.442695
    %v2709 = vpow.pop %v2708
    %v2710 = vadd.f32 %v2709, 1.0
    %v2711 = vrcp.pop %v2710
    %v2712 = vmul.f32 1.0, %v2711
    %v2713 = vtanh.pop %v2699
    %v2715 = vrot.slane %v2502, 6
    %v2717 = vmul.f32 %v2705, %v2715
    %2719 = vrot.lane.b32.xlu0 %v2706, 64
    %v2720 = vpop.permute.xlu0 %2719
    %v2722 = vmul.f32 %v2705, %v2720
    %2724 = vrot.lane.b32.xlu0 %v2722, 32
    %v2725 = vpop.permute.xlu0 %2724
    %v2727 = vadd.f32 %v2717, %v2725
    %v2728 = vtanh.pop %v2727
    %2730 = vrot.lane.b32.xlu0 %v2728, 64
    %v2731 = vpop.permute.xlu0 %2730
    %v2733 = vmul.f32 %v2705, %v2731
    %v2735 = vrot.slane %v2522, 2
    %v2737 = vmul.f32 %v2712, %v2735
    %2739 = vrot.lane.b32.xlu0 %v2713, 64
    %v2740 = vpop.permute.xlu0 %2739
    %v2742 = vmul.f32 %v2712, %v2740
    %2744 = vrot.lane.b32.xlu0 %v2742, 32
    %v2745 = vpop.permute.xlu0 %2744
    %v2747 = vadd.f32 %v2737, %v2745
    %v2748 = vtanh.pop %v2747
    %2750 = vrot.lane.b32.xlu0 %v2748, 64
    %v2751 = vpop.permute.xlu0 %2750
    %v2753 = vmul.f32 %v2712, %v2751
    %2755 = vrot.lane.b32.xlu0 %v2733, 32
    %v2756 = vpop.permute.xlu0 %2755
    %2758 = vst.msk [vmem:[%s10] sm:$0x30] %vm864, %v2756
    %2760 = vrot.lane.b32.xlu0 %v2753, 64
    %v2761 = vpop.permute.xlu0 %2760
    %2763 = vst.msk [vmem:[%s10 + $0x8] sm:$0xc] %vm870, %v2761
    %2764 = vst.msk [vmem:[%s10 + $0x4] sm:$0x3] %vm2316, %v2314
    %v2765 = vld [vmem:[#allocation3] sm:$0xc0]
    %v2766 = vld [vmem:[#allocation3 + $0x18] sm:$0x3]
    %v2767 = vrot.slane %v2733, 4
    %2768 = vrot.lane.b32.xlu0 %v2767, 32
    %v2769 = vpop.permute.xlu0 %2768
    %v2770 = vsel %vm214, %v2769, 0
    %2772 = vmatprep.subr.mxu0 0.0
    %2773 = vmatpush1.msra.mxu0 %v1998
    %2774 = vmatprep.subr.mxu0 0.0
    %2775 = vmatpush1.msra.mxu0 %v1999
    %2776 = vmatprep.subr.mxu0 0.0
    %2777 = vmatpush1.msra.mxu0 %v2000
    %2778 = vmatprep.subr.mxu0 0.0
    %2779 = vmatpush1.msra.mxu0 %v2001
    %2780 = vmatprep.subr.mxu0 0.0
    %2781 = vmatpush1.msra.mxu0 0.0
    %2782 = vmatprep.subr.mxu0 0.0
    %2783 = vmatpush1.msra.mxu0 0.0
    %2784 = vmatprep.subr.mxu0 0.0
    %2785 = vmatpush1.msra.mxu0 0.0
    %2786 = vmatprep.subr.mxu0 0.0
    %2787 = vmatpush1.msra.mxu0 0.0
    %2788 = vmatprep.subr.mxu0 0.0
    %2789 = vmatpush1.msra.mxu0 0.0
    %2790 = vmatprep.subr.mxu0 0.0
    %2791 = vmatpush1.msra.mxu0 0.0
    %2792 = vmatprep.subr.mxu0 0.0
    %2793 = vmatpush1.msra.mxu0 0.0
    %2794 = vmatprep.subr.mxu0 0.0
    %2795 = vmatpush1.msra.mxu0 0.0
    %2796 = vmatprep.subr.mxu0 0.0
    %2797 = vmatpush1.msra.mxu0 0.0
    %2798 = vmatprep.subr.mxu0 0.0
    %2799 = vmatpush1.msra.mxu0 0.0
    %2800 = vmatprep.subr.mxu0 0.0
    %2801 = vmatpush1.msra.mxu0 0.0
    %2802 = vmatprep.subr.mxu0 0.0
    %2803 = vmatpush1.msra.mxu0 0.0
    %2804 = vmatprep.subr.mxu0 0.0
    %2805 = vmatpush1.msra.mxu0 0.0
    %2806 = vmatprep.subr.mxu0 0.0
    %2807 = vmatpush1.msra.mxu0 0.0
    %2808 = vmatprep.subr.mxu0 0.0
    %2809 = vmatpush1.msra.mxu0 0.0
    %2810 = vmatprep.subr.mxu0 0.0
    %2811 = vmatpush1.msra.mxu0 0.0
    %2812 = vmatprep.subr.mxu0 0.0
    %2813 = vmatpush1.msra.mxu0 0.0
    %2814 = vmatprep.subr.mxu0 0.0
    %2815 = vmatpush1.msra.mxu0 0.0
    %2816 = vmatprep.subr.mxu0 0.0
    %2817 = vmatpush1.msra.mxu0 0.0
    %2818 = vmatprep.subr.mxu0 0.0
    %2819 = vmatpush1.msra.mxu0 0.0
    %2820 = vmatprep.subr.mxu0 0.0
    %2821 = vmatpush1.msra.mxu0 0.0
    %2822 = vmatprep.subr.mxu0 0.0
    %2823 = vmatpush1.msra.mxu0 0.0
    %2824 = vmatprep.subr.mxu0 0.0
    %2825 = vmatpush1.msra.mxu0 0.0
    %2826 = vmatprep.subr.mxu0 0.0
    %2827 = vmatpush1.msra.mxu0 0.0
    %2828 = vmatprep.subr.mxu0 0.0
    %2829 = vmatpush1.msra.mxu0 0.0
    %2830 = vmatprep.subr.mxu0 0.0
    %2831 = vmatpush1.msra.mxu0 0.0
    %2832 = vmatprep.subr.mxu0 0.0
    %2833 = vmatpush1.msra.mxu0 0.0
    %2834 = vmatprep.subr.mxu0 0.0
    %2835 = vmatpush1.msra.mxu0 0.0
    %2836 = vmatprep.mubr.f32.mxu0 0.0
    %2837 = vmatmul.mubr.f32.gmra.mrb[0].mxu0 %v2770
    %v2838 = vpop.f32.mrb[0].mxu0
    %v2839 = vadd.f32 0.0, %v2838
    %v2840 = vpop.f32.mrb[0].mxu0
    %2841 = vdwg.mxu0
    %v2843 = vrot.slane %v2839, 2
    %v2845 = vadd.f32 %v2765, %v2843
    %v2846 = vrot.slane %v2753, 2
    %2847 = vrot.lane.b32.xlu0 %v2846, 32
    %v2848 = vpop.permute.xlu0 %2847
    %v2849 = vsel %vm214, %v2848, 0
    %2851 = vmatprep.subr.mxu0 0.0
    %2852 = vmatpush1.msra.mxu0 %v2002
    %2853 = vmatprep.subr.mxu0 0.0
    %2854 = vmatpush1.msra.mxu0 %v2003
    %2855 = vmatprep.subr.mxu0 0.0
    %2856 = vmatpush1.msra.mxu0 %v2004
    %2857 = vmatprep.subr.mxu0 0.0
    %2858 = vmatpush1.msra.mxu0 %v2005
    %2859 = vmatprep.subr.mxu0 0.0
    %2860 = vmatpush1.msra.mxu0 0.0
    %2861 = vmatprep.subr.mxu0 0.0
    %2862 = vmatpush1.msra.mxu0 0.0
    %2863 = vmatprep.subr.mxu0 0.0
    %2864 = vmatpush1.msra.mxu0 0.0
    %2865 = vmatprep.subr.mxu0 0.0
    %2866 = vmatpush1.msra.mxu0 0.0
    %2867 = vmatprep.subr.mxu0 0.0
    %2868 = vmatpush1.msra.mxu0 0.0
    %2869 = vmatprep.subr.mxu0 0.0
    %2870 = vmatpush1.msra.mxu0 0.0
    %2871 = vmatprep.subr.mxu0 0.0
    %2872 = vmatpush1.msra.mxu0 0.0
    %2873 = vmatprep.subr.mxu0 0.0
    %2874 = vmatpush1.msra.mxu0 0.0
    %2875 = vmatprep.subr.mxu0 0.0
    %2876 = vmatpush1.msra.mxu0 0.0
    %2877 = vmatprep.subr.mxu0 0.0
    %2878 = vmatpush1.msra.mxu0 0.0
    %2879 = vmatprep.subr.mxu0 0.0
    %2880 = vmatpush1.msra.mxu0 0.0
    %2881 = vmatprep.subr.mxu0 0.0
    %2882 = vmatpush1.msra.mxu0 0.0
    %2883 = vmatprep.subr.mxu0 0.0
    %2884 = vmatpush1.msra.mxu0 0.0
    %2885 = vmatprep.subr.mxu0 0.0
    %2886 = vmatpush1.msra.mxu0 0.0
    %2887 = vmatprep.subr.mxu0 0.0
    %2888 = vmatpush1.msra.mxu0 0.0
    %2889 = vmatprep.subr.mxu0 0.0
    %2890 = vmatpush1.msra.mxu0 0.0
    %2891 = vmatprep.subr.mxu0 0.0
    %2892 = vmatpush1.msra.mxu0 0.0
    %2893 = vmatprep.subr.mxu0 0.0
    %2894 = vmatpush1.msra.mxu0 0.0
    %2895 = vmatprep.subr.mxu0 0.0
    %2896 = vmatpush1.msra.mxu0 0.0
    %2897 = vmatprep.subr.mxu0 0.0
    %2898 = vmatpush1.msra.mxu0 0.0
    %2899 = vmatprep.subr.mxu0 0.0
    %2900 = vmatpush1.msra.mxu0 0.0
    %2901 = vmatprep.subr.mxu0 0.0
    %2902 = vmatpush1.msra.mxu0 0.0
    %2903 = vmatprep.subr.mxu0 0.0
    %2904 = vmatpush1.msra.mxu0 0.0
    %2905 = vmatprep.subr.mxu0 0.0
    %2906 = vmatpush1.msra.mxu0 0.0
    %2907 = vmatprep.subr.mxu0 0.0
    %2908 = vmatpush1.msra.mxu0 0.0
    %2909 = vmatprep.subr.mxu0 0.0
    %2910 = vmatpush1.msra.mxu0 0.0
    %2911 = vmatprep.subr.mxu0 0.0
    %2912 = vmatpush1.msra.mxu0 0.0
    %2913 = vmatprep.subr.mxu0 0.0
    %2914 = vmatpush1.msra.mxu0 0.0
    %2915 = vmatprep.mubr.f32.mxu0 0.0
    %2916 = vmatmul.mubr.f32.gmra.mrb[0].mxu0 %v2849
    %v2917 = vpop.f32.mrb[0].mxu0
    %v2918 = vadd.f32 0.0, %v2917
    %v2919 = vpop.f32.mrb[0].mxu0
    %2920 = vdwg.mxu0
    %v2921 = vadd.f32 %v2766, %v2918
    %v2922 = vxor.u32 %v2845, 2147483648
    %v2923 = vmul.f32 %v2922, 1.442695
    %v2924 = vpow.pop %v2923
    %v2925 = vadd.f32 %v2924, 1.0
    %v2926 = vrcp.pop %v2925
    %v2927 = vmul.f32 1.0, %v2926
    %v2928 = vtanh.pop %v2845
    %v2929 = vxor.u32 %v2921, 2147483648
    %v2930 = vmul.f32 %v2929, 1.442695
    %v2931 = vpow.pop %v2930
    %v2932 = vadd.f32 %v2931, 1.0
    %v2933 = vrcp.pop %v2932
    %v2934 = vmul.f32 1.0, %v2933
    %v2935 = vtanh.pop %v2921
    %v2937 = vrot.slane %v2727, 6
    %v2939 = vmul.f32 %v2927, %v2937
    %2941 = vrot.lane.b32.xlu0 %v2928, 64
    %v2942 = vpop.permute.xlu0 %2941
    %v2944 = vmul.f32 %v2927, %v2942
    %2946 = vrot.lane.b32.xlu0 %v2944, 32
    %v2947 = vpop.permute.xlu0 %2946
    %v2949 = vadd.f32 %v2939, %v2947
    %v2950 = vtanh.pop %v2949
    %2952 = vrot.lane.b32.xlu0 %v2950, 64
    %v2953 = vpop.permute.xlu0 %2952
    %v2955 = vmul.f32 %v2927, %v2953
    %v2957 = vrot.slane %v2747, 2
    %v2959 = vmul.f32 %v2934, %v2957
    %2961 = vrot.lane.b32.xlu0 %v2935, 64
    %v2962 = vpop.permute.xlu0 %2961
    %v2964 = vmul.f32 %v2934, %v2962
    %2966 = vrot.lane.b32.xlu0 %v2964, 32
    %v2967 = vpop.permute.xlu0 %2966
    %v2969 = vadd.f32 %v2959, %v2967
    %v2970 = vtanh.pop %v2969
    %2972 = vrot.lane.b32.xlu0 %v2970, 64
    %v2973 = vpop.permute.xlu0 %2972
    %v2975 = vmul.f32 %v2934, %v2973
    %2977 = vrot.lane.b32.xlu0 %v2955, 32
    %v2978 = vpop.permute.xlu0 %2977
    %2980 = vst.msk [vmem:[%s10] sm:$0xc0] %vm1087, %v2978
    %2982 = vrot.lane.b32.xlu0 %v2975, 64
    %v2983 = vpop.permute.xlu0 %2982
    %2985 = vst.msk [vmem:[%s10 + $0x8] sm:$0x3] %vm1093, %v2983
    %2986 = vst.msk [vmem:[%s10 + $0x6] sm:$0x3] %vm2316, %v2314
    %v2987 = vld [vmem:[#allocation3 + $0x10] sm:$0x3]
    %v2988 = vld [vmem:[#allocation3 + $0x8] sm:$0xc0]
    %v2989 = vrot.slane %v2955, 6
    %2990 = vrot.lane.b32.xlu0 %v2989, 32
    %v2991 = vpop.permute.xlu0 %2990
    %v2992 = vsel %vm214, %v2991, 0
    %2994 = vmatprep.subr.mxu0 0.0
    %2995 = vmatpush1.msra.mxu0 %v1998
    %2996 = vmatprep.subr.mxu0 0.0
    %2997 = vmatpush1.msra.mxu0 %v1999
    %2998 = vmatprep.subr.mxu0 0.0
    %2999 = vmatpush1.msra.mxu0 %v2000
    %3000 = vmatprep.subr.mxu0 0.0
    %3001 = vmatpush1.msra.mxu0 %v2001
    %3002 = vmatprep.subr.mxu0 0.0
    %3003 = vmatpush1.msra.mxu0 0.0
    %3004 = vmatprep.subr.mxu0 0.0
    %3005 = vmatpush1.msra.mxu0 0.0
    %3006 = vmatprep.subr.mxu0 0.0
    %3007 = vmatpush1.msra.mxu0 0.0
    %3008 = vmatprep.subr.mxu0 0.0
    %3009 = vmatpush1.msra.mxu0 0.0
    %3010 = vmatprep.subr.mxu0 0.0
    %3011 = vmatpush1.msra.mxu0 0.0
    %3012 = vmatprep.subr.mxu0 0.0
    %3013 = vmatpush1.msra.mxu0 0.0
    %3014 = vmatprep.subr.mxu0 0.0
    %3015 = vmatpush1.msra.mxu0 0.0
    %3016 = vmatprep.subr.mxu0 0.0
    %3017 = vmatpush1.msra.mxu0 0.0
    %3018 = vmatprep.subr.mxu0 0.0
    %3019 = vmatpush1.msra.mxu0 0.0
    %3020 = vmatprep.subr.mxu0 0.0
    %3021 = vmatpush1.msra.mxu0 0.0
    %3022 = vmatprep.subr.mxu0 0.0
    %3023 = vmatpush1.msra.mxu0 0.0
    %3024 = vmatprep.subr.mxu0 0.0
    %3025 = vmatpush1.msra.mxu0 0.0
    %3026 = vmatprep.subr.mxu0 0.0
    %3027 = vmatpush1.msra.mxu0 0.0
    %3028 = vmatprep.subr.mxu0 0.0
    %3029 = vmatpush1.msra.mxu0 0.0
    %3030 = vmatprep.subr.mxu0 0.0
    %3031 = vmatpush1.msra.mxu0 0.0
    %3032 = vmatprep.subr.mxu0 0.0
    %3033 = vmatpush1.msra.mxu0 0.0
    %3034 = vmatprep.subr.mxu0 0.0
    %3035 = vmatpush1.msra.mxu0 0.0
    %3036 = vmatprep.subr.mxu0 0.0
    %3037 = vmatpush1.msra.mxu0 0.0
    %3038 = vmatprep.subr.mxu0 0.0
    %3039 = vmatpush1.msra.mxu0 0.0
    %3040 = vmatprep.subr.mxu0 0.0
    %3041 = vmatpush1.msra.mxu0 0.0
    %3042 = vmatprep.subr.mxu0 0.0
    %3043 = vmatpush1.msra.mxu0 0.0
    %3044 = vmatprep.subr.mxu0 0.0
    %3045 = vmatpush1.msra.mxu0 0.0
    %3046 = vmatprep.subr.mxu0 0.0
    %3047 = vmatpush1.msra.mxu0 0.0
    %3048 = vmatprep.subr.mxu0 0.0
    %3049 = vmatpush1.msra.mxu0 0.0
    %3050 = vmatprep.subr.mxu0 0.0
    %3051 = vmatpush1.msra.mxu0 0.0
    %3052 = vmatprep.subr.mxu0 0.0
    %3053 = vmatpush1.msra.mxu0 0.0
    %3054 = vmatprep.subr.mxu0 0.0
    %3055 = vmatpush1.msra.mxu0 0.0
    %3056 = vmatprep.subr.mxu0 0.0
    %3057 = vmatpush1.msra.mxu0 0.0
    %3058 = vmatprep.mubr.f32.mxu0 0.0
    %3059 = vmatmul.mubr.f32.gmra.mrb[0].mxu0 %v2992
    %v3060 = vpop.f32.mrb[0].mxu0
    %v3061 = vadd.f32 0.0, %v3060
    %v3062 = vpop.f32.mrb[0].mxu0
    %3063 = vdwg.mxu0
    %v3064 = vadd.f32 %v2987, %v3061
    %3065 = vrot.lane.b32.xlu0 %v2975, 32
    %v3066 = vpop.permute.xlu0 %3065
    %v3067 = vsel %vm214, %v3066, 0
    %3069 = vmatprep.subr.mxu0 0.0
    %3070 = vmatpush1.msra.mxu0 %v2002
    %3071 = vmatprep.subr.mxu0 0.0
    %3072 = vmatpush1.msra.mxu0 %v2003
    %3073 = vmatprep.subr.mxu0 0.0
    %3074 = vmatpush1.msra.mxu0 %v2004
    %3075 = vmatprep.subr.mxu0 0.0
    %3076 = vmatpush1.msra.mxu0 %v2005
    %3077 = vmatprep.subr.mxu0 0.0
    %3078 = vmatpush1.msra.mxu0 0.0
    %3079 = vmatprep.subr.mxu0 0.0
    %3080 = vmatpush1.msra.mxu0 0.0
    %3081 = vmatprep.subr.mxu0 0.0
    %3082 = vmatpush1.msra.mxu0 0.0
    %3083 = vmatprep.subr.mxu0 0.0
    %3084 = vmatpush1.msra.mxu0 0.0
    %3085 = vmatprep.subr.mxu0 0.0
    %3086 = vmatpush1.msra.mxu0 0.0
    %3087 = vmatprep.subr.mxu0 0.0
    %3088 = vmatpush1.msra.mxu0 0.0
    %3089 = vmatprep.subr.mxu0 0.0
    %3090 = vmatpush1.msra.mxu0 0.0
    %3091 = vmatprep.subr.mxu0 0.0
    %3092 = vmatpush1.msra.mxu0 0.0
    %3093 = vmatprep.subr.mxu0 0.0
    %3094 = vmatpush1.msra.mxu0 0.0
    %3095 = vmatprep.subr.mxu0 0.0
    %3096 = vmatpush1.msra.mxu0 0.0
    %3097 = vmatprep.subr.mxu0 0.0
    %3098 = vmatpush1.msra.mxu0 0.0
    %3099 = vmatprep.subr.mxu0 0.0
    %3100 = vmatpush1.msra.mxu0 0.0
    %3101 = vmatprep.subr.mxu0 0.0
    %3102 = vmatpush1.msra.mxu0 0.0
    %3103 = vmatprep.subr.mxu0 0.0
    %3104 = vmatpush1.msra.mxu0 0.0
    %3105 = vmatprep.subr.mxu0 0.0
    %3106 = vmatpush1.msra.mxu0 0.0
    %3107 = vmatprep.subr.mxu0 0.0
    %3108 = vmatpush1.msra.mxu0 0.0
    %3109 = vmatprep.subr.mxu0 0.0
    %3110 = vmatpush1.msra.mxu0 0.0
    %3111 = vmatprep.subr.mxu0 0.0
    %3112 = vmatpush1.msra.mxu0 0.0
    %3113 = vmatprep.subr.mxu0 0.0
    %3114 = vmatpush1.msra.mxu0 0.0
    %3115 = vmatprep.subr.mxu0 0.0
    %3116 = vmatpush1.msra.mxu0 0.0
    %3117 = vmatprep.subr.mxu0 0.0
    %3118 = vmatpush1.msra.mxu0 0.0
    %3119 = vmatprep.subr.mxu0 0.0
    %3120 = vmatpush1.msra.mxu0 0.0
    %3121 = vmatprep.subr.mxu0 0.0
    %3122 = vmatpush1.msra.mxu0 0.0
    %3123 = vmatprep.subr.mxu0 0.0
    %3124 = vmatpush1.msra.mxu0 0.0
    %3125 = vmatprep.subr.mxu0 0.0
    %3126 = vmatpush1.msra.mxu0 0.0
    %3127 = vmatprep.subr.mxu0 0.0
    %3128 = vmatpush1.msra.mxu0 0.0
    %3129 = vmatprep.subr.mxu0 0.0
    %3130 = vmatpush1.msra.mxu0 0.0
    %3131 = vmatprep.subr.mxu0 0.0
    %3132 = vmatpush1.msra.mxu0 0.0
    %3133 = vmatprep.mubr.f32.mxu0 0.0
    %3134 = vmatmul.mubr.f32.gmra.mrb[0].mxu0 %v3067
    %v3135 = vpop.f32.mrb[0].mxu0
    %v3136 = vadd.f32 0.0, %v3135
    %v3137 = vpop.f32.mrb[0].mxu0
    %3138 = vdwg.mxu0
    %v3140 = vrot.slane %v3136, 2
    %v3142 = vadd.f32 %v2988, %v3140
    %v3143 = vxor.u32 %v3064, 2147483648
    %v3144 = vmul.f32 %v3143, 1.442695
    %v3145 = vpow.pop %v3144
    %v3146 = vadd.f32 %v3145, 1.0
    %v3147 = vrcp.pop %v3146
    %v3148 = vmul.f32 1.0, %v3147
    %v3149 = vtanh.pop %v3064
    %v3150 = vxor.u32 %v3142, 2147483648
    %v3151 = vmul.f32 %v3150, 1.442695
    %v3152 = vpow.pop %v3151
    %v3153 = vadd.f32 %v3152, 1.0
    %v3154 = vrcp.pop %v3153
    %v3155 = vmul.f32 1.0, %v3154
    %v3156 = vtanh.pop %v3142
    %v3158 = vrot.slane %v2949, 6
    %v3160 = vmul.f32 %v3148, %v3158
    %3162 = vrot.lane.b32.xlu0 %v3149, 64
    %v3163 = vpop.permute.xlu0 %3162
    %v3165 = vmul.f32 %v3148, %v3163
    %3167 = vrot.lane.b32.xlu0 %v3165, 32
    %v3168 = vpop.permute.xlu0 %3167
    %v3170 = vadd.f32 %v3160, %v3168
    %v3171 = vtanh.pop %v3170
    %3173 = vrot.lane.b32.xlu0 %v3171, 64
    %v3174 = vpop.permute.xlu0 %3173
    %v3176 = vmul.f32 %v3148, %v3174
    %v3178 = vrot.slane %v2969, 2
    %v3180 = vmul.f32 %v3155, %v3178
    %3182 = vrot.lane.b32.xlu0 %v3156, 64
    %v3183 = vpop.permute.xlu0 %3182
    %v3185 = vmul.f32 %v3155, %v3183
    %3187 = vrot.lane.b32.xlu0 %v3185, 32
    %v3188 = vpop.permute.xlu0 %3187
    %v3190 = vadd.f32 %v3180, %v3188
    %v3191 = vtanh.pop %v3190
    %3193 = vrot.lane.b32.xlu0 %v3191, 64
    %v3194 = vpop.permute.xlu0 %3193
    %v3196 = vmul.f32 %v3155, %v3194
    %3198 = vrot.lane.b32.xlu0 %v3176, 32
    %v3199 = vpop.permute.xlu0 %3198
    %3201 = vst.msk [vmem:[%s10 + $0x8] sm:$0x3] %vm415, %v3199
    %3203 = vrot.lane.b32.xlu0 %v3196, 64
    %v3204 = vpop.permute.xlu0 %3203
    %3206 = vst.msk [vmem:[%s10] sm:$0xc0] %vm421, %v3204
    %3207 = vst.msk [vmem:[%s10 + $0x8] sm:$0x3] %vm2316, %v2314
    %v3208 = vld [vmem:[#allocation3 + $0x10] sm:$0xc]
    %v3209 = vld [vmem:[#allocation3 + $0x8] sm:$0x30]
    %v3210 = vsel %vm214, %v3199, 0
    %3212 = vmatprep.subr.mxu0 0.0
    %3213 = vmatpush1.msra.mxu0 %v1998
    %3214 = vmatprep.subr.mxu0 0.0
    %3215 = vmatpush1.msra.mxu0 %v1999
    %3216 = vmatprep.subr.mxu0 0.0
    %3217 = vmatpush1.msra.mxu0 %v2000
    %3218 = vmatprep.subr.mxu0 0.0
    %3219 = vmatpush1.msra.mxu0 %v2001
    %3220 = vmatprep.subr.mxu0 0.0
    %3221 = vmatpush1.msra.mxu0 0.0
    %3222 = vmatprep.subr.mxu0 0.0
    %3223 = vmatpush1.msra.mxu0 0.0
    %3224 = vmatprep.subr.mxu0 0.0
    %3225 = vmatpush1.msra.mxu0 0.0
    %3226 = vmatprep.subr.mxu0 0.0
    %3227 = vmatpush1.msra.mxu0 0.0
    %3228 = vmatprep.subr.mxu0 0.0
    %3229 = vmatpush1.msra.mxu0 0.0
    %3230 = vmatprep.subr.mxu0 0.0
    %3231 = vmatpush1.msra.mxu0 0.0
    %3232 = vmatprep.subr.mxu0 0.0
    %3233 = vmatpush1.msra.mxu0 0.0
    %3234 = vmatprep.subr.mxu0 0.0
    %3235 = vmatpush1.msra.mxu0 0.0
    %3236 = vmatprep.subr.mxu0 0.0
    %3237 = vmatpush1.msra.mxu0 0.0
    %3238 = vmatprep.subr.mxu0 0.0
    %3239 = vmatpush1.msra.mxu0 0.0
    %3240 = vmatprep.subr.mxu0 0.0
    %3241 = vmatpush1.msra.mxu0 0.0
    %3242 = vmatprep.subr.mxu0 0.0
    %3243 = vmatpush1.msra.mxu0 0.0
    %3244 = vmatprep.subr.mxu0 0.0
    %3245 = vmatpush1.msra.mxu0 0.0
    %3246 = vmatprep.subr.mxu0 0.0
    %3247 = vmatpush1.msra.mxu0 0.0
    %3248 = vmatprep.subr.mxu0 0.0
    %3249 = vmatpush1.msra.mxu0 0.0
    %3250 = vmatprep.subr.mxu0 0.0
    %3251 = vmatpush1.msra.mxu0 0.0
    %3252 = vmatprep.subr.mxu0 0.0
    %3253 = vmatpush1.msra.mxu0 0.0
    %3254 = vmatprep.subr.mxu0 0.0
    %3255 = vmatpush1.msra.mxu0 0.0
    %3256 = vmatprep.subr.mxu0 0.0
    %3257 = vmatpush1.msra.mxu0 0.0
    %3258 = vmatprep.subr.mxu0 0.0
    %3259 = vmatpush1.msra.mxu0 0.0
    %3260 = vmatprep.subr.mxu0 0.0
    %3261 = vmatpush1.msra.mxu0 0.0
    %3262 = vmatprep.subr.mxu0 0.0
    %3263 = vmatpush1.msra.mxu0 0.0
    %3264 = vmatprep.subr.mxu0 0.0
    %3265 = vmatpush1.msra.mxu0 0.0
    %3266 = vmatprep.subr.mxu0 0.0
    %3267 = vmatpush1.msra.mxu0 0.0
    %3268 = vmatprep.subr.mxu0 0.0
    %3269 = vmatpush1.msra.mxu0 0.0
    %3270 = vmatprep.subr.mxu0 0.0
    %3271 = vmatpush1.msra.mxu0 0.0
    %3272 = vmatprep.subr.mxu0 0.0
    %3273 = vmatpush1.msra.mxu0 0.0
    %3274 = vmatprep.subr.mxu0 0.0
    %3275 = vmatpush1.msra.mxu0 0.0
    %3276 = vmatprep.mubr.f32.mxu0 0.0
    %3277 = vmatmul.mubr.f32.gmra.mrb[0].mxu0 %v3210
    %v3278 = vpop.f32.mrb[0].mxu0
    %v3279 = vadd.f32 0.0, %v3278
    %v3280 = vpop.f32.mrb[0].mxu0
    %3281 = vdwg.mxu0
    %v3283 = vrot.slane %v3279, 6
    %v3285 = vadd.f32 %v3208, %v3283
    %v3286 = vrot.slane %v3196, 6
    %3287 = vrot.lane.b32.xlu0 %v3286, 32
    %v3288 = vpop.permute.xlu0 %3287
    %v3289 = vsel %vm214, %v3288, 0
    %3291 = vmatprep.subr.mxu0 0.0
    %3292 = vmatpush1.msra.mxu0 %v2002
    %3293 = vmatprep.subr.mxu0 0.0
    %3294 = vmatpush1.msra.mxu0 %v2003
    %3295 = vmatprep.subr.mxu0 0.0
    %3296 = vmatpush1.msra.mxu0 %v2004
    %3297 = vmatprep.subr.mxu0 0.0
    %3298 = vmatpush1.msra.mxu0 %v2005
    %3299 = vmatprep.subr.mxu0 0.0
    %3300 = vmatpush1.msra.mxu0 0.0
    %3301 = vmatprep.subr.mxu0 0.0
    %3302 = vmatpush1.msra.mxu0 0.0
    %3303 = vmatprep.subr.mxu0 0.0
    %3304 = vmatpush1.msra.mxu0 0.0
    %3305 = vmatprep.subr.mxu0 0.0
    %3306 = vmatpush1.msra.mxu0 0.0
    %3307 = vmatprep.subr.mxu0 0.0
    %3308 = vmatpush1.msra.mxu0 0.0
    %3309 = vmatprep.subr.mxu0 0.0
    %3310 = vmatpush1.msra.mxu0 0.0
    %3311 = vmatprep.subr.mxu0 0.0
    %3312 = vmatpush1.msra.mxu0 0.0
    %3313 = vmatprep.subr.mxu0 0.0
    %3314 = vmatpush1.msra.mxu0 0.0
    %3315 = vmatprep.subr.mxu0 0.0
    %3316 = vmatpush1.msra.mxu0 0.0
    %3317 = vmatprep.subr.mxu0 0.0
    %3318 = vmatpush1.msra.mxu0 0.0
    %3319 = vmatprep.subr.mxu0 0.0
    %3320 = vmatpush1.msra.mxu0 0.0
    %3321 = vmatprep.subr.mxu0 0.0
    %3322 = vmatpush1.msra.mxu0 0.0
    %3323 = vmatprep.subr.mxu0 0.0
    %3324 = vmatpush1.msra.mxu0 0.0
    %3325 = vmatprep.subr.mxu0 0.0
    %3326 = vmatpush1.msra.mxu0 0.0
    %3327 = vmatprep.subr.mxu0 0.0
    %3328 = vmatpush1.msra.mxu0 0.0
    %3329 = vmatprep.subr.mxu0 0.0
    %3330 = vmatpush1.msra.mxu0 0.0
    %3331 = vmatprep.subr.mxu0 0.0
    %3332 = vmatpush1.msra.mxu0 0.0
    %3333 = vmatprep.subr.mxu0 0.0
    %3334 = vmatpush1.msra.mxu0 0.0
    %3335 = vmatprep.subr.mxu0 0.0
    %3336 = vmatpush1.msra.mxu0 0.0
    %3337 = vmatprep.subr.mxu0 0.0
    %3338 = vmatpush1.msra.mxu0 0.0
    %3339 = vmatprep.subr.mxu0 0.0
    %3340 = vmatpush1.msra.mxu0 0.0
    %3341 = vmatprep.subr.mxu0 0.0
    %3342 = vmatpush1.msra.mxu0 0.0
    %3343 = vmatprep.subr.mxu0 0.0
    %3344 = vmatpush1.msra.mxu0 0.0
    %3345 = vmatprep.subr.mxu0 0.0
    %3346 = vmatpush1.msra.mxu0 0.0
    %3347 = vmatprep.subr.mxu0 0.0
    %3348 = vmatpush1.msra.mxu0 0.0
    %3349 = vmatprep.subr.mxu0 0.0
    %3350 = vmatpush1.msra.mxu0 0.0
    %3351 = vmatprep.subr.mxu0 0.0
    %3352 = vmatpush1.msra.mxu0 0.0
    %3353 = vmatprep.subr.mxu0 0.0
    %3354 = vmatpush1.msra.mxu0 0.0
    %3355 = vmatprep.mubr.f32.mxu0 0.0
    %3356 = vmatmul.mubr.f32.gmra.mrb[0].mxu0 %v3289
    %v3357 = vpop.f32.mrb[0].mxu0
    %v3358 = vadd.f32 0.0, %v3357
    %v3359 = vpop.f32.mrb[0].mxu0
    %3360 = vdwg.mxu0
    %v3362 = vrot.slane %v3358, 4
    %v3364 = vadd.f32 %v3209, %v3362
    %v3365 = vxor.u32 %v3285, 2147483648
    %v3366 = vmul.f32 %v3365, 1.442695
    %v3367 = vpow.pop %v3366
    %v3368 = vadd.f32 %v3367, 1.0
    %v3369 = vrcp.pop %v3368
    %v3370 = vmul.f32 1.0, %v3369
    %v3371 = vtanh.pop %v3285
    %v3372 = vxor.u32 %v3364, 2147483648
    %v3373 = vmul.f32 %v3372, 1.442695
    %v3374 = vpow.pop %v3373
    %v3375 = vadd.f32 %v3374, 1.0
    %v3376 = vrcp.pop %v3375
    %v3377 = vmul.f32 1.0, %v3376
    %v3378 = vtanh.pop %v3364
    %v3380 = vrot.slane %v3170, 6
    %v3382 = vmul.f32 %v3370, %v3380
    %3384 = vrot.lane.b32.xlu0 %v3371, 64
    %v3385 = vpop.permute.xlu0 %3384
    %v3387 = vmul.f32 %v3370, %v3385
    %3389 = vrot.lane.b32.xlu0 %v3387, 32
    %v3390 = vpop.permute.xlu0 %3389
    %v3392 = vadd.f32 %v3382, %v3390
    %v3393 = vtanh.pop %v3392
    %3395 = vrot.lane.b32.xlu0 %v3393, 64
    %v3396 = vpop.permute.xlu0 %3395
    %v3398 = vmul.f32 %v3370, %v3396
    %v3400 = vrot.slane %v3190, 2
    %v3402 = vmul.f32 %v3377, %v3400
    %3404 = vrot.lane.b32.xlu0 %v3378, 64
    %v3405 = vpop.permute.xlu0 %3404
    %v3407 = vmul.f32 %v3377, %v3405
    %3409 = vrot.lane.b32.xlu0 %v3407, 32
    %v3410 = vpop.permute.xlu0 %3409
    %v3412 = vadd.f32 %v3402, %v3410
    %v3413 = vtanh.pop %v3412
    %3415 = vrot.lane.b32.xlu0 %v3413, 64
    %v3416 = vpop.permute.xlu0 %3415
    %v3418 = vmul.f32 %v3377, %v3416
    %3420 = vrot.lane.b32.xlu0 %v3398, 32
    %v3421 = vpop.permute.xlu0 %3420
    %3423 = vst.msk [vmem:[%s10 + $0x8] sm:$0xc] %vm638, %v3421
    %3425 = vrot.lane.b32.xlu0 %v3418, 64
    %v3426 = vpop.permute.xlu0 %3425
    %3428 = vst.msk [vmem:[%s10] sm:$0x30] %vm644, %v3426
    %3429 = vst.msk [vmem:[%s10 + $0xa] sm:$0x3] %vm2316, %v2314
    %v3430 = vld [vmem:[#allocation3 + $0x10] sm:$0x30]
    %v3431 = vld [vmem:[#allocation3 + $0x8] sm:$0xc]
    %v3432 = vrot.slane %v3398, 2
    %3433 = vrot.lane.b32.xlu0 %v3432, 32
    %v3434 = vpop.permute.xlu0 %3433
    %v3435 = vsel %vm214, %v3434, 0
    %3437 = vmatprep.subr.mxu0 0.0
    %3438 = vmatpush1.msra.mxu0 %v1998
    %3439 = vmatprep.subr.mxu0 0.0
    %3440 = vmatpush1.msra.mxu0 %v1999
    %3441 = vmatprep.subr.mxu0 0.0
    %3442 = vmatpush1.msra.mxu0 %v2000
    %3443 = vmatprep.subr.mxu0 0.0
    %3444 = vmatpush1.msra.mxu0 %v2001
    %3445 = vmatprep.subr.mxu0 0.0
    %3446 = vmatpush1.msra.mxu0 0.0
    %3447 = vmatprep.subr.mxu0 0.0
    %3448 = vmatpush1.msra.mxu0 0.0
    %3449 = vmatprep.subr.mxu0 0.0
    %3450 = vmatpush1.msra.mxu0 0.0
    %3451 = vmatprep.subr.mxu0 0.0
    %3452 = vmatpush1.msra.mxu0 0.0
    %3453 = vmatprep.subr.mxu0 0.0
    %3454 = vmatpush1.msra.mxu0 0.0
    %3455 = vmatprep.subr.mxu0 0.0
    %3456 = vmatpush1.msra.mxu0 0.0
    %3457 = vmatprep.subr.mxu0 0.0
    %3458 = vmatpush1.msra.mxu0 0.0
    %3459 = vmatprep.subr.mxu0 0.0
    %3460 = vmatpush1.msra.mxu0 0.0
    %3461 = vmatprep.subr.mxu0 0.0
    %3462 = vmatpush1.msra.mxu0 0.0
    %3463 = vmatprep.subr.mxu0 0.0
    %3464 = vmatpush1.msra.mxu0 0.0
    %3465 = vmatprep.subr.mxu0 0.0
    %3466 = vmatpush1.msra.mxu0 0.0
    %3467 = vmatprep.subr.mxu0 0.0
    %3468 = vmatpush1.msra.mxu0 0.0
    %3469 = vmatprep.subr.mxu0 0.0
    %3470 = vmatpush1.msra.mxu0 0.0
    %3471 = vmatprep.subr.mxu0 0.0
    %3472 = vmatpush1.msra.mxu0 0.0
    %3473 = vmatprep.subr.mxu0 0.0
    %3474 = vmatpush1.msra.mxu0 0.0
    %3475 = vmatprep.subr.mxu0 0.0
    %3476 = vmatpush1.msra.mxu0 0.0
    %3477 = vmatprep.subr.mxu0 0.0
    %3478 = vmatpush1.msra.mxu0 0.0
    %3479 = vmatprep.subr.mxu0 0.0
    %3480 = vmatpush1.msra.mxu0 0.0
    %3481 = vmatprep.subr.mxu0 0.0
    %3482 = vmatpush1.msra.mxu0 0.0
    %3483 = vmatprep.subr.mxu0 0.0
    %3484 = vmatpush1.msra.mxu0 0.0
    %3485 = vmatprep.subr.mxu0 0.0
    %3486 = vmatpush1.msra.mxu0 0.0
    %3487 = vmatprep.subr.mxu0 0.0
    %3488 = vmatpush1.msra.mxu0 0.0
    %3489 = vmatprep.subr.mxu0 0.0
    %3490 = vmatpush1.msra.mxu0 0.0
    %3491 = vmatprep.subr.mxu0 0.0
    %3492 = vmatpush1.msra.mxu0 0.0
    %3493 = vmatprep.subr.mxu0 0.0
    %3494 = vmatpush1.msra.mxu0 0.0
    %3495 = vmatprep.subr.mxu0 0.0
    %3496 = vmatpush1.msra.mxu0 0.0
    %3497 = vmatprep.subr.mxu0 0.0
    %3498 = vmatpush1.msra.mxu0 0.0
    %3499 = vmatprep.subr.mxu0 0.0
    %3500 = vmatpush1.msra.mxu0 0.0
    %3501 = vmatprep.mubr.f32.mxu0 0.0
    %3502 = vmatmul.mubr.f32.gmra.mrb[0].mxu0 %v3435
    %v3503 = vpop.f32.mrb[0].mxu0
    %v3504 = vadd.f32 0.0, %v3503
    %v3505 = vpop.f32.mrb[0].mxu0
    %3506 = vdwg.mxu0
    %v3508 = vrot.slane %v3504, 4
    %v3510 = vadd.f32 %v3430, %v3508
    %v3511 = vrot.slane %v3418, 4
    %3512 = vrot.lane.b32.xlu0 %v3511, 32
    %v3513 = vpop.permute.xlu0 %3512
    %v3514 = vsel %vm214, %v3513, 0
    %3516 = vmatprep.subr.mxu0 0.0
    %3517 = vmatpush1.msra.mxu0 %v2002
    %3518 = vmatprep.subr.mxu0 0.0
    %3519 = vmatpush1.msra.mxu0 %v2003
    %3520 = vmatprep.subr.mxu0 0.0
    %3521 = vmatpush1.msra.mxu0 %v2004
    %3522 = vmatprep.subr.mxu0 0.0
    %3523 = vmatpush1.msra.mxu0 %v2005
    %3524 = vmatprep.subr.mxu0 0.0
    %3525 = vmatpush1.msra.mxu0 0.0
    %3526 = vmatprep.subr.mxu0 0.0
    %3527 = vmatpush1.msra.mxu0 0.0
    %3528 = vmatprep.subr.mxu0 0.0
    %3529 = vmatpush1.msra.mxu0 0.0
    %3530 = vmatprep.subr.mxu0 0.0
    %3531 = vmatpush1.msra.mxu0 0.0
    %3532 = vmatprep.subr.mxu0 0.0
    %3533 = vmatpush1.msra.mxu0 0.0
    %3534 = vmatprep.subr.mxu0 0.0
    %3535 = vmatpush1.msra.mxu0 0.0
    %3536 = vmatprep.subr.mxu0 0.0
    %3537 = vmatpush1.msra.mxu0 0.0
    %3538 = vmatprep.subr.mxu0 0.0
    %3539 = vmatpush1.msra.mxu0 0.0
    %3540 = vmatprep.subr.mxu0 0.0
    %3541 = vmatpush1.msra.mxu0 0.0
    %3542 = vmatprep.subr.mxu0 0.0
    %3543 = vmatpush1.msra.mxu0 0.0
    %3544 = vmatprep.subr.mxu0 0.0
    %3545 = vmatpush1.msra.mxu0 0.0
    %3546 = vmatprep.subr.mxu0 0.0
    %3547 = vmatpush1.msra.mxu0 0.0
    %3548 = vmatprep.subr.mxu0 0.0
    %3549 = vmatpush1.msra.mxu0 0.0
    %3550 = vmatprep.subr.mxu0 0.0
    %3551 = vmatpush1.msra.mxu0 0.0
    %3552 = vmatprep.subr.mxu0 0.0
    %3553 = vmatpush1.msra.mxu0 0.0
    %3554 = vmatprep.subr.mxu0 0.0
    %3555 = vmatpush1.msra.mxu0 0.0
    %3556 = vmatprep.subr.mxu0 0.0
    %3557 = vmatpush1.msra.mxu0 0.0
    %3558 = vmatprep.subr.mxu0 0.0
    %3559 = vmatpush1.msra.mxu0 0.0
    %3560 = vmatprep.subr.mxu0 0.0
    %3561 = vmatpush1.msra.mxu0 0.0
    %3562 = vmatprep.subr.mxu0 0.0
    %3563 = vmatpush1.msra.mxu0 0.0
    %3564 = vmatprep.subr.mxu0 0.0
    %3565 = vmatpush1.msra.mxu0 0.0
    %3566 = vmatprep.subr.mxu0 0.0
    %3567 = vmatpush1.msra.mxu0 0.0
    %3568 = vmatprep.subr.mxu0 0.0
    %3569 = vmatpush1.msra.mxu0 0.0
    %3570 = vmatprep.subr.mxu0 0.0
    %3571 = vmatpush1.msra.mxu0 0.0
    %3572 = vmatprep.subr.mxu0 0.0
    %3573 = vmatpush1.msra.mxu0 0.0
    %3574 = vmatprep.subr.mxu0 0.0
    %3575 = vmatpush1.msra.mxu0 0.0
    %3576 = vmatprep.subr.mxu0 0.0
    %3577 = vmatpush1.msra.mxu0 0.0
    %3578 = vmatprep.subr.mxu0 0.0
    %3579 = vmatpush1.msra.mxu0 0.0
    %3580 = vmatprep.mubr.f32.mxu0 0.0
    %3581 = vmatmul.mubr.f32.gmra.mrb[0].mxu0 %v3514
    %v3582 = vpop.f32.mrb[0].mxu0
    %v3583 = vadd.f32 0.0, %v3582
    %v3584 = vpop.f32.mrb[0].mxu0
    %3585 = vdwg.mxu0
    %v3587 = vrot.slane %v3583, 6
    %v3589 = vadd.f32 %v3431, %v3587
    %v3590 = vxor.u32 %v3510, 2147483648
    %v3591 = vmul.f32 %v3590, 1.442695
    %v3592 = vpow.pop %v3591
    %v3593 = vadd.f32 %v3592, 1.0
    %v3594 = vrcp.pop %v3593
    %v3595 = vmul.f32 1.0, %v3594
    %v3596 = vtanh.pop %v3510
    %v3597 = vxor.u32 %v3589, 2147483648
    %v3598 = vmul.f32 %v3597, 1.442695
    %v3599 = vpow.pop %v3598
    %v3600 = vadd.f32 %v3599, 1.0
    %v3601 = vrcp.pop %v3600
    %v3602 = vmul.f32 1.0, %v3601
    %v3603 = vtanh.pop %v3589
    %v3605 = vrot.slane %v3392, 6
    %v3607 = vmul.f32 %v3595, %v3605
    %3609 = vrot.lane.b32.xlu0 %v3596, 64
    %v3610 = vpop.permute.xlu0 %3609
    %v3612 = vmul.f32 %v3595, %v3610
    %3614 = vrot.lane.b32.xlu0 %v3612, 32
    %v3615 = vpop.permute.xlu0 %3614
    %v3617 = vadd.f32 %v3607, %v3615
    %v3618 = vtanh.pop %v3617
    %3620 = vrot.lane.b32.xlu0 %v3618, 64
    %v3621 = vpop.permute.xlu0 %3620
    %v3623 = vmul.f32 %v3595, %v3621
    %v3625 = vrot.slane %v3412, 2
    %v3627 = vmul.f32 %v3602, %v3625
    %3629 = vrot.lane.b32.xlu0 %v3603, 64
    %v3630 = vpop.permute.xlu0 %3629
    %v3632 = vmul.f32 %v3602, %v3630
    %3634 = vrot.lane.b32.xlu0 %v3632, 32
    %v3635 = vpop.permute.xlu0 %3634
    %v3637 = vadd.f32 %v3627, %v3635
    %v3638 = vtanh.pop %v3637
    %3640 = vrot.lane.b32.xlu0 %v3638, 64
    %v3641 = vpop.permute.xlu0 %3640
    %v3643 = vmul.f32 %v3602, %v3641
    %3645 = vrot.lane.b32.xlu0 %v3623, 32
    %v3646 = vpop.permute.xlu0 %3645
    %3648 = vst.msk [vmem:[%s10 + $0x8] sm:$0x30] %vm864, %v3646
    %3650 = vrot.lane.b32.xlu0 %v3643, 64
    %v3651 = vpop.permute.xlu0 %3650
    %3653 = vst.msk [vmem:[%s10] sm:$0xc] %vm870, %v3651
    %3654 = vst.msk [vmem:[%s10 + $0xc] sm:$0x3] %vm2316, %v2314
    %v3655 = vld [vmem:[#allocation3 + $0x10] sm:$0xc0]
    %v3656 = vld [vmem:[#allocation3 + $0x8] sm:$0x3]
    %v3657 = vrot.slane %v3623, 4
    %3658 = vrot.lane.b32.xlu0 %v3657, 32
    %v3659 = vpop.permute.xlu0 %3658
    %v3660 = vsel %vm214, %v3659, 0
    %3662 = vmatprep.subr.mxu0 0.0
    %3663 = vmatpush1.msra.mxu0 %v1998
    %3664 = vmatprep.subr.mxu0 0.0
    %3665 = vmatpush1.msra.mxu0 %v1999
    %3666 = vmatprep.subr.mxu0 0.0
    %3667 = vmatpush1.msra.mxu0 %v2000
    %3668 = vmatprep.subr.mxu0 0.0
    %3669 = vmatpush1.msra.mxu0 %v2001
    %3670 = vmatprep.subr.mxu0 0.0
    %3671 = vmatpush1.msra.mxu0 0.0
    %3672 = vmatprep.subr.mxu0 0.0
    %3673 = vmatpush1.msra.mxu0 0.0
    %3674 = vmatprep.subr.mxu0 0.0
    %3675 = vmatpush1.msra.mxu0 0.0
    %3676 = vmatprep.subr.mxu0 0.0
    %3677 = vmatpush1.msra.mxu0 0.0
    %3678 = vmatprep.subr.mxu0 0.0
    %3679 = vmatpush1.msra.mxu0 0.0
    %3680 = vmatprep.subr.mxu0 0.0
    %3681 = vmatpush1.msra.mxu0 0.0
    %3682 = vmatprep.subr.mxu0 0.0
    %3683 = vmatpush1.msra.mxu0 0.0
    %3684 = vmatprep.subr.mxu0 0.0
    %3685 = vmatpush1.msra.mxu0 0.0
    %3686 = vmatprep.subr.mxu0 0.0
    %3687 = vmatpush1.msra.mxu0 0.0
    %3688 = vmatprep.subr.mxu0 0.0
    %3689 = vmatpush1.msra.mxu0 0.0
    %3690 = vmatprep.subr.mxu0 0.0
    %3691 = vmatpush1.msra.mxu0 0.0
    %3692 = vmatprep.subr.mxu0 0.0
    %3693 = vmatpush1.msra.mxu0 0.0
    %3694 = vmatprep.subr.mxu0 0.0
    %3695 = vmatpush1.msra.mxu0 0.0
    %3696 = vmatprep.subr.mxu0 0.0
    %3697 = vmatpush1.msra.mxu0 0.0
    %3698 = vmatprep.subr.mxu0 0.0
    %3699 = vmatpush1.msra.mxu0 0.0
    %3700 = vmatprep.subr.mxu0 0.0
    %3701 = vmatpush1.msra.mxu0 0.0
    %3702 = vmatprep.subr.mxu0 0.0
    %3703 = vmatpush1.msra.mxu0 0.0
    %3704 = vmatprep.subr.mxu0 0.0
    %3705 = vmatpush1.msra.mxu0 0.0
    %3706 = vmatprep.subr.mxu0 0.0
    %3707 = vmatpush1.msra.mxu0 0.0
    %3708 = vmatprep.subr.mxu0 0.0
    %3709 = vmatpush1.msra.mxu0 0.0
    %3710 = vmatprep.subr.mxu0 0.0
    %3711 = vmatpush1.msra.mxu0 0.0
    %3712 = vmatprep.subr.mxu0 0.0
    %3713 = vmatpush1.msra.mxu0 0.0
    %3714 = vmatprep.subr.mxu0 0.0
    %3715 = vmatpush1.msra.mxu0 0.0
    %3716 = vmatprep.subr.mxu0 0.0
    %3717 = vmatpush1.msra.mxu0 0.0
    %3718 = vmatprep.subr.mxu0 0.0
    %3719 = vmatpush1.msra.mxu0 0.0
    %3720 = vmatprep.subr.mxu0 0.0
    %3721 = vmatpush1.msra.mxu0 0.0
    %3722 = vmatprep.subr.mxu0 0.0
    %3723 = vmatpush1.msra.mxu0 0.0
    %3724 = vmatprep.subr.mxu0 0.0
    %3725 = vmatpush1.msra.mxu0 0.0
    %3726 = vmatprep.mubr.f32.mxu0 0.0
    %3727 = vmatmul.mubr.f32.gmra.mrb[0].mxu0 %v3660
    %v3728 = vpop.f32.mrb[0].mxu0
    %v3729 = vadd.f32 0.0, %v3728
    %v3730 = vpop.f32.mrb[0].mxu0
    %3731 = vdwg.mxu0
    %v3733 = vrot.slane %v3729, 2
    %v3735 = vadd.f32 %v3655, %v3733
    %v3736 = vrot.slane %v3643, 2
    %3737 = vrot.lane.b32.xlu0 %v3736, 32
    %v3738 = vpop.permute.xlu0 %3737
    %v3739 = vsel %vm214, %v3738, 0
    %3741 = vmatprep.subr.mxu0 0.0
    %3742 = vmatpush1.msra.mxu0 %v2002
    %3743 = vmatprep.subr.mxu0 0.0
    %3744 = vmatpush1.msra.mxu0 %v2003
    %3745 = vmatprep.subr.mxu0 0.0
    %3746 = vmatpush1.msra.mxu0 %v2004
    %3747 = vmatprep.subr.mxu0 0.0
    %3748 = vmatpush1.msra.mxu0 %v2005
    %3749 = vmatprep.subr.mxu0 0.0
    %3750 = vmatpush1.msra.mxu0 0.0
    %3751 = vmatprep.subr.mxu0 0.0
    %3752 = vmatpush1.msra.mxu0 0.0
    %3753 = vmatprep.subr.mxu0 0.0
    %3754 = vmatpush1.msra.mxu0 0.0
    %3755 = vmatprep.subr.mxu0 0.0
    %3756 = vmatpush1.msra.mxu0 0.0
    %3757 = vmatprep.subr.mxu0 0.0
    %3758 = vmatpush1.msra.mxu0 0.0
    %3759 = vmatprep.subr.mxu0 0.0
    %3760 = vmatpush1.msra.mxu0 0.0
    %3761 = vmatprep.subr.mxu0 0.0
    %3762 = vmatpush1.msra.mxu0 0.0
    %3763 = vmatprep.subr.mxu0 0.0
    %3764 = vmatpush1.msra.mxu0 0.0
    %3765 = vmatprep.subr.mxu0 0.0
    %3766 = vmatpush1.msra.mxu0 0.0
    %3767 = vmatprep.subr.mxu0 0.0
    %3768 = vmatpush1.msra.mxu0 0.0
    %3769 = vmatprep.subr.mxu0 0.0
    %3770 = vmatpush1.msra.mxu0 0.0
    %3771 = vmatprep.subr.mxu0 0.0
    %3772 = vmatpush1.msra.mxu0 0.0
    %3773 = vmatprep.subr.mxu0 0.0
    %3774 = vmatpush1.msra.mxu0 0.0
    %3775 = vmatprep.subr.mxu0 0.0
    %3776 = vmatpush1.msra.mxu0 0.0
    %3777 = vmatprep.subr.mxu0 0.0
    %3778 = vmatpush1.msra.mxu0 0.0
    %3779 = vmatprep.subr.mxu0 0.0
    %3780 = vmatpush1.msra.mxu0 0.0
    %3781 = vmatprep.subr.mxu0 0.0
    %3782 = vmatpush1.msra.mxu0 0.0
    %3783 = vmatprep.subr.mxu0 0.0
    %3784 = vmatpush1.msra.mxu0 0.0
    %3785 = vmatprep.subr.mxu0 0.0
    %3786 = vmatpush1.msra.mxu0 0.0
    %3787 = vmatprep.subr.mxu0 0.0
    %3788 = vmatpush1.msra.mxu0 0.0
    %3789 = vmatprep.subr.mxu0 0.0
    %3790 = vmatpush1.msra.mxu0 0.0
    %3791 = vmatprep.subr.mxu0 0.0
    %3792 = vmatpush1.msra.mxu0 0.0
    %3793 = vmatprep.subr.mxu0 0.0
    %3794 = vmatpush1.msra.mxu0 0.0
    %3795 = vmatprep.subr.mxu0 0.0
    %3796 = vmatpush1.msra.mxu0 0.0
    %3797 = vmatprep.subr.mxu0 0.0
    %3798 = vmatpush1.msra.mxu0 0.0
    %3799 = vmatprep.subr.mxu0 0.0
    %3800 = vmatpush1.msra.mxu0 0.0
    %3801 = vmatprep.subr.mxu0 0.0
    %3802 = vmatpush1.msra.mxu0 0.0
    %3803 = vmatprep.subr.mxu0 0.0
    %3804 = vmatpush1.msra.mxu0 0.0
    %3805 = vmatprep.mubr.f32.mxu0 0.0
    %3806 = vmatmul.mubr.f32.gmra.mrb[0].mxu0 %v3739
    %v3807 = vpop.f32.mrb[0].mxu0
    %v3808 = vadd.f32 0.0, %v3807
    %v3809 = vpop.f32.mrb[0].mxu0
    %3810 = vdwg.mxu0
    %v3811 = vadd.f32 %v3656, %v3808
    %v3812 = vxor.u32 %v3735, 2147483648
    %v3813 = vmul.f32 %v3812, 1.442695
    %v3814 = vpow.pop %v3813
    %v3815 = vadd.f32 %v3814, 1.0
    %v3816 = vrcp.pop %v3815
    %v3817 = vmul.f32 1.0, %v3816
    %v3818 = vtanh.pop %v3735
    %v3819 = vxor.u32 %v3811, 2147483648
    %v3820 = vmul.f32 %v3819, 1.442695
    %v3821 = vpow.pop %v3820
    %v3822 = vadd.f32 %v3821, 1.0
    %v3823 = vrcp.pop %v3822
    %v3824 = vmul.f32 1.0, %v3823
    %v3825 = vtanh.pop %v3811
    %v3827 = vrot.slane %v3617, 6
    %v3829 = vmul.f32 %v3817, %v3827
    %3831 = vrot.lane.b32.xlu0 %v3818, 64
    %v3832 = vpop.permute.xlu0 %3831
    %v3834 = vmul.f32 %v3817, %v3832
    %3836 = vrot.lane.b32.xlu0 %v3834, 32
    %v3837 = vpop.permute.xlu0 %3836
    %v3839 = vadd.f32 %v3829, %v3837
    %v3840 = vtanh.pop %v3839
    %3842 = vrot.lane.b32.xlu0 %v3840, 64
    %v3843 = vpop.permute.xlu0 %3842
    %v3845 = vmul.f32 %v3817, %v3843
    %v3847 = vrot.slane %v3637, 2
    %v3849 = vmul.f32 %v3824, %v3847
    %3851 = vrot.lane.b32.xlu0 %v3825, 64
    %v3852 = vpop.permute.xlu0 %3851
    %v3854 = vmul.f32 %v3824, %v3852
    %3856 = vrot.lane.b32.xlu0 %v3854, 32
    %v3857 = vpop.permute.xlu0 %3856
    %v3859 = vadd.f32 %v3849, %v3857
    %v3860 = vtanh.pop %v3859
    %3862 = vrot.lane.b32.xlu0 %v3860, 64
    %v3863 = vpop.permute.xlu0 %3862
    %v3865 = vmul.f32 %v3824, %v3863
    %3867 = vrot.lane.b32.xlu0 %v3845, 32
    %v3868 = vpop.permute.xlu0 %3867
    %3870 = vst.msk [vmem:[%s10 + $0x8] sm:$0xc0] %vm1087, %v3868
    %3872 = vrot.lane.b32.xlu0 %v3865, 64
    %v3873 = vpop.permute.xlu0 %3872
    %3875 = vst.msk [vmem:[%s10] sm:$0x3] %vm1093, %v3873
    %3876 = vst.msk [vmem:[%s10 + $0xe] sm:$0x3] %vm2316, %v2314
    // Predicated region
    $region62: #{encoder_forward.1} parent=1 // pred_check
      _
    $region63: #{encoder_forward.1} parent=1 // pred_check_branch
      %3878 = sbr.rel (0) target = $region65
    $region64: #{encoder_forward.1} parent=1 // pred_region
      _
    $region65: #{encoder_forward.1} parent=1 // pred_fallthru
      _
    // Predicated region
    $region66: #{encoder_forward.1} parent=1 // pred_check
      _
    $region67: #{encoder_forward.1} parent=1 // pred_check_branch
      %3880 = sbr.rel (0) target = $region69
    $region68: #{encoder_forward.1} parent=1 // pred_region
      _
    $region69: #{encoder_forward.1} parent=1 // pred_fallthru
      _
    %3881 = vsyncpa [#allocation5], 1
    %3882 = vsyncpa [#allocation7], 1
    %3883 = vsyncpa [#allocation10], 1

</llo_original>
